<compile_context>
chip_gen: v6e
topology: v6e:2x2x1
jax: 0.10.0
libtpu: 0.0.40
codegen_flags: <defaults>
</compile_context>

<pallas_src>
import functools

import jax
import jax.numpy as jnp
from jax import lax
from jax.experimental import pallas as pl
from jax.experimental.pallas import tpu as pltpu


def _round_up(x, m):
    return (x + m - 1) // m * m


def _vmem_limit_bytes():
    kind = ""
    try:
        kind = jax.devices()[0].device_kind.lower()
    except Exception:
        pass
    if "v7" in kind:
        return 48 * 1024 * 1024      # 64 MiB physical: leave headroom
    if "v5" in kind or "v6" in kind:
        return 64 * 1024 * 1024      # 128 MiB physical
    return 32 * 1024 * 1024          # conservative fallback


@functools.partial(jax.jit,
                   static_argnames=("stride", "padding", "groups", "eps",
                                    "mxu_dtype"))
def conv_block_forward(x_nchw, w_oihw, gamma, beta, *, stride, padding,
                       groups=1, eps=1e-5, mxu_dtype=jnp.bfloat16):
    """Matches ConvBlock.forward(x) in PyTorch (train-mode BatchNorm)."""
    N, Cin, H, W = x_nchw.shape
    Cout, Cin_g, KH, KW = w_oihw.shape
    assert Cin_g == Cin // groups and Cout % groups == 0

    s = stride
    Ho = (H + 2 * padding - KH) // s + 1
    Wo = (W + 2 * padding - KW) // s + 1
    Mrow = Ho * Wo                       # output rows per image
    LANE = 128
    Cp = _round_up(Cout, LANE)           # lane-dense output channels
    depthwise = (groups == Cin == Cout and Cin_g == 1)
    f32 = jnp.float32
    y_dtype = mxu_dtype                  # bf16 intermediate on the perf path

    # Contraction-dim padding: 16 for bf16 packing, 8 for f32.  For the
    # depthwise (VPU) path the input channel dim must line up with Cp.
    if depthwise:
        Cx = Cp
    else:
        Cx = _round_up(Cin, 16 if mxu_dtype == jnp.bfloat16 else 8)

    Hp, Wp = H + 2 * padding, W + 2 * padding
    Hps, Wps = -(-Hp // s), -(-Wp // s)  # per-phase spatial extents
    P = s * s                            # number of stride phases

    # ---- input prep (one fused XLA pass): NCHW->NHWC, pad, stride-phase split
    xt = jnp.transpose(x_nchw, (0, 2, 3, 1))
    xt = jnp.pad(xt, ((0, 0),
                      (padding, padding + Hps * s - Hp),
                      (padding, padding + Wps * s - Wp),
                      (0, Cx - Cin)))
    # x_prep[n, ((a*s)+b)*Hps + hi, wi, c] == x_pad[n, hi*s + a, wi*s + b, c]
    xt = xt.reshape(N, Hps, s, Wps, s, Cx).transpose(0, 2, 4, 1, 3, 5)
    x_prep = xt.reshape(N, P * Hps, Wps, Cx).astype(mxu_dtype)

    # ---- weight prep -------------------------------------------------------
    if depthwise:
        # (Cout,1,KH,KW) -> (KH*KW, 1, Cp) f32 per-tap channel vectors (VPU).
        wt = jnp.transpose(w_oihw[:, 0, :, :], (1, 2, 0)).astype(f32)
        w_prep = jnp.pad(wt.reshape(KH * KW, 1, Cout),
                         ((0, 0), (0, 0), (0, Cp - Cout)))
    else:
        w_hwio = jnp.transpose(w_oihw, (2, 3, 1, 0))       # (KH,KW,Cin_g,Cout)
        if groups == 1:
            w_full = w_hwio
        else:
            # Small group counts: per-tap block-diagonal weight.
            Cout_g = Cout // groups
            w_full = jnp.zeros((KH, KW, Cin, Cout), w_hwio.dtype)
            for g in range(groups):
                w_full = w_full.at[:, :, g * Cin_g:(g + 1) * Cin_g,
                                   g * Cout_g:(g + 1) * Cout_g].set(
                    w_hwio[:, :, :, g * Cout_g:(g + 1) * Cout_g])
        w_prep = jnp.pad(w_full.reshape(KH * KW, Cin, Cout),
                         ((0, 0), (0, Cx - Cin), (0, Cp - Cout))
                         ).astype(mxu_dtype)

    vmem_lim = _vmem_limit_bytes()

    # ------------------------------------------------------------------------
    # Kernel 1: conv (in-kernel tap accumulation) + per-image BN statistics.
    # One grid step = one image; output tile (Mrow, Cp) is lane-dense.
    # ------------------------------------------------------------------------
    def conv_stats_kernel(x_ref, w_ref, y_ref, stats_ref):
        acc = jnp.zeros((Mrow, Cp), f32)
        for kh in range(KH):
            for kw in range(KW):
                ph = (kh % s) * s + (kw % s)           # stride phase
                hs = ph * Hps + kh // s                # contiguous row window
                ws = kw // s                           # contiguous col window
                tap = x_ref[0, hs:hs + Ho, ws:ws + Wo, :].reshape(Mrow, Cx)
                t = kh * KW + kw
                if depthwise:
                    acc = acc + tap.astype(f32) * w_ref[t]          # VPU FMA
                else:
                    acc = acc + jnp.dot(tap, w_ref[t],
                                        preferred_element_type=f32)  # MXU
        y_ref[0] = acc.astype(y_ref.dtype)

        # Per-image centered statistics (Welford-style chunk), combined in XLA.
        # NOTE: if the bundle shows the XLU reductions binding for tiny Cin,
        # these sums can be moved to the MXU via ones(1,Mrow) @ acc.
        ssum = jnp.sum(acc, axis=0, keepdims=True)
        mean = ssum * (1.0 / Mrow)
        d = acc - mean
        m2 = jnp.sum(d * d, axis=0, keepdims=True)
        stats_ref[0] = jnp.concatenate(
            [ssum, m2, jnp.zeros((6, Cp), f32)], axis=0)   # one unmasked store

    y, stats = pl.pallas_call(
        conv_stats_kernel,
        out_shape=(jax.ShapeDtypeStruct((N, Mrow, Cp), y_dtype),
                   jax.ShapeDtypeStruct((N, 8, Cp), f32)),
        grid_spec=pltpu.PrefetchScalarGridSpec(
            num_scalar_prefetch=0,
            grid=(N,),
            in_specs=[
                pl.BlockSpec((1, P * Hps, Wps, Cx), lambda n: (n, 0, 0, 0)),
                pl.BlockSpec(w_prep.shape, lambda n: (0, 0, 0)),
            ],
            out_specs=[
                pl.BlockSpec((1, Mrow, Cp), lambda n: (n, 0, 0)),
                pl.BlockSpec((1, 8, Cp), lambda n: (n, 0, 0)),
            ]),
        compiler_params=pltpu.CompilerParams(
            dimension_semantics=("parallel",),
            vmem_limit_bytes=vmem_lim),
    )(x_prep, w_prep)

    # ---- BN affine params from per-image stats (O(N*Cout) XLA glue) --------
    sums = stats[:, 0, :Cout]
    m2s = stats[:, 1, :Cout]
    total = N * Mrow
    means = sums / Mrow
    gmean = jnp.sum(sums, axis=0) / total
    m2 = jnp.sum(m2s, axis=0) + Mrow * jnp.sum((means - gmean) ** 2, axis=0)
    var = jnp.maximum(m2 / total, 0.0)                   # biased batch var
    scale = gamma.astype(f32) * lax.rsqrt(var + eps)
    shift = beta.astype(f32) - gmean * scale
    scale_p = jnp.pad(scale, (0, Cp - Cout)).reshape(1, Cp)
    shift_p = jnp.pad(shift, (0, Cp - Cout)).reshape(1, Cp)

    # ------------------------------------------------------------------------
    # Kernel 2: BatchNorm affine + SiLU, in-place over y (aliased), bf16 I/O.
    # ------------------------------------------------------------------------
    def bn_silu_kernel(y_ref, scale_ref, shift_ref, o_ref):
        z = y_ref[0].astype(f32) * scale_ref[...] + shift_ref[...]
        # SiLU: z * sigmoid(z); exp and (approx) reciprocal routed to the EUP.
        sig = pl.reciprocal(1.0 + jnp.exp(-z), approx=True)
        o_ref[0] = (z * sig).astype(o_ref.dtype)

    out_p = pl.pallas_call(
        bn_silu_kernel,
        out_shape=jax.ShapeDtypeStruct((N, Mrow, Cp), y_dtype),
        grid_spec=pltpu.PrefetchScalarGridSpec(
            num_scalar_prefetch=0,
            grid=(N,),
            in_specs=[
                pl.BlockSpec((1, Mrow, Cp), lambda n: (n, 0, 0)),
                pl.BlockSpec((1, Cp), lambda n: (0, 0)),
                pl.BlockSpec((1, Cp), lambda n: (0, 0)),
            ],
            out_specs=pl.BlockSpec((1, Mrow, Cp), lambda n: (n, 0, 0))),
        compiler_params=pltpu.CompilerParams(
            dimension_semantics=("parallel",),
            vmem_limit_bytes=vmem_lim),
        input_output_aliases={0: 0},      # y is dead after this pass
    )(y, scale_p, shift_p)

    # Single fused XLA epilogue: slice pad channels, cast to f32, NCHW.
    out = out_p[:, :, :Cout].astype(f32).reshape(N, Ho, Wo, Cout)
    return jnp.transpose(out, (0, 3, 1, 2))


def ref_conv_block(x_nchw, w_oihw, gamma, beta, *, stride, padding, groups=1,
                   eps=1e-5):
    """Pure-JAX reference with identical semantics (for correctness check)."""
    y = lax.conv_general_dilated(
        x_nchw.astype(jnp.float32), w_oihw.astype(jnp.float32),
        window_strides=(stride, stride),
        padding=[(padding, padding), (padding, padding)],
        dimension_numbers=('NCHW', 'OIHW', 'NCHW'),
        feature_group_count=groups,
        precision=lax.Precision.HIGHEST)
    mean = jnp.mean(y, axis=(0, 2, 3), keepdims=True)
    var = jnp.mean((y - mean) ** 2, axis=(0, 2, 3), keepdims=True)
    yn = (y - mean) * lax.rsqrt(var + eps)
    yn = yn * gamma[None, :, None, None] + beta[None, :, None, None]
    return yn * jax.nn.sigmoid(yn)


if __name__ == "__main__":
    keys = jax.random.split(jax.random.PRNGKey(0), 12)

    # Case 1: standard conv (in=4, out=8, k=3, s=1, p=1), strict f32 path.
    x = jax.random.normal(keys[0], (2, 4, 16, 16), jnp.float32)
    w = 0.1 * jax.random.normal(keys[1], (8, 4, 3, 3), jnp.float32)
    gamma = 1.0 + 0.1 * jax.random.normal(keys[2], (8,), jnp.float32)
    beta = 0.1 * jax.random.normal(keys[3], (8,), jnp.float32)
    out = conv_block_forward(x, w, gamma, beta, stride=1, padding=1, groups=1,
                             mxu_dtype=jnp.float32)
    out = jax.block_until_ready(out)
    ref = ref_conv_block(x, w, gamma, beta, stride=1, padding=1, groups=1)
    assert out.shape == (2, 8, 16, 16)
    assert jnp.allclose(out, ref, atol=5e-3, rtol=5e-3), \
        float(jnp.max(jnp.abs(out - ref)))

    # Case 2: depthwise conv (in=out=8, k=3, s=1, p=1, groups=8), bf16 path.
    x2 = jax.random.normal(keys[4], (2, 8, 16, 16), jnp.float32)
    w2 = 0.1 * jax.random.normal(keys[5], (8, 1, 3, 3), jnp.float32)
    g2 = 1.0 + 0.1 * jax.random.normal(keys[6], (8,), jnp.float32)
    b2 = 0.1 * jax.random.normal(keys[7], (8,), jnp.float32)
    out2 = conv_block_forward(x2, w2, g2, b2, stride=1, padding=1, groups=8)
    out2 = jax.block_until_ready(out2)
    ref2 = ref_conv_block(x2, w2, g2, b2, stride=1, padding=1, groups=8)
    assert out2.shape == (2, 8, 16, 16)
    assert jnp.allclose(out2, ref2, atol=5e-2, rtol=5e-2), \
        float(jnp.max(jnp.abs(out2 - ref2)))

    # Case 3: strided conv (in=4, out=8, k=3, s=2, p=1), bf16 path.
    x3 = jax.random.normal(keys[8], (2, 4, 16, 16), jnp.float32)
    w3 = 0.1 * jax.random.normal(keys[9], (8, 4, 3, 3), jnp.float32)
    g3 = 1.0 + 0.1 * jax.random.normal(keys[10], (8,), jnp.float32)
    b3 = 0.1 * jax.random.normal(keys[11], (8,), jnp.float32)
    out3 = conv_block_forward(x3, w3, g3, b3, stride=2, padding=1, groups=1)
    out3 = jax.block_until_ready(out3)
    ref3 = ref_conv_block(x3, w3, g3, b3, stride=2, padding=1, groups=1)
    assert out3.shape == (2, 8, 8, 8)
    assert jnp.allclose(out3, ref3, atol=5e-2, rtol=5e-2), \
        float(jnp.max(jnp.abs(out3 - ref3)))

    print("KERNEL_OK")
</pallas_src>

<mosaic_0001>
module attributes {stable_mosaic.version = 11 : i64} {
  func.func @conv_stats_kernel(%arg0: i32, %arg1: memref<1x18x18x8xf32, #tpu.memory_space<vmem>>, %arg2: memref<9x8x128xf32, #tpu.memory_space<vmem>>, %arg3: memref<1x256x128xf32, #tpu.memory_space<vmem>>, %arg4: memref<1x8x128xf32, #tpu.memory_space<vmem>>) attributes {dimension_semantics = [#tpu.dimension_semantics<parallel>], iteration_bounds = array<i64: 2>, scalar_prefetch = 0 : i64, scratch_operands = 0 : i64, tpu.core_type = #tpu.core_type<tc>, window_params = [{transform_indices = @transform_0, window_bounds = array<i64: 1, 18, 18, 8>}, {pipeline_mode = #tpu.pipeline_mode<synchronous>, transform_indices = @transform_1, window_bounds = array<i64: 9, 8, 128>}, {transform_indices = @transform_2, window_bounds = array<i64: 1, 256, 128>}, {transform_indices = @transform_3, window_bounds = array<i64: 1, 8, 128>}]} {
    %cst = arith.constant 0.000000e+00 : f32
    %0 = vector.broadcast %cst : f32 to vector<256x128xf32>
    %c0 = arith.constant 0 : index
    %c0_0 = arith.constant 0 : index
    %c0_1 = arith.constant 0 : index
    %c0_2 = arith.constant 0 : index
    %1 = vector.load %arg1[%c0, %c0_0, %c0_1, %c0_2] : memref<1x18x18x8xf32, #tpu.memory_space<vmem>>, vector<1x16x16x8xf32>
    %2 = vector.shape_cast %1 : vector<1x16x16x8xf32> to vector<16x16x8xf32>
    %3 = vector.shape_cast %2 : vector<16x16x8xf32> to vector<256x8xf32>
    %c0_3 = arith.constant 0 : index
    %c0_4 = arith.constant 0 : index
    %c0_5 = arith.constant 0 : index
    %4 = vector.load %arg2[%c0_3, %c0_4, %c0_5] : memref<9x8x128xf32, #tpu.memory_space<vmem>>, vector<1x8x128xf32>
    %5 = vector.shape_cast %4 : vector<1x8x128xf32> to vector<8x128xf32>
    %cst_6 = arith.constant dense<0.000000e+00> : vector<256x128xf32>
    %6 = tpu.matmul %3, %5, %cst_6 {dimension_numbers = #tpu.dot_dimension_numbers<[1], [0], [0], [1], [0, 0, 1, 1], [], []>} : vector<256x8xf32>, vector<8x128xf32>, vector<256x128xf32> -> vector<256x128xf32>
    %7 = arith.addf %0, %6 : vector<256x128xf32>
    %c0_7 = arith.constant 0 : index
    %c0_8 = arith.constant 0 : index
    %c1 = arith.constant 1 : index
    %c0_9 = arith.constant 0 : index
    %8 = vector.load %arg1[%c0_7, %c0_8, %c1, %c0_9] : memref<1x18x18x8xf32, #tpu.memory_space<vmem>>, vector<1x16x16x8xf32>
    %9 = vector.shape_cast %8 : vector<1x16x16x8xf32> to vector<16x16x8xf32>
    %10 = vector.shape_cast %9 : vector<16x16x8xf32> to vector<256x8xf32>
    %c1_10 = arith.constant 1 : index
    %c0_11 = arith.constant 0 : index
    %c0_12 = arith.constant 0 : index
    %11 = vector.load %arg2[%c1_10, %c0_11, %c0_12] : memref<9x8x128xf32, #tpu.memory_space<vmem>>, vector<1x8x128xf32>
    %12 = vector.shape_cast %11 : vector<1x8x128xf32> to vector<8x128xf32>
    %cst_13 = arith.constant dense<0.000000e+00> : vector<256x128xf32>
    %13 = tpu.matmul %10, %12, %cst_13 {dimension_numbers = #tpu.dot_dimension_numbers<[1], [0], [0], [1], [0, 0, 1, 1], [], []>} : vector<256x8xf32>, vector<8x128xf32>, vector<256x128xf32> -> vector<256x128xf32>
    %14 = arith.addf %7, %13 : vector<256x128xf32>
    %c0_14 = arith.constant 0 : index
    %c0_15 = arith.constant 0 : index
    %c2 = arith.constant 2 : index
    %c0_16 = arith.constant 0 : index
    %15 = vector.load %arg1[%c0_14, %c0_15, %c2, %c0_16] : memref<1x18x18x8xf32, #tpu.memory_space<vmem>>, vector<1x16x16x8xf32>
    %16 = vector.shape_cast %15 : vector<1x16x16x8xf32> to vector<16x16x8xf32>
    %17 = vector.shape_cast %16 : vector<16x16x8xf32> to vector<256x8xf32>
    %c2_17 = arith.constant 2 : index
    %c0_18 = arith.constant 0 : index
    %c0_19 = arith.constant 0 : index
    %18 = vector.load %arg2[%c2_17, %c0_18, %c0_19] : memref<9x8x128xf32, #tpu.memory_space<vmem>>, vector<1x8x128xf32>
    %19 = vector.shape_cast %18 : vector<1x8x128xf32> to vector<8x128xf32>
    %cst_20 = arith.constant dense<0.000000e+00> : vector<256x128xf32>
    %20 = tpu.matmul %17, %19, %cst_20 {dimension_numbers = #tpu.dot_dimension_numbers<[1], [0], [0], [1], [0, 0, 1, 1], [], []>} : vector<256x8xf32>, vector<8x128xf32>, vector<256x128xf32> -> vector<256x128xf32>
    %21 = arith.addf %14, %20 : vector<256x128xf32>
    %c0_21 = arith.constant 0 : index
    %c1_22 = arith.constant 1 : index
    %c0_23 = arith.constant 0 : index
    %c0_24 = arith.constant 0 : index
    %22 = vector.load %arg1[%c0_21, %c1_22, %c0_23, %c0_24] : memref<1x18x18x8xf32, #tpu.memory_space<vmem>>, vector<1x16x16x8xf32>
    %23 = vector.shape_cast %22 : vector<1x16x16x8xf32> to vector<16x16x8xf32>
    %24 = vector.shape_cast %23 : vector<16x16x8xf32> to vector<256x8xf32>
    %c3 = arith.constant 3 : index
    %c0_25 = arith.constant 0 : index
    %c0_26 = arith.constant 0 : index
    %25 = vector.load %arg2[%c3, %c0_25, %c0_26] : memref<9x8x128xf32, #tpu.memory_space<vmem>>, vector<1x8x128xf32>
    %26 = vector.shape_cast %25 : vector<1x8x128xf32> to vector<8x128xf32>
    %cst_27 = arith.constant dense<0.000000e+00> : vector<256x128xf32>
    %27 = tpu.matmul %24, %26, %cst_27 {dimension_numbers = #tpu.dot_dimension_numbers<[1], [0], [0], [1], [0, 0, 1, 1], [], []>} : vector<256x8xf32>, vector<8x128xf32>, vector<256x128xf32> -> vector<256x128xf32>
    %28 = arith.addf %21, %27 : vector<256x128xf32>
    %c0_28 = arith.constant 0 : index
    %c1_29 = arith.constant 1 : index
    %c1_30 = arith.constant 1 : index
    %c0_31 = arith.constant 0 : index
    %29 = vector.load %arg1[%c0_28, %c1_29, %c1_30, %c0_31] : memref<1x18x18x8xf32, #tpu.memory_space<vmem>>, vector<1x16x16x8xf32>
    %30 = vector.shape_cast %29 : vector<1x16x16x8xf32> to vector<16x16x8xf32>
    %31 = vector.shape_cast %30 : vector<16x16x8xf32> to vector<256x8xf32>
    %c4 = arith.constant 4 : index
    %c0_32 = arith.constant 0 : index
    %c0_33 = arith.constant 0 : index
    %32 = vector.load %arg2[%c4, %c0_32, %c0_33] : memref<9x8x128xf32, #tpu.memory_space<vmem>>, vector<1x8x128xf32>
    %33 = vector.shape_cast %32 : vector<1x8x128xf32> to vector<8x128xf32>
    %cst_34 = arith.constant dense<0.000000e+00> : vector<256x128xf32>
    %34 = tpu.matmul %31, %33, %cst_34 {dimension_numbers = #tpu.dot_dimension_numbers<[1], [0], [0], [1], [0, 0, 1, 1], [], []>} : vector<256x8xf32>, vector<8x128xf32>, vector<256x128xf32> -> vector<256x128xf32>
    %35 = arith.addf %28, %34 : vector<256x128xf32>
    %c0_35 = arith.constant 0 : index
    %c1_36 = arith.constant 1 : index
    %c2_37 = arith.constant 2 : index
    %c0_38 = arith.constant 0 : index
    %36 = vector.load %arg1[%c0_35, %c1_36, %c2_37, %c0_38] : memref<1x18x18x8xf32, #tpu.memory_space<vmem>>, vector<1x16x16x8xf32>
    %37 = vector.shape_cast %36 : vector<1x16x16x8xf32> to vector<16x16x8xf32>
    %38 = vector.shape_cast %37 : vector<16x16x8xf32> to vector<256x8xf32>
    %c5 = arith.constant 5 : index
    %c0_39 = arith.constant 0 : index
    %c0_40 = arith.constant 0 : index
    %39 = vector.load %arg2[%c5, %c0_39, %c0_40] : memref<9x8x128xf32, #tpu.memory_space<vmem>>, vector<1x8x128xf32>
    %40 = vector.shape_cast %39 : vector<1x8x128xf32> to vector<8x128xf32>
    %cst_41 = arith.constant dense<0.000000e+00> : vector<256x128xf32>
    %41 = tpu.matmul %38, %40, %cst_41 {dimension_numbers = #tpu.dot_dimension_numbers<[1], [0], [0], [1], [0, 0, 1, 1], [], []>} : vector<256x8xf32>, vector<8x128xf32>, vector<256x128xf32> -> vector<256x128xf32>
    %42 = arith.addf %35, %41 : vector<256x128xf32>
    %c0_42 = arith.constant 0 : index
    %c2_43 = arith.constant 2 : index
    %c0_44 = arith.constant 0 : index
    %c0_45 = arith.constant 0 : index
    %43 = vector.load %arg1[%c0_42, %c2_43, %c0_44, %c0_45] : memref<1x18x18x8xf32, #tpu.memory_space<vmem>>, vector<1x16x16x8xf32>
    %44 = vector.shape_cast %43 : vector<1x16x16x8xf32> to vector<16x16x8xf32>
    %45 = vector.shape_cast %44 : vector<16x16x8xf32> to vector<256x8xf32>
    %c6 = arith.constant 6 : index
    %c0_46 = arith.constant 0 : index
    %c0_47 = arith.constant 0 : index
    %46 = vector.load %arg2[%c6, %c0_46, %c0_47] : memref<9x8x128xf32, #tpu.memory_space<vmem>>, vector<1x8x128xf32>
    %47 = vector.shape_cast %46 : vector<1x8x128xf32> to vector<8x128xf32>
    %cst_48 = arith.constant dense<0.000000e+00> : vector<256x128xf32>
    %48 = tpu.matmul %45, %47, %cst_48 {dimension_numbers = #tpu.dot_dimension_numbers<[1], [0], [0], [1], [0, 0, 1, 1], [], []>} : vector<256x8xf32>, vector<8x128xf32>, vector<256x128xf32> -> vector<256x128xf32>
    %49 = arith.addf %42, %48 : vector<256x128xf32>
    %c0_49 = arith.constant 0 : index
    %c2_50 = arith.constant 2 : index
    %c1_51 = arith.constant 1 : index
    %c0_52 = arith.constant 0 : index
    %50 = vector.load %arg1[%c0_49, %c2_50, %c1_51, %c0_52] : memref<1x18x18x8xf32, #tpu.memory_space<vmem>>, vector<1x16x16x8xf32>
    %51 = vector.shape_cast %50 : vector<1x16x16x8xf32> to vector<16x16x8xf32>
    %52 = vector.shape_cast %51 : vector<16x16x8xf32> to vector<256x8xf32>
    %c7 = arith.constant 7 : index
    %c0_53 = arith.constant 0 : index
    %c0_54 = arith.constant 0 : index
    %53 = vector.load %arg2[%c7, %c0_53, %c0_54] : memref<9x8x128xf32, #tpu.memory_space<vmem>>, vector<1x8x128xf32>
    %54 = vector.shape_cast %53 : vector<1x8x128xf32> to vector<8x128xf32>
    %cst_55 = arith.constant dense<0.000000e+00> : vector<256x128xf32>
    %55 = tpu.matmul %52, %54, %cst_55 {dimension_numbers = #tpu.dot_dimension_numbers<[1], [0], [0], [1], [0, 0, 1, 1], [], []>} : vector<256x8xf32>, vector<8x128xf32>, vector<256x128xf32> -> vector<256x128xf32>
    %56 = arith.addf %49, %55 : vector<256x128xf32>
    %c0_56 = arith.constant 0 : index
    %c2_57 = arith.constant 2 : index
    %c2_58 = arith.constant 2 : index
    %c0_59 = arith.constant 0 : index
    %57 = vector.load %arg1[%c0_56, %c2_57, %c2_58, %c0_59] : memref<1x18x18x8xf32, #tpu.memory_space<vmem>>, vector<1x16x16x8xf32>
    %58 = vector.shape_cast %57 : vector<1x16x16x8xf32> to vector<16x16x8xf32>
    %59 = vector.shape_cast %58 : vector<16x16x8xf32> to vector<256x8xf32>
    %c8 = arith.constant 8 : index
    %c0_60 = arith.constant 0 : index
    %c0_61 = arith.constant 0 : index
    %60 = vector.load %arg2[%c8, %c0_60, %c0_61] : memref<9x8x128xf32, #tpu.memory_space<vmem>>, vector<1x8x128xf32>
    %61 = vector.shape_cast %60 : vector<1x8x128xf32> to vector<8x128xf32>
    %cst_62 = arith.constant dense<0.000000e+00> : vector<256x128xf32>
    %62 = tpu.matmul %59, %61, %cst_62 {dimension_numbers = #tpu.dot_dimension_numbers<[1], [0], [0], [1], [0, 0, 1, 1], [], []>} : vector<256x8xf32>, vector<8x128xf32>, vector<256x128xf32> -> vector<256x128xf32>
    %63 = arith.addf %56, %62 : vector<256x128xf32>
    %c0_63 = arith.constant 0 : index
    %c0_64 = arith.constant 0 : index
    %c0_65 = arith.constant 0 : index
    %64 = vector.load %arg3[%c0_63, %c0_64, %c0_65] : memref<1x256x128xf32, #tpu.memory_space<vmem>>, vector<1x256x128xf32>
    %65 = vector.shape_cast %64 : vector<1x256x128xf32> to vector<256x128xf32>
    %66 = vector.shape_cast %63 : vector<256x128xf32> to vector<1x256x128xf32>
    tpu.vector_store %arg3[%c0_63, %c0_64, %c0_65], %66 {strides = array<i32>} : memref<1x256x128xf32, #tpu.memory_space<vmem>>, vector<1x256x128xf32>,
    %cst_66 = arith.constant dense<0.000000e+00> : vector<128xf32>
    %67 = vector.multi_reduction <add>, %63, %cst_66 [0] : vector<256x128xf32> to vector<128xf32>
    %68 = vector.shape_cast %67 : vector<128xf32> to vector<1x128xf32>
    %cst_67 = arith.constant 3.906250e-03 : f32
    %69 = vector.broadcast %cst_67 : f32 to vector<1x128xf32>
    %70 = arith.mulf %68, %69 : vector<1x128xf32>
    %71 = vector.broadcast %70 : vector<1x128xf32> to vector<256x128xf32>
    %72 = arith.subf %63, %71 : vector<256x128xf32>
    %73 = arith.mulf %72, %72 : vector<256x128xf32>
    %cst_68 = arith.constant dense<0.000000e+00> : vector<128xf32>
    %74 = vector.multi_reduction <add>, %73, %cst_68 [0] : vector<256x128xf32> to vector<128xf32>
    %75 = vector.shape_cast %74 : vector<128xf32> to vector<1x128xf32>
    %cst_69 = arith.constant 0.000000e+00 : f32
    %76 = vector.broadcast %cst_69 : f32 to vector<6x128xf32>
    %77 = tpu.concatenate %68, %75, %76 in 0 : vector<1x128xf32>, vector<1x128xf32>, vector<6x128xf32> -> vector<8x128xf32>
    %c0_70 = arith.constant 0 : index
    %c0_71 = arith.constant 0 : index
    %c0_72 = arith.constant 0 : index
    %78 = vector.load %arg4[%c0_70, %c0_71, %c0_72] : memref<1x8x128xf32, #tpu.memory_space<vmem>>, vector<1x8x128xf32>
    %79 = vector.shape_cast %78 : vector<1x8x128xf32> to vector<8x128xf32>
    %80 = vector.shape_cast %77 : vector<8x128xf32> to vector<1x8x128xf32>
    tpu.vector_store %arg4[%c0_70, %c0_71, %c0_72], %80 {strides = array<i32>} : memref<1x8x128xf32, #tpu.memory_space<vmem>>, vector<1x8x128xf32>,
    return
  }
  func.func @transform_0(%arg0: i32) -> (i32, i32, i32, i32) {
    %c0_i32 = arith.constant 0 : i32
    %c0_i32_0 = arith.constant 0 : i32
    %c0_i32_1 = arith.constant 0 : i32
    %c0_i32_2 = arith.constant 0 : i32
    return %arg0, %c0_i32, %c0_i32_0, %c0_i32_1 : i32, i32, i32, i32
  }
  func.func @transform_1(%arg0: i32) -> (i32, i32, i32) {
    %c0_i32 = arith.constant 0 : i32
    %c0_i32_0 = arith.constant 0 : i32
    %c0_i32_1 = arith.constant 0 : i32
    %c0_i32_2 = arith.constant 0 : i32
    return %c0_i32, %c0_i32_0, %c0_i32_1 : i32, i32, i32
  }
  func.func @transform_2(%arg0: i32) -> (i32, i32, i32) {
    %c0_i32 = arith.constant 0 : i32
    %c0_i32_0 = arith.constant 0 : i32
    %c0_i32_1 = arith.constant 0 : i32
    return %arg0, %c0_i32, %c0_i32_0 : i32, i32, i32
  }
  func.func @transform_3(%arg0: i32) -> (i32, i32, i32) {
    %c0_i32 = arith.constant 0 : i32
    %c0_i32_0 = arith.constant 0 : i32
    %c0_i32_1 = arith.constant 0 : i32
    return %arg0, %c0_i32, %c0_i32_0 : i32, i32, i32
  }
}

module attributes {stable_mosaic.version = 11 : i64} {
  func.func @bn_silu_kernel(%arg0: i32, %arg1: memref<1x256x128xf32, #tpu.memory_space<vmem>>, %arg2: memref<1x128xf32, #tpu.memory_space<vmem>>, %arg3: memref<1x128xf32, #tpu.memory_space<vmem>>, %arg4: memref<1x256x128xf32, #tpu.memory_space<vmem>>) attributes {dimension_semantics = [#tpu.dimension_semantics<parallel>], iteration_bounds = array<i64: 2>, scalar_prefetch = 0 : i64, scratch_operands = 0 : i64, tpu.core_type = #tpu.core_type<tc>, window_params = [{transform_indices = @transform_0, window_bounds = array<i64: 1, 256, 128>}, {pipeline_mode = #tpu.pipeline_mode<synchronous>, transform_indices = @transform_1, window_bounds = array<i64: 1, 128>}, {pipeline_mode = #tpu.pipeline_mode<synchronous>, transform_indices = @transform_2, window_bounds = array<i64: 1, 128>}, {transform_indices = @transform_3, window_bounds = array<i64: 1, 256, 128>}]} {
    %c0 = arith.constant 0 : index
    %c0_0 = arith.constant 0 : index
    %c0_1 = arith.constant 0 : index
    %0 = vector.load %arg1[%c0, %c0_0, %c0_1] : memref<1x256x128xf32, #tpu.memory_space<vmem>>, vector<1x256x128xf32>
    %1 = vector.shape_cast %0 : vector<1x256x128xf32> to vector<256x128xf32>
    %c0_2 = arith.constant 0 : index
    %c0_3 = arith.constant 0 : index
    %2 = vector.load %arg2[%c0_2, %c0_3] : memref<1x128xf32, #tpu.memory_space<vmem>>, vector<1x128xf32>
    %3 = vector.broadcast %2 : vector<1x128xf32> to vector<256x128xf32>
    %4 = arith.mulf %1, %3 : vector<256x128xf32>
    %c0_4 = arith.constant 0 : index
    %c0_5 = arith.constant 0 : index
    %5 = vector.load %arg3[%c0_4, %c0_5] : memref<1x128xf32, #tpu.memory_space<vmem>>, vector<1x128xf32>
    %6 = vector.broadcast %5 : vector<1x128xf32> to vector<256x128xf32>
    %7 = arith.addf %4, %6 : vector<256x128xf32>
    %cst = arith.constant 0.000000e+00 : f32
    %8 = vector.broadcast %cst : f32 to vector<256x128xf32>
    %9 = arith.subf %8, %7 : vector<256x128xf32>
    %10 = math.exp %9 : vector<256x128xf32>
    %cst_6 = arith.constant 1.000000e+00 : f32
    %11 = vector.broadcast %cst_6 : f32 to vector<256x128xf32>
    %12 = arith.addf %11, %10 : vector<256x128xf32>
    %13 = tpu.reciprocal %12 {approx = true} : vector<256x128xf32> -> vector<256x128xf32>
    %14 = arith.mulf %7, %13 : vector<256x128xf32>
    %c0_7 = arith.constant 0 : index
    %c0_8 = arith.constant 0 : index
    %c0_9 = arith.constant 0 : index
    %15 = vector.load %arg4[%c0_7, %c0_8, %c0_9] : memref<1x256x128xf32, #tpu.memory_space<vmem>>, vector<1x256x128xf32>
    %16 = vector.shape_cast %15 : vector<1x256x128xf32> to vector<256x128xf32>
    %17 = vector.shape_cast %14 : vector<256x128xf32> to vector<1x256x128xf32>
    tpu.vector_store %arg4[%c0_7, %c0_8, %c0_9], %17 {strides = array<i32>} : memref<1x256x128xf32, #tpu.memory_space<vmem>>, vector<1x256x128xf32>,
    return
  }
  func.func @transform_0(%arg0: i32) -> (i32, i32, i32) {
    %c0_i32 = arith.constant 0 : i32
    %c0_i32_0 = arith.constant 0 : i32
    %c0_i32_1 = arith.constant 0 : i32
    return %arg0, %c0_i32, %c0_i32_0 : i32, i32, i32
  }
  func.func @transform_1(%arg0: i32) -> (i32, i32) {
    %c0_i32 = arith.constant 0 : i32
    %c0_i32_0 = arith.constant 0 : i32
    %c0_i32_1 = arith.constant 0 : i32
    return %c0_i32, %c0_i32_0 : i32, i32
  }
  func.func @transform_2(%arg0: i32) -> (i32, i32) {
    %c0_i32 = arith.constant 0 : i32
    %c0_i32_0 = arith.constant 0 : i32
    %c0_i32_1 = arith.constant 0 : i32
    return %c0_i32, %c0_i32_0 : i32, i32
  }
  func.func @transform_3(%arg0: i32) -> (i32, i32, i32) {
    %c0_i32 = arith.constant 0 : i32
    %c0_i32_0 = arith.constant 0 : i32
    %c0_i32_1 = arith.constant 0 : i32
    return %arg0, %c0_i32, %c0_i32_0 : i32, i32, i32
  }
}

</mosaic_0001>

<llo_original>
// kernel: conv_block_forward.2
$region0: #{conv_block_forward.2}
  #allocation0 [shape = 'u32[]', space=smem, size = 0x4, offset = 0x4, fixed_abs, tag = 'smem constant byte address 0x4 - core index']
  #allocation1 [shape = 'u32[144,128]{1,0:T(1,128)}', space=vmem, size = 0x12000, scoped, tag = 'internal scratch']
  %s0 = inlined_call_operand.vmem [shape: f32[2,18,18,8], index: 0, kind: input, shape index: {}]
  %s1 = inlined_call_operand.vmem [shape: f32[9,8,128], index: 1, kind: input, shape index: {}]
  %s2 = inlined_call_operand.vmem [shape: f32[2,256,128], index: 2, kind: output, shape index: {0}]
  %s3 = inlined_call_operand.vmem [shape: f32[2,8,128], index: 3, kind: output, shape index: {1}]
  %4 = xla_tuple %s2, %s3
  %s5 = sld [smem:[#allocation0]]
  $region49: #{conv_block_forward.2} parent=0
    _
  %s7 = ssub.s32 1, %s5
  %s8 = scalar_select 0, %s7, %s5
  loop: start=0, step=1, limit=4
  $region2: #{conv_block_forward.2} parent=0 // loop_pre_header
    _
  $region3: #{conv_block_forward.2} parent=0 // loop_header
    %s10 = sphi 0, %s14
    %p11 = scmp.ge.s32.totalorder %s10, 4
    %s20 = sphi 0, %s22
    %s23 = sphi 0, %s20
    %s24 = sphi 0, %s23
    %s40 = sphi 0, %s24
    %s44 = sphi 0, %s44
    %s46 = sphi 0, %s44
    %s47 = sphi 0, %s46
    %s61 = sphi 0, %s47
    %s67 = sphi 0, %s69
    %s70 = sphi 0, %s67
    %s71 = sphi 0, %s70
    %s87 = sphi 0, %s71
    %s93 = sphi 0, %s95
    %s96 = sphi 0, %s93
    %s97 = sphi 0, %s96
    %s113 = sphi 0, %s97
  $region4: #{conv_block_forward.2} parent=0 // loop_header_branch
    %13 = sbr.rel (%p11) target = $region8
  $region5: #{conv_block_forward.2} parent=0 // loop_body
    %s15 = ssub.s32 %s10, 1
    %s16 = ssub.s32 %s10, 2
    %s17 = sadd.s32 %s10, 1
    %s18 = ssub.s32 %s10, %s17
    %p19 = scmp.eq.s32.totalorder %s18, 0
    %s21 = sadd.s32 %s20, 1
    %s22 = scalar_select %p19, %s20, %s21
    %p25 = pneg %p19
    %p26 = scmp.eq.s32.totalorder %s10, 1
    %p27 = por %p25, %p26
    %p28 = scmp.ne.s32.totalorder %s20, %s23
    %p29 = scmp.eq.s32.totalorder %s10, 0
    %p30 = por %p28, %p29
    %p31 = scmp.ne.s32.totalorder %s20, %s23
    %p32 = scmp.eq.s32.totalorder %s15, 1
    %p33 = por %p31, %p32
    %p34 = scmp.ne.s32.totalorder %s23, %s24
    %p35 = scmp.eq.s32.totalorder %s15, 0
    %p36 = por %p34, %p35
    %p37 = scmp.ne.s32.totalorder %s23, %s24
    %p38 = scmp.eq.s32.totalorder %s16, 1
    %p39 = por %p37, %p38
    %p41 = scmp.ne.s32.totalorder %s24, %s40
    %p42 = scmp.eq.s32.totalorder %s16, 0
    %p43 = por %p41, %p42
    %s45 = sadd.s32 %s44, 1
    %p48 = scmp.eq.s32.totalorder %s10, 1
    %p49 = scmp.ne.s32.totalorder %s44, %s46
    %p50 = scmp.eq.s32.totalorder %s10, 0
    %p51 = por %p49, %p50
    %p52 = scmp.ne.s32.totalorder %s44, %s46
    %p53 = scmp.eq.s32.totalorder %s15, 1
    %p54 = por %p52, %p53
    %p55 = scmp.ne.s32.totalorder %s46, %s47
    %p56 = scmp.eq.s32.totalorder %s15, 0
    %p57 = por %p55, %p56
    %p58 = scmp.ne.s32.totalorder %s46, %s47
    %p59 = scmp.eq.s32.totalorder %s16, 1
    %p60 = por %p58, %p59
    %p62 = scmp.ne.s32.totalorder %s47, %s61
    %p63 = scmp.eq.s32.totalorder %s16, 0
    %p64 = por %p62, %p63
    %s65 = ssub.s32 %s10, %s17
    %p66 = scmp.eq.s32.totalorder %s65, 0
    %s68 = sadd.s32 %s67, 1
    %s69 = scalar_select %p66, %s67, %s68
    %p72 = pneg %p66
    %p73 = scmp.eq.s32.totalorder %s10, 1
    %p74 = por %p72, %p73
    %p75 = scmp.ne.s32.totalorder %s67, %s70
    %p76 = scmp.eq.s32.totalorder %s10, 0
    %p77 = por %p75, %p76
    %p78 = scmp.ne.s32.totalorder %s67, %s70
    %p79 = scmp.eq.s32.totalorder %s15, 1
    %p80 = por %p78, %p79
    %p81 = scmp.ne.s32.totalorder %s70, %s71
    %p82 = scmp.eq.s32.totalorder %s15, 0
    %p83 = por %p81, %p82
    %p84 = scmp.ne.s32.totalorder %s70, %s71
    %p85 = scmp.eq.s32.totalorder %s16, 1
    %p86 = por %p84, %p85
    %p88 = scmp.ne.s32.totalorder %s71, %s87
    %p89 = scmp.eq.s32.totalorder %s16, 0
    %p90 = por %p88, %p89
    %s91 = ssub.s32 %s10, %s17
    %p92 = scmp.eq.s32.totalorder %s91, 0
    %s94 = sadd.s32 %s93, 1
    %s95 = scalar_select %p92, %s93, %s94
    %p98 = pneg %p92
    %p99 = scmp.eq.s32.totalorder %s10, 1
    %p100 = por %p98, %p99
    %p101 = scmp.ne.s32.totalorder %s93, %s96
    %p102 = scmp.eq.s32.totalorder %s10, 0
    %p103 = por %p101, %p102
    %p104 = scmp.ne.s32.totalorder %s93, %s96
    %p105 = scmp.eq.s32.totalorder %s15, 1
    %p106 = por %p104, %p105
    %p107 = scmp.ne.s32.totalorder %s96, %s97
    %p108 = scmp.eq.s32.totalorder %s15, 0
    %p109 = por %p107, %p108
    %p110 = scmp.ne.s32.totalorder %s96, %s97
    %p111 = scmp.eq.s32.totalorder %s16, 1
    %p112 = por %p110, %p111
    %p114 = scmp.ne.s32.totalorder %s97, %s113
    %p115 = scmp.eq.s32.totalorder %s16, 0
    %p116 = por %p114, %p115
    %p117 = scmp.le.s32.totalorder 1, %s10
    %p118 = scmp.lt.s32.totalorder %s10, 3
    %p119 = pnand %p117, %p118
    %p120 = pneg %p119
    // Predicated region
    $region9: #{conv_block_forward.2} parent=5 // pred_check
      _
    $region10: #{conv_block_forward.2} parent=5 // pred_check_branch
      %122 = sbr.rel (%p119) target = $region12
    $region11: #{conv_block_forward.2} parent=5 // pred_region
      %s123 = ssub.s32 %s10, 1
      // Predicated region
      $region13: #{conv_block_forward.2} parent=11 // pred_check
        %p124 = pneg %p57
      $region14: #{conv_block_forward.2} parent=11 // pred_check_branch
        %126 = sbr.rel (%p124) target = $region16
      $region15: #{conv_block_forward.2} parent=11 // pred_region
        _
      $region16: #{conv_block_forward.2} parent=11 // pred_fallthru
        _
    $region12: #{conv_block_forward.2} parent=5 // pred_fallthru
      _
    %p127 = scmp.lt.s32.totalorder %s10, 2
    // Predicated region
    $region17: #{conv_block_forward.2} parent=5 // pred_check
      %p128 = pneg %p127
    $region18: #{conv_block_forward.2} parent=5 // pred_check_branch
      %130 = sbr.rel (%p128) target = $region20
    $region19: #{conv_block_forward.2} parent=5 // pred_region
      // Predicated region
      $region21: #{conv_block_forward.2} parent=19 // pred_check
        %p131 = pneg %p30
      $region22: #{conv_block_forward.2} parent=19 // pred_check_branch
        %133 = sbr.rel (%p131) target = $region24
      $region23: #{conv_block_forward.2} parent=19 // pred_region
        %p134 = scmp.lt.s32.totalorder %s10, 1
        %s135 = scalar_select %p134, %s10, 1
        %s136 = smul.addr %s135, 54
        %s137 = smul.addr %s136, 8
        %s138 = scalar_lea.vmem %s0, %s137
      $region24: #{conv_block_forward.2} parent=19 // pred_fallthru
        _
    $region20: #{conv_block_forward.2} parent=5 // pred_fallthru
      _
    %p139 = scmp.le.s32.totalorder 1, %s10
    %p140 = scmp.lt.s32.totalorder %s10, 3
    %p141 = pnand %p139, %p140
    %p142 = pneg %p141
    // Predicated region
    $region25: #{conv_block_forward.2} parent=5 // pred_check
      _
    $region26: #{conv_block_forward.2} parent=5 // pred_check_branch
      %144 = sbr.rel (%p141) target = $region28
    $region27: #{conv_block_forward.2} parent=5 // pred_region
      %s145 = ssub.s32 %s10, 1
      %p146 = scmp.lt.s32.totalorder %s15, 1
      %s147 = scalar_select %p146, %s15, 1
      %s148 = smul.addr %s147, 54
      %s149 = smul.addr %s148, 8
      %s150 = scalar_lea.vmem %s0, %s149
      %p151 = pneg %p36
      %p152 = pneg %p33
      %p153 = pneg %p57
      %p154 = pneg %p54
      %p155 = pneg %p83
      %p156 = pneg %p80
      %p157 = scmp.lt.s32.totalorder %s15, 1
      %s158 = scalar_select %p157, %s15, 1
      %s159 = smul.addr %s158, 32
      %s160 = smul.addr %s159, 8
      %s161 = scalar_lea.vmem %s2, %s160
      %p162 = pneg %p109
      %p163 = pneg %p106
      %p164 = scmp.lt.s32.totalorder %s15, 1
      %s165 = scalar_select %p164, %s15, 1
      %s166 = smul.addr %s165, 8
      %s167 = scalar_lea.vmem %s3, %s166
      %p168 = scmp.lt.s32.totalorder %s15, 1
      %s169 = scalar_select %p168, %s15, 1
      %s170 = smul.addr %s169, 54
      %s171 = smul.addr %s170, 8
      %s172 = scalar_lea.vmem %s0, %s171
      %p173 = scmp.lt.s32.totalorder %s15, 1
      %s174 = scalar_select %p173, %s15, 1
      %s175 = smul.addr %s174, 32
      %s176 = smul.addr %s175, 8
      %s177 = scalar_lea.vmem %s2, %s176
      %p178 = scmp.lt.s32.totalorder %s15, 1
      %s179 = scalar_select %p178, %s15, 1
      %s180 = smul.addr %s179, 8
      %s181 = scalar_lea.vmem %s3, %s180
      %v182 = vld [vmem:[%s172] sm:$0xff]
      %v183 = vld [vmem:[%s172 + $0x8] sm:$0xff]
      %v184 = vld [vmem:[%s172 + $0x18] sm:$0xff]
      %v185 = vld [vmem:[%s172 + $0x20] sm:$0xff]
      %v186 = vld [vmem:[%s172 + $0x30] sm:$0xff]
      %v187 = vld [vmem:[%s172 + $0x38] sm:$0xff]
      %v188 = vld [vmem:[%s172 + $0x48] sm:$0xff]
      %v189 = vld [vmem:[%s172 + $0x50] sm:$0xff]
      %v190 = vld [vmem:[%s172 + $0x60] sm:$0xff]
      %v191 = vld [vmem:[%s172 + $0x68] sm:$0xff]
      %v192 = vld [vmem:[%s172 + $0x78] sm:$0xff]
      %v193 = vld [vmem:[%s172 + $0x80] sm:$0xff]
      %v194 = vld [vmem:[%s172 + $0x90] sm:$0xff]
      %v195 = vld [vmem:[%s172 + $0x98] sm:$0xff]
      %v196 = vld [vmem:[%s172 + $0xa8] sm:$0xff]
      %v197 = vld [vmem:[%s172 + $0xb0] sm:$0xff]
      %v198 = vld [vmem:[%s172 + $0xc0] sm:$0xff]
      %v199 = vld [vmem:[%s172 + $0xc8] sm:$0xff]
      %v200 = vld [vmem:[%s172 + $0xd8] sm:$0xff]
      %v201 = vld [vmem:[%s172 + $0xe0] sm:$0xff]
      %v202 = vld [vmem:[%s172 + $0xf0] sm:$0xff]
      %v203 = vld [vmem:[%s172 + $0xf8] sm:$0xff]
      %v204 = vld [vmem:[%s172 + $0x108] sm:$0xff]
      %v205 = vld [vmem:[%s172 + $0x110] sm:$0xff]
      %v206 = vld [vmem:[%s172 + $0x120] sm:$0xff]
      %v207 = vld [vmem:[%s172 + $0x128] sm:$0xff]
      %v208 = vld [vmem:[%s172 + $0x138] sm:$0xff]
      %v209 = vld [vmem:[%s172 + $0x140] sm:$0xff]
      %v210 = vld [vmem:[%s172 + $0x150] sm:$0xff]
      %v211 = vld [vmem:[%s172 + $0x158] sm:$0xff]
      %v212 = vld [vmem:[%s172 + $0x168] sm:$0xff]
      %v213 = vld [vmem:[%s172 + $0x170] sm:$0xff]
      %v214 = vld [vmem:[%s1] sm:$0xff]
      %v215 = vld [vmem:[%s172 + $0x1] sm:$0xff]
      %v216 = vld [vmem:[%s172 + $0x9] sm:$0xff]
      %v217 = vld [vmem:[%s172 + $0x19] sm:$0xff]
      %v218 = vld [vmem:[%s172 + $0x21] sm:$0xff]
      %v219 = vld [vmem:[%s172 + $0x31] sm:$0xff]
      %v220 = vld [vmem:[%s172 + $0x39] sm:$0xff]
      %v221 = vld [vmem:[%s172 + $0x49] sm:$0xff]
      %v222 = vld [vmem:[%s172 + $0x51] sm:$0xff]
      %v223 = vld [vmem:[%s172 + $0x61] sm:$0xff]
      %v224 = vld [vmem:[%s172 + $0x69] sm:$0xff]
      %v225 = vld [vmem:[%s172 + $0x79] sm:$0xff]
      %v226 = vld [vmem:[%s172 + $0x81] sm:$0xff]
      %v227 = vld [vmem:[%s172 + $0x91] sm:$0xff]
      %v228 = vld [vmem:[%s172 + $0x99] sm:$0xff]
      %v229 = vld [vmem:[%s172 + $0xa9] sm:$0xff]
      %v230 = vld [vmem:[%s172 + $0xb1] sm:$0xff]
      %v231 = vld [vmem:[%s172 + $0xc1] sm:$0xff]
      %v232 = vld [vmem:[%s172 + $0xc9] sm:$0xff]
      %v233 = vld [vmem:[%s172 + $0xd9] sm:$0xff]
      %v234 = vld [vmem:[%s172 + $0xe1] sm:$0xff]
      %v235 = vld [vmem:[%s172 + $0xf1] sm:$0xff]
      %v236 = vld [vmem:[%s172 + $0xf9] sm:$0xff]
      %v237 = vld [vmem:[%s172 + $0x109] sm:$0xff]
      %v238 = vld [vmem:[%s172 + $0x111] sm:$0xff]
      %v239 = vld [vmem:[%s172 + $0x121] sm:$0xff]
      %v240 = vld [vmem:[%s172 + $0x129] sm:$0xff]
      %v241 = vld [vmem:[%s172 + $0x139] sm:$0xff]
      %v242 = vld [vmem:[%s172 + $0x141] sm:$0xff]
      %v243 = vld [vmem:[%s172 + $0x151] sm:$0xff]
      %v244 = vld [vmem:[%s172 + $0x159] sm:$0xff]
      %v245 = vld [vmem:[%s172 + $0x169] sm:$0xff]
      %v246 = vld [vmem:[%s172 + $0x171] sm:$0xff]
      %s247 = scalar_lea.vmem %s1, 8
      %v248 = vld [vmem:[%s247] sm:$0xff]
      %vm249 = vcmask 64512
      %v251 = vsel %vm249, %v215, 0
      %v254 = vsel %vm249, %v216, 0
      %v257 = vsel %vm249, %v217, 0
      %v260 = vsel %vm249, %v218, 0
      %v263 = vsel %vm249, %v219, 0
      %v266 = vsel %vm249, %v220, 0
      %v269 = vsel %vm249, %v221, 0
      %v272 = vsel %vm249, %v222, 0
      %v275 = vsel %vm249, %v223, 0
      %v278 = vsel %vm249, %v224, 0
      %v281 = vsel %vm249, %v225, 0
      %v284 = vsel %vm249, %v226, 0
      %v287 = vsel %vm249, %v227, 0
      %v290 = vsel %vm249, %v228, 0
      %v293 = vsel %vm249, %v229, 0
      %v296 = vsel %vm249, %v230, 0
      %v299 = vsel %vm249, %v231, 0
      %v302 = vsel %vm249, %v232, 0
      %v305 = vsel %vm249, %v233, 0
      %v308 = vsel %vm249, %v234, 0
      %v311 = vsel %vm249, %v235, 0
      %v314 = vsel %vm249, %v236, 0
      %v317 = vsel %vm249, %v237, 0
      %v320 = vsel %vm249, %v238, 0
      %v323 = vsel %vm249, %v239, 0
      %v326 = vsel %vm249, %v240, 0
      %v329 = vsel %vm249, %v241, 0
      %v332 = vsel %vm249, %v242, 0
      %v335 = vsel %vm249, %v243, 0
      %v338 = vsel %vm249, %v244, 0
      %v341 = vsel %vm249, %v245, 0
      %v344 = vsel %vm249, %v246, 0
      %346 = vmatprep.subr.mxu0 0.0
      %347 = vmatpush1.msra.mxu0 0.0
      %348 = vmatprep.subr.mxu0 0.0
      %349 = vmatpush1.msra.mxu0 0.0
      %350 = vmatprep.subr.mxu0 0.0
      %351 = vmatpush1.msra.mxu0 0.0
      %352 = vmatprep.subr.mxu0 0.0
      %353 = vmatpush1.msra.mxu0 0.0
      %354 = vmatprep.subr.mxu0 0.0
      %355 = vmatpush1.msra.mxu0 0.0
      %356 = vmatprep.subr.mxu0 0.0
      %357 = vmatpush1.msra.mxu0 0.0
      %358 = vmatprep.subr.mxu0 0.0
      %359 = vmatpush1.msra.mxu0 0.0
      %360 = vmatprep.subr.mxu0 0.0
      %361 = vmatpush1.msra.mxu0 0.0
      %362 = vmatprep.subr.mxu0 0.0
      %363 = vmatpush1.msra.mxu0 0.0
      %364 = vmatprep.subr.mxu0 0.0
      %365 = vmatpush1.msra.mxu0 0.0
      %366 = vmatprep.subr.mxu0 0.0
      %367 = vmatpush1.msra.mxu0 0.0
      %368 = vmatprep.subr.mxu0 0.0
      %369 = vmatpush1.msra.mxu0 0.0
      %370 = vmatprep.subr.mxu0 0.0
      %371 = vmatpush1.msra.mxu0 0.0
      %372 = vmatprep.subr.mxu0 0.0
      %373 = vmatpush1.msra.mxu0 0.0
      %374 = vmatprep.subr.mxu0 0.0
      %375 = vmatpush1.msra.mxu0 0.0
      %376 = vmatprep.subr.mxu0 0.0
      %377 = vmatpush1.msra.mxu0 %v248
      %378 = vmatprep.subr.mxu0 0.0
      %379 = vmatpush2.msra.mxu0 0.0
      %380 = vmatprep.subr.mxu0 0.0
      %381 = vmatpush2.msra.mxu0 0.0
      %382 = vmatprep.subr.mxu0 0.0
      %383 = vmatpush2.msra.mxu0 0.0
      %384 = vmatprep.subr.mxu0 0.0
      %385 = vmatpush2.msra.mxu0 0.0
      %386 = vmatprep.subr.mxu0 0.0
      %387 = vmatpush2.msra.mxu0 0.0
      %388 = vmatprep.subr.mxu0 0.0
      %389 = vmatpush2.msra.mxu0 0.0
      %390 = vmatprep.subr.mxu0 0.0
      %391 = vmatpush2.msra.mxu0 0.0
      %392 = vmatprep.subr.mxu0 0.0
      %393 = vmatpush2.msra.mxu0 0.0
      %394 = vmatprep.subr.mxu0 0.0
      %395 = vmatpush2.msra.mxu0 0.0
      %396 = vmatprep.subr.mxu0 0.0
      %397 = vmatpush2.msra.mxu0 0.0
      %398 = vmatprep.subr.mxu0 0.0
      %399 = vmatpush2.msra.mxu0 0.0
      %400 = vmatprep.subr.mxu0 0.0
      %401 = vmatpush2.msra.mxu0 0.0
      %402 = vmatprep.subr.mxu0 0.0
      %403 = vmatpush2.msra.mxu0 0.0
      %404 = vmatprep.subr.mxu0 0.0
      %405 = vmatpush2.msra.mxu0 0.0
      %406 = vmatprep.subr.mxu0 0.0
      %407 = vmatpush2.msra.mxu0 0.0
      %408 = vmatprep.subr.mxu0 0.0
      %409 = vmatpush2.msra.mxu0 0.0
      %410 = vmatprep.mubr.f32.mxu0 0.0
      %411 = vmatmul.mubr.f32.gmra.mxu0 %v251
      %v412 = vpop.f32.mrf.mxu0
      %v413 = vadd.f32 0.0, %v412
      %v414 = vpop.f32.mrf.mxu0
      %415 = vmatprep.mubr.f32.mxu0 0.0
      %416 = vmatmul.mubr.f32.gmra.mxu0 %v254
      %v417 = vpop.f32.mrf.mxu0
      %v418 = vadd.f32 0.0, %v417
      %v419 = vpop.f32.mrf.mxu0
      %420 = vmatprep.mubr.f32.mxu0 0.0
      %421 = vmatmul.mubr.f32.gmra.mxu0 %v257
      %v422 = vpop.f32.mrf.mxu0
      %v423 = vadd.f32 0.0, %v422
      %v424 = vpop.f32.mrf.mxu0
      %425 = vmatprep.mubr.f32.mxu0 0.0
      %426 = vmatmul.mubr.f32.gmra.mxu0 %v260
      %v427 = vpop.f32.mrf.mxu0
      %v428 = vadd.f32 0.0, %v427
      %v429 = vpop.f32.mrf.mxu0
      %430 = vmatprep.mubr.f32.mxu0 0.0
      %431 = vmatmul.mubr.f32.gmra.mxu0 %v263
      %v432 = vpop.f32.mrf.mxu0
      %v433 = vadd.f32 0.0, %v432
      %v434 = vpop.f32.mrf.mxu0
      %435 = vmatprep.mubr.f32.mxu0 0.0
      %436 = vmatmul.mubr.f32.gmra.mxu0 %v266
      %v437 = vpop.f32.mrf.mxu0
      %v438 = vadd.f32 0.0, %v437
      %v439 = vpop.f32.mrf.mxu0
      %440 = vmatprep.mubr.f32.mxu0 0.0
      %441 = vmatmul.mubr.f32.gmra.mxu0 %v269
      %v442 = vpop.f32.mrf.mxu0
      %v443 = vadd.f32 0.0, %v442
      %v444 = vpop.f32.mrf.mxu0
      %445 = vmatprep.mubr.f32.mxu0 0.0
      %446 = vmatmul.mubr.f32.gmra.mxu0 %v272
      %v447 = vpop.f32.mrf.mxu0
      %v448 = vadd.f32 0.0, %v447
      %v449 = vpop.f32.mrf.mxu0
      %450 = vmatprep.mubr.f32.mxu0 0.0
      %451 = vmatmul.mubr.f32.gmra.mxu0 %v275
      %v452 = vpop.f32.mrf.mxu0
      %v453 = vadd.f32 0.0, %v452
      %v454 = vpop.f32.mrf.mxu0
      %455 = vmatprep.mubr.f32.mxu0 0.0
      %456 = vmatmul.mubr.f32.gmra.mxu0 %v278
      %v457 = vpop.f32.mrf.mxu0
      %v458 = vadd.f32 0.0, %v457
      %v459 = vpop.f32.mrf.mxu0
      %460 = vmatprep.mubr.f32.mxu0 0.0
      %461 = vmatmul.mubr.f32.gmra.mxu0 %v281
      %v462 = vpop.f32.mrf.mxu0
      %v463 = vadd.f32 0.0, %v462
      %v464 = vpop.f32.mrf.mxu0
      %465 = vmatprep.mubr.f32.mxu0 0.0
      %466 = vmatmul.mubr.f32.gmra.mxu0 %v284
      %v467 = vpop.f32.mrf.mxu0
      %v468 = vadd.f32 0.0, %v467
      %v469 = vpop.f32.mrf.mxu0
      %470 = vmatprep.mubr.f32.mxu0 0.0
      %471 = vmatmul.mubr.f32.gmra.mxu0 %v287
      %v472 = vpop.f32.mrf.mxu0
      %v473 = vadd.f32 0.0, %v472
      %v474 = vpop.f32.mrf.mxu0
      %475 = vmatprep.mubr.f32.mxu0 0.0
      %476 = vmatmul.mubr.f32.gmra.mxu0 %v290
      %v477 = vpop.f32.mrf.mxu0
      %v478 = vadd.f32 0.0, %v477
      %v479 = vpop.f32.mrf.mxu0
      %480 = vmatprep.mubr.f32.mxu0 0.0
      %481 = vmatmul.mubr.f32.gmra.mxu0 %v293
      %v482 = vpop.f32.mrf.mxu0
      %v483 = vadd.f32 0.0, %v482
      %v484 = vpop.f32.mrf.mxu0
      %485 = vmatprep.mubr.f32.mxu0 0.0
      %486 = vmatmul.mubr.f32.gmra.mxu0 %v296
      %v487 = vpop.f32.mrf.mxu0
      %v488 = vadd.f32 0.0, %v487
      %v489 = vpop.f32.mrf.mxu0
      %490 = vmatprep.mubr.f32.mxu0 0.0
      %491 = vmatmul.mubr.f32.gmra.mxu0 %v299
      %v492 = vpop.f32.mrf.mxu0
      %v493 = vadd.f32 0.0, %v492
      %v494 = vpop.f32.mrf.mxu0
      %495 = vmatprep.mubr.f32.mxu0 0.0
      %496 = vmatmul.mubr.f32.gmra.mxu0 %v302
      %v497 = vpop.f32.mrf.mxu0
      %v498 = vadd.f32 0.0, %v497
      %v499 = vpop.f32.mrf.mxu0
      %500 = vmatprep.mubr.f32.mxu0 0.0
      %501 = vmatmul.mubr.f32.gmra.mxu0 %v305
      %v502 = vpop.f32.mrf.mxu0
      %v503 = vadd.f32 0.0, %v502
      %v504 = vpop.f32.mrf.mxu0
      %505 = vmatprep.mubr.f32.mxu0 0.0
      %506 = vmatmul.mubr.f32.gmra.mxu0 %v308
      %v507 = vpop.f32.mrf.mxu0
      %v508 = vadd.f32 0.0, %v507
      %v509 = vpop.f32.mrf.mxu0
      %510 = vmatprep.mubr.f32.mxu0 0.0
      %511 = vmatmul.mubr.f32.gmra.mxu0 %v311
      %v512 = vpop.f32.mrf.mxu0
      %v513 = vadd.f32 0.0, %v512
      %v514 = vpop.f32.mrf.mxu0
      %515 = vmatprep.mubr.f32.mxu0 0.0
      %516 = vmatmul.mubr.f32.gmra.mxu0 %v314
      %v517 = vpop.f32.mrf.mxu0
      %v518 = vadd.f32 0.0, %v517
      %v519 = vpop.f32.mrf.mxu0
      %520 = vmatprep.mubr.f32.mxu0 0.0
      %521 = vmatmul.mubr.f32.gmra.mxu0 %v317
      %v522 = vpop.f32.mrf.mxu0
      %v523 = vadd.f32 0.0, %v522
      %v524 = vpop.f32.mrf.mxu0
      %525 = vmatprep.mubr.f32.mxu0 0.0
      %526 = vmatmul.mubr.f32.gmra.mxu0 %v320
      %v527 = vpop.f32.mrf.mxu0
      %v528 = vadd.f32 0.0, %v527
      %v529 = vpop.f32.mrf.mxu0
      %530 = vmatprep.mubr.f32.mxu0 0.0
      %531 = vmatmul.mubr.f32.gmra.mxu0 %v323
      %v532 = vpop.f32.mrf.mxu0
      %v533 = vadd.f32 0.0, %v532
      %v534 = vpop.f32.mrf.mxu0
      %535 = vmatprep.mubr.f32.mxu0 0.0
      %536 = vmatmul.mubr.f32.gmra.mxu0 %v326
      %v537 = vpop.f32.mrf.mxu0
      %v538 = vadd.f32 0.0, %v537
      %v539 = vpop.f32.mrf.mxu0
      %540 = vmatprep.mubr.f32.mxu0 0.0
      %541 = vmatmul.mubr.f32.gmra.mxu0 %v329
      %v542 = vpop.f32.mrf.mxu0
      %v543 = vadd.f32 0.0, %v542
      %v544 = vpop.f32.mrf.mxu0
      %545 = vmatprep.mubr.f32.mxu0 0.0
      %546 = vmatmul.mubr.f32.gmra.mxu0 %v332
      %v547 = vpop.f32.mrf.mxu0
      %v548 = vadd.f32 0.0, %v547
      %v549 = vpop.f32.mrf.mxu0
      %550 = vmatprep.mubr.f32.mxu0 0.0
      %551 = vmatmul.mubr.f32.gmra.mxu0 %v335
      %v552 = vpop.f32.mrf.mxu0
      %v553 = vadd.f32 0.0, %v552
      %v554 = vpop.f32.mrf.mxu0
      %555 = vmatprep.mubr.f32.mxu0 0.0
      %556 = vmatmul.mubr.f32.gmra.mxu0 %v338
      %v557 = vpop.f32.mrf.mxu0
      %v558 = vadd.f32 0.0, %v557
      %v559 = vpop.f32.mrf.mxu0
      %560 = vmatprep.mubr.f32.mxu0 0.0
      %561 = vmatmul.mubr.f32.gmra.mxu0 %v341
      %v562 = vpop.f32.mrf.mxu0
      %v563 = vadd.f32 0.0, %v562
      %v564 = vpop.f32.mrf.mxu0
      %565 = vmatprep.mubr.f32.mxu0 0.0
      %566 = vmatmul.mubr.f32.gmra.mxu0 %v344
      %v567 = vpop.f32.mrf.mxu0
      %v568 = vadd.f32 0.0, %v567
      %v569 = vpop.f32.mrf.mxu0
      %570 = vdwg.mxu0
      %v572 = vsel %vm249, %v182, 0
      %v575 = vsel %vm249, %v183, 0
      %v578 = vsel %vm249, %v184, 0
      %v581 = vsel %vm249, %v185, 0
      %v584 = vsel %vm249, %v186, 0
      %v587 = vsel %vm249, %v187, 0
      %v590 = vsel %vm249, %v188, 0
      %v593 = vsel %vm249, %v189, 0
      %v596 = vsel %vm249, %v190, 0
      %v599 = vsel %vm249, %v191, 0
      %v602 = vsel %vm249, %v192, 0
      %v605 = vsel %vm249, %v193, 0
      %v608 = vsel %vm249, %v194, 0
      %v611 = vsel %vm249, %v195, 0
      %v614 = vsel %vm249, %v196, 0
      %v617 = vsel %vm249, %v197, 0
      %v620 = vsel %vm249, %v198, 0
      %v623 = vsel %vm249, %v199, 0
      %v626 = vsel %vm249, %v200, 0
      %v629 = vsel %vm249, %v201, 0
      %v632 = vsel %vm249, %v202, 0
      %v635 = vsel %vm249, %v203, 0
      %v638 = vsel %vm249, %v204, 0
      %v641 = vsel %vm249, %v205, 0
      %v644 = vsel %vm249, %v206, 0
      %v647 = vsel %vm249, %v207, 0
      %v650 = vsel %vm249, %v208, 0
      %v653 = vsel %vm249, %v209, 0
      %v656 = vsel %vm249, %v210, 0
      %v659 = vsel %vm249, %v211, 0
      %v662 = vsel %vm249, %v212, 0
      %v665 = vsel %vm249, %v213, 0
      %667 = vmatprep.subr.mxu0 0.0
      %668 = vmatpush1.msra.mxu0 0.0
      %669 = vmatprep.subr.mxu0 0.0
      %670 = vmatpush1.msra.mxu0 0.0
      %671 = vmatprep.subr.mxu0 0.0
      %672 = vmatpush1.msra.mxu0 0.0
      %673 = vmatprep.subr.mxu0 0.0
      %674 = vmatpush1.msra.mxu0 0.0
      %675 = vmatprep.subr.mxu0 0.0
      %676 = vmatpush1.msra.mxu0 0.0
      %677 = vmatprep.subr.mxu0 0.0
      %678 = vmatpush1.msra.mxu0 0.0
      %679 = vmatprep.subr.mxu0 0.0
      %680 = vmatpush1.msra.mxu0 0.0
      %681 = vmatprep.subr.mxu0 0.0
      %682 = vmatpush1.msra.mxu0 0.0
      %683 = vmatprep.subr.mxu0 0.0
      %684 = vmatpush1.msra.mxu0 0.0
      %685 = vmatprep.subr.mxu0 0.0
      %686 = vmatpush1.msra.mxu0 0.0
      %687 = vmatprep.subr.mxu0 0.0
      %688 = vmatpush1.msra.mxu0 0.0
      %689 = vmatprep.subr.mxu0 0.0
      %690 = vmatpush1.msra.mxu0 0.0
      %691 = vmatprep.subr.mxu0 0.0
      %692 = vmatpush1.msra.mxu0 0.0
      %693 = vmatprep.subr.mxu0 0.0
      %694 = vmatpush1.msra.mxu0 0.0
      %695 = vmatprep.subr.mxu0 0.0
      %696 = vmatpush1.msra.mxu0 0.0
      %697 = vmatprep.subr.mxu0 0.0
      %698 = vmatpush1.msra.mxu0 %v214
      %699 = vmatprep.subr.mxu0 0.0
      %700 = vmatpush2.msra.mxu0 0.0
      %701 = vmatprep.subr.mxu0 0.0
      %702 = vmatpush2.msra.mxu0 0.0
      %703 = vmatprep.subr.mxu0 0.0
      %704 = vmatpush2.msra.mxu0 0.0
      %705 = vmatprep.subr.mxu0 0.0
      %706 = vmatpush2.msra.mxu0 0.0
      %707 = vmatprep.subr.mxu0 0.0
      %708 = vmatpush2.msra.mxu0 0.0
      %709 = vmatprep.subr.mxu0 0.0
      %710 = vmatpush2.msra.mxu0 0.0
      %711 = vmatprep.subr.mxu0 0.0
      %712 = vmatpush2.msra.mxu0 0.0
      %713 = vmatprep.subr.mxu0 0.0
      %714 = vmatpush2.msra.mxu0 0.0
      %715 = vmatprep.subr.mxu0 0.0
      %716 = vmatpush2.msra.mxu0 0.0
      %717 = vmatprep.subr.mxu0 0.0
      %718 = vmatpush2.msra.mxu0 0.0
      %719 = vmatprep.subr.mxu0 0.0
      %720 = vmatpush2.msra.mxu0 0.0
      %721 = vmatprep.subr.mxu0 0.0
      %722 = vmatpush2.msra.mxu0 0.0
      %723 = vmatprep.subr.mxu0 0.0
      %724 = vmatpush2.msra.mxu0 0.0
      %725 = vmatprep.subr.mxu0 0.0
      %726 = vmatpush2.msra.mxu0 0.0
      %727 = vmatprep.subr.mxu0 0.0
      %728 = vmatpush2.msra.mxu0 0.0
      %729 = vmatprep.subr.mxu0 0.0
      %730 = vmatpush2.msra.mxu0 0.0
      %731 = vmatprep.mubr.f32.mxu0 0.0
      %732 = vmatmul.mubr.f32.gmra.mxu0 %v572
      %v733 = vpop.f32.mrf.mxu0
      %v734 = vadd.f32 %v413, %v733
      %v735 = vpop.f32.mrf.mxu0
      %736 = vmatprep.mubr.f32.mxu0 0.0
      %737 = vmatmul.mubr.f32.gmra.mxu0 %v575
      %v738 = vpop.f32.mrf.mxu0
      %v739 = vadd.f32 %v418, %v738
      %v740 = vpop.f32.mrf.mxu0
      %741 = vmatprep.mubr.f32.mxu0 0.0
      %742 = vmatmul.mubr.f32.gmra.mxu0 %v578
      %v743 = vpop.f32.mrf.mxu0
      %v744 = vadd.f32 %v423, %v743
      %v745 = vpop.f32.mrf.mxu0
      %746 = vmatprep.mubr.f32.mxu0 0.0
      %747 = vmatmul.mubr.f32.gmra.mxu0 %v581
      %v748 = vpop.f32.mrf.mxu0
      %v749 = vadd.f32 %v428, %v748
      %v750 = vpop.f32.mrf.mxu0
      %751 = vmatprep.mubr.f32.mxu0 0.0
      %752 = vmatmul.mubr.f32.gmra.mxu0 %v584
      %v753 = vpop.f32.mrf.mxu0
      %v754 = vadd.f32 %v433, %v753
      %v755 = vpop.f32.mrf.mxu0
      %756 = vmatprep.mubr.f32.mxu0 0.0
      %757 = vmatmul.mubr.f32.gmra.mxu0 %v587
      %v758 = vpop.f32.mrf.mxu0
      %v759 = vadd.f32 %v438, %v758
      %v760 = vpop.f32.mrf.mxu0
      %761 = vmatprep.mubr.f32.mxu0 0.0
      %762 = vmatmul.mubr.f32.gmra.mxu0 %v590
      %v763 = vpop.f32.mrf.mxu0
      %v764 = vadd.f32 %v443, %v763
      %v765 = vpop.f32.mrf.mxu0
      %766 = vmatprep.mubr.f32.mxu0 0.0
      %767 = vmatmul.mubr.f32.gmra.mxu0 %v593
      %v768 = vpop.f32.mrf.mxu0
      %v769 = vadd.f32 %v448, %v768
      %v770 = vpop.f32.mrf.mxu0
      %771 = vmatprep.mubr.f32.mxu0 0.0
      %772 = vmatmul.mubr.f32.gmra.mxu0 %v596
      %v773 = vpop.f32.mrf.mxu0
      %v774 = vadd.f32 %v453, %v773
      %v775 = vpop.f32.mrf.mxu0
      %776 = vmatprep.mubr.f32.mxu0 0.0
      %777 = vmatmul.mubr.f32.gmra.mxu0 %v599
      %v778 = vpop.f32.mrf.mxu0
      %v779 = vadd.f32 %v458, %v778
      %v780 = vpop.f32.mrf.mxu0
      %781 = vmatprep.mubr.f32.mxu0 0.0
      %782 = vmatmul.mubr.f32.gmra.mxu0 %v602
      %v783 = vpop.f32.mrf.mxu0
      %v784 = vadd.f32 %v463, %v783
      %v785 = vpop.f32.mrf.mxu0
      %786 = vmatprep.mubr.f32.mxu0 0.0
      %787 = vmatmul.mubr.f32.gmra.mxu0 %v605
      %v788 = vpop.f32.mrf.mxu0
      %v789 = vadd.f32 %v468, %v788
      %v790 = vpop.f32.mrf.mxu0
      %791 = vmatprep.mubr.f32.mxu0 0.0
      %792 = vmatmul.mubr.f32.gmra.mxu0 %v608
      %v793 = vpop.f32.mrf.mxu0
      %v794 = vadd.f32 %v473, %v793
      %v795 = vpop.f32.mrf.mxu0
      %796 = vmatprep.mubr.f32.mxu0 0.0
      %797 = vmatmul.mubr.f32.gmra.mxu0 %v611
      %v798 = vpop.f32.mrf.mxu0
      %v799 = vadd.f32 %v478, %v798
      %v800 = vpop.f32.mrf.mxu0
      %801 = vmatprep.mubr.f32.mxu0 0.0
      %802 = vmatmul.mubr.f32.gmra.mxu0 %v614
      %v803 = vpop.f32.mrf.mxu0
      %v804 = vadd.f32 %v483, %v803
      %v805 = vpop.f32.mrf.mxu0
      %806 = vmatprep.mubr.f32.mxu0 0.0
      %807 = vmatmul.mubr.f32.gmra.mxu0 %v617
      %v808 = vpop.f32.mrf.mxu0
      %v809 = vadd.f32 %v488, %v808
      %v810 = vpop.f32.mrf.mxu0
      %811 = vmatprep.mubr.f32.mxu0 0.0
      %812 = vmatmul.mubr.f32.gmra.mxu0 %v620
      %v813 = vpop.f32.mrf.mxu0
      %v814 = vadd.f32 %v493, %v813
      %v815 = vpop.f32.mrf.mxu0
      %816 = vmatprep.mubr.f32.mxu0 0.0
      %817 = vmatmul.mubr.f32.gmra.mxu0 %v623
      %v818 = vpop.f32.mrf.mxu0
      %v819 = vadd.f32 %v498, %v818
      %v820 = vpop.f32.mrf.mxu0
      %821 = vmatprep.mubr.f32.mxu0 0.0
      %822 = vmatmul.mubr.f32.gmra.mxu0 %v626
      %v823 = vpop.f32.mrf.mxu0
      %v824 = vadd.f32 %v503, %v823
      %v825 = vpop.f32.mrf.mxu0
      %826 = vmatprep.mubr.f32.mxu0 0.0
      %827 = vmatmul.mubr.f32.gmra.mxu0 %v629
      %v828 = vpop.f32.mrf.mxu0
      %v829 = vadd.f32 %v508, %v828
      %v830 = vpop.f32.mrf.mxu0
      %831 = vmatprep.mubr.f32.mxu0 0.0
      %832 = vmatmul.mubr.f32.gmra.mxu0 %v632
      %v833 = vpop.f32.mrf.mxu0
      %v834 = vadd.f32 %v513, %v833
      %v835 = vpop.f32.mrf.mxu0
      %836 = vmatprep.mubr.f32.mxu0 0.0
      %837 = vmatmul.mubr.f32.gmra.mxu0 %v635
      %v838 = vpop.f32.mrf.mxu0
      %v839 = vadd.f32 %v518, %v838
      %v840 = vpop.f32.mrf.mxu0
      %841 = vmatprep.mubr.f32.mxu0 0.0
      %842 = vmatmul.mubr.f32.gmra.mxu0 %v638
      %v843 = vpop.f32.mrf.mxu0
      %v844 = vadd.f32 %v523, %v843
      %v845 = vpop.f32.mrf.mxu0
      %846 = vmatprep.mubr.f32.mxu0 0.0
      %847 = vmatmul.mubr.f32.gmra.mxu0 %v641
      %v848 = vpop.f32.mrf.mxu0
      %v849 = vadd.f32 %v528, %v848
      %v850 = vpop.f32.mrf.mxu0
      %851 = vmatprep.mubr.f32.mxu0 0.0
      %852 = vmatmul.mubr.f32.gmra.mxu0 %v644
      %v853 = vpop.f32.mrf.mxu0
      %v854 = vadd.f32 %v533, %v853
      %v855 = vpop.f32.mrf.mxu0
      %856 = vmatprep.mubr.f32.mxu0 0.0
      %857 = vmatmul.mubr.f32.gmra.mxu0 %v647
      %v858 = vpop.f32.mrf.mxu0
      %v859 = vadd.f32 %v538, %v858
      %v860 = vpop.f32.mrf.mxu0
      %861 = vmatprep.mubr.f32.mxu0 0.0
      %862 = vmatmul.mubr.f32.gmra.mxu0 %v650
      %v863 = vpop.f32.mrf.mxu0
      %v864 = vadd.f32 %v543, %v863
      %v865 = vpop.f32.mrf.mxu0
      %866 = vmatprep.mubr.f32.mxu0 0.0
      %867 = vmatmul.mubr.f32.gmra.mxu0 %v653
      %v868 = vpop.f32.mrf.mxu0
      %v869 = vadd.f32 %v548, %v868
      %v870 = vpop.f32.mrf.mxu0
      %871 = vmatprep.mubr.f32.mxu0 0.0
      %872 = vmatmul.mubr.f32.gmra.mxu0 %v656
      %v873 = vpop.f32.mrf.mxu0
      %v874 = vadd.f32 %v553, %v873
      %v875 = vpop.f32.mrf.mxu0
      %876 = vmatprep.mubr.f32.mxu0 0.0
      %877 = vmatmul.mubr.f32.gmra.mxu0 %v659
      %v878 = vpop.f32.mrf.mxu0
      %v879 = vadd.f32 %v558, %v878
      %v880 = vpop.f32.mrf.mxu0
      %881 = vmatprep.mubr.f32.mxu0 0.0
      %882 = vmatmul.mubr.f32.gmra.mxu0 %v662
      %v883 = vpop.f32.mrf.mxu0
      %v884 = vadd.f32 %v563, %v883
      %v885 = vpop.f32.mrf.mxu0
      %886 = vmatprep.mubr.f32.mxu0 0.0
      %887 = vmatmul.mubr.f32.gmra.mxu0 %v665
      %v888 = vpop.f32.mrf.mxu0
      %v889 = vadd.f32 %v568, %v888
      %v890 = vpop.f32.mrf.mxu0
      %891 = vdwg.mxu0
      %v892 = vld [vmem:[%s172 + $0x2] sm:$0xff]
      %v893 = vld [vmem:[%s172 + $0xa] sm:$0xff]
      %v894 = vld [vmem:[%s172 + $0x1a] sm:$0xff]
      %v895 = vld [vmem:[%s172 + $0x22] sm:$0xff]
      %v896 = vld [vmem:[%s172 + $0x32] sm:$0xff]
      %v897 = vld [vmem:[%s172 + $0x3a] sm:$0xff]
      %v898 = vld [vmem:[%s172 + $0x4a] sm:$0xff]
      %v899 = vld [vmem:[%s172 + $0x52] sm:$0xff]
      %v900 = vld [vmem:[%s172 + $0x62] sm:$0xff]
      %v901 = vld [vmem:[%s172 + $0x6a] sm:$0xff]
      %v902 = vld [vmem:[%s172 + $0x7a] sm:$0xff]
      %v903 = vld [vmem:[%s172 + $0x82] sm:$0xff]
      %v904 = vld [vmem:[%s172 + $0x92] sm:$0xff]
      %v905 = vld [vmem:[%s172 + $0x9a] sm:$0xff]
      %v906 = vld [vmem:[%s172 + $0xaa] sm:$0xff]
      %v907 = vld [vmem:[%s172 + $0xb2] sm:$0xff]
      %v908 = vld [vmem:[%s172 + $0xc2] sm:$0xff]
      %v909 = vld [vmem:[%s172 + $0xca] sm:$0xff]
      %v910 = vld [vmem:[%s172 + $0xda] sm:$0xff]
      %v911 = vld [vmem:[%s172 + $0xe2] sm:$0xff]
      %v912 = vld [vmem:[%s172 + $0xf2] sm:$0xff]
      %v913 = vld [vmem:[%s172 + $0xfa] sm:$0xff]
      %v914 = vld [vmem:[%s172 + $0x10a] sm:$0xff]
      %v915 = vld [vmem:[%s172 + $0x112] sm:$0xff]
      %v916 = vld [vmem:[%s172 + $0x122] sm:$0xff]
      %v917 = vld [vmem:[%s172 + $0x12a] sm:$0xff]
      %v918 = vld [vmem:[%s172 + $0x13a] sm:$0xff]
      %v919 = vld [vmem:[%s172 + $0x142] sm:$0xff]
      %v920 = vld [vmem:[%s172 + $0x152] sm:$0xff]
      %v921 = vld [vmem:[%s172 + $0x15a] sm:$0xff]
      %v922 = vld [vmem:[%s172 + $0x16a] sm:$0xff]
      %v923 = vld [vmem:[%s172 + $0x172] sm:$0xff]
      %s924 = scalar_lea.vmem %s1, 16
      %v925 = vld [vmem:[%s924] sm:$0xff]
      %v927 = vsel %vm249, %v892, 0
      %v930 = vsel %vm249, %v893, 0
      %v933 = vsel %vm249, %v894, 0
      %v936 = vsel %vm249, %v895, 0
      %v939 = vsel %vm249, %v896, 0
      %v942 = vsel %vm249, %v897, 0
      %v945 = vsel %vm249, %v898, 0
      %v948 = vsel %vm249, %v899, 0
      %v951 = vsel %vm249, %v900, 0
      %v954 = vsel %vm249, %v901, 0
      %v957 = vsel %vm249, %v902, 0
      %v960 = vsel %vm249, %v903, 0
      %v963 = vsel %vm249, %v904, 0
      %v966 = vsel %vm249, %v905, 0
      %v969 = vsel %vm249, %v906, 0
      %v972 = vsel %vm249, %v907, 0
      %v975 = vsel %vm249, %v908, 0
      %v978 = vsel %vm249, %v909, 0
      %v981 = vsel %vm249, %v910, 0
      %v984 = vsel %vm249, %v911, 0
      %v987 = vsel %vm249, %v912, 0
      %v990 = vsel %vm249, %v913, 0
      %v993 = vsel %vm249, %v914, 0
      %v996 = vsel %vm249, %v915, 0
      %v999 = vsel %vm249, %v916, 0
      %v1002 = vsel %vm249, %v917, 0
      %v1005 = vsel %vm249, %v918, 0
      %v1008 = vsel %vm249, %v919, 0
      %v1011 = vsel %vm249, %v920, 0
      %v1014 = vsel %vm249, %v921, 0
      %v1017 = vsel %vm249, %v922, 0
      %v1020 = vsel %vm249, %v923, 0
      %1022 = vmatprep.subr.mxu0 0.0
      %1023 = vmatpush1.msra.mxu0 0.0
      %1024 = vmatprep.subr.mxu0 0.0
      %1025 = vmatpush1.msra.mxu0 0.0
      %1026 = vmatprep.subr.mxu0 0.0
      %1027 = vmatpush1.msra.mxu0 0.0
      %1028 = vmatprep.subr.mxu0 0.0
      %1029 = vmatpush1.msra.mxu0 0.0
      %1030 = vmatprep.subr.mxu0 0.0
      %1031 = vmatpush1.msra.mxu0 0.0
      %1032 = vmatprep.subr.mxu0 0.0
      %1033 = vmatpush1.msra.mxu0 0.0
      %1034 = vmatprep.subr.mxu0 0.0
      %1035 = vmatpush1.msra.mxu0 0.0
      %1036 = vmatprep.subr.mxu0 0.0
      %1037 = vmatpush1.msra.mxu0 0.0
      %1038 = vmatprep.subr.mxu0 0.0
      %1039 = vmatpush1.msra.mxu0 0.0
      %1040 = vmatprep.subr.mxu0 0.0
      %1041 = vmatpush1.msra.mxu0 0.0
      %1042 = vmatprep.subr.mxu0 0.0
      %1043 = vmatpush1.msra.mxu0 0.0
      %1044 = vmatprep.subr.mxu0 0.0
      %1045 = vmatpush1.msra.mxu0 0.0
      %1046 = vmatprep.subr.mxu0 0.0
      %1047 = vmatpush1.msra.mxu0 0.0
      %1048 = vmatprep.subr.mxu0 0.0
      %1049 = vmatpush1.msra.mxu0 0.0
      %1050 = vmatprep.subr.mxu0 0.0
      %1051 = vmatpush1.msra.mxu0 0.0
      %1052 = vmatprep.subr.mxu0 0.0
      %1053 = vmatpush1.msra.mxu0 %v925
      %1054 = vmatprep.subr.mxu0 0.0
      %1055 = vmatpush2.msra.mxu0 0.0
      %1056 = vmatprep.subr.mxu0 0.0
      %1057 = vmatpush2.msra.mxu0 0.0
      %1058 = vmatprep.subr.mxu0 0.0
      %1059 = vmatpush2.msra.mxu0 0.0
      %1060 = vmatprep.subr.mxu0 0.0
      %1061 = vmatpush2.msra.mxu0 0.0
      %1062 = vmatprep.subr.mxu0 0.0
      %1063 = vmatpush2.msra.mxu0 0.0
      %1064 = vmatprep.subr.mxu0 0.0
      %1065 = vmatpush2.msra.mxu0 0.0
      %1066 = vmatprep.subr.mxu0 0.0
      %1067 = vmatpush2.msra.mxu0 0.0
      %1068 = vmatprep.subr.mxu0 0.0
      %1069 = vmatpush2.msra.mxu0 0.0
      %1070 = vmatprep.subr.mxu0 0.0
      %1071 = vmatpush2.msra.mxu0 0.0
      %1072 = vmatprep.subr.mxu0 0.0
      %1073 = vmatpush2.msra.mxu0 0.0
      %1074 = vmatprep.subr.mxu0 0.0
      %1075 = vmatpush2.msra.mxu0 0.0
      %1076 = vmatprep.subr.mxu0 0.0
      %1077 = vmatpush2.msra.mxu0 0.0
      %1078 = vmatprep.subr.mxu0 0.0
      %1079 = vmatpush2.msra.mxu0 0.0
      %1080 = vmatprep.subr.mxu0 0.0
      %1081 = vmatpush2.msra.mxu0 0.0
      %1082 = vmatprep.subr.mxu0 0.0
      %1083 = vmatpush2.msra.mxu0 0.0
      %1084 = vmatprep.subr.mxu0 0.0
      %1085 = vmatpush2.msra.mxu0 0.0
      %1086 = vmatprep.mubr.f32.mxu0 0.0
      %1087 = vmatmul.mubr.f32.gmra.mxu0 %v927
      %v1088 = vpop.f32.mrf.mxu0
      %v1089 = vadd.f32 0.0, %v1088
      %v1090 = vpop.f32.mrf.mxu0
      %1091 = vmatprep.mubr.f32.mxu0 0.0
      %1092 = vmatmul.mubr.f32.gmra.mxu0 %v930
      %v1093 = vpop.f32.mrf.mxu0
      %v1094 = vadd.f32 0.0, %v1093
      %v1095 = vpop.f32.mrf.mxu0
      %1096 = vmatprep.mubr.f32.mxu0 0.0
      %1097 = vmatmul.mubr.f32.gmra.mxu0 %v933
      %v1098 = vpop.f32.mrf.mxu0
      %v1099 = vadd.f32 0.0, %v1098
      %v1100 = vpop.f32.mrf.mxu0
      %1101 = vmatprep.mubr.f32.mxu0 0.0
      %1102 = vmatmul.mubr.f32.gmra.mxu0 %v936
      %v1103 = vpop.f32.mrf.mxu0
      %v1104 = vadd.f32 0.0, %v1103
      %v1105 = vpop.f32.mrf.mxu0
      %1106 = vmatprep.mubr.f32.mxu0 0.0
      %1107 = vmatmul.mubr.f32.gmra.mxu0 %v939
      %v1108 = vpop.f32.mrf.mxu0
      %v1109 = vadd.f32 0.0, %v1108
      %v1110 = vpop.f32.mrf.mxu0
      %1111 = vmatprep.mubr.f32.mxu0 0.0
      %1112 = vmatmul.mubr.f32.gmra.mxu0 %v942
      %v1113 = vpop.f32.mrf.mxu0
      %v1114 = vadd.f32 0.0, %v1113
      %v1115 = vpop.f32.mrf.mxu0
      %1116 = vmatprep.mubr.f32.mxu0 0.0
      %1117 = vmatmul.mubr.f32.gmra.mxu0 %v945
      %v1118 = vpop.f32.mrf.mxu0
      %v1119 = vadd.f32 0.0, %v1118
      %v1120 = vpop.f32.mrf.mxu0
      %1121 = vmatprep.mubr.f32.mxu0 0.0
      %1122 = vmatmul.mubr.f32.gmra.mxu0 %v948
      %v1123 = vpop.f32.mrf.mxu0
      %v1124 = vadd.f32 0.0, %v1123
      %v1125 = vpop.f32.mrf.mxu0
      %1126 = vmatprep.mubr.f32.mxu0 0.0
      %1127 = vmatmul.mubr.f32.gmra.mxu0 %v951
      %v1128 = vpop.f32.mrf.mxu0
      %v1129 = vadd.f32 0.0, %v1128
      %v1130 = vpop.f32.mrf.mxu0
      %1131 = vmatprep.mubr.f32.mxu0 0.0
      %1132 = vmatmul.mubr.f32.gmra.mxu0 %v954
      %v1133 = vpop.f32.mrf.mxu0
      %v1134 = vadd.f32 0.0, %v1133
      %v1135 = vpop.f32.mrf.mxu0
      %1136 = vmatprep.mubr.f32.mxu0 0.0
      %1137 = vmatmul.mubr.f32.gmra.mxu0 %v957
      %v1138 = vpop.f32.mrf.mxu0
      %v1139 = vadd.f32 0.0, %v1138
      %v1140 = vpop.f32.mrf.mxu0
      %1141 = vmatprep.mubr.f32.mxu0 0.0
      %1142 = vmatmul.mubr.f32.gmra.mxu0 %v960
      %v1143 = vpop.f32.mrf.mxu0
      %v1144 = vadd.f32 0.0, %v1143
      %v1145 = vpop.f32.mrf.mxu0
      %1146 = vmatprep.mubr.f32.mxu0 0.0
      %1147 = vmatmul.mubr.f32.gmra.mxu0 %v963
      %v1148 = vpop.f32.mrf.mxu0
      %v1149 = vadd.f32 0.0, %v1148
      %v1150 = vpop.f32.mrf.mxu0
      %1151 = vmatprep.mubr.f32.mxu0 0.0
      %1152 = vmatmul.mubr.f32.gmra.mxu0 %v966
      %v1153 = vpop.f32.mrf.mxu0
      %v1154 = vadd.f32 0.0, %v1153
      %v1155 = vpop.f32.mrf.mxu0
      %1156 = vmatprep.mubr.f32.mxu0 0.0
      %1157 = vmatmul.mubr.f32.gmra.mxu0 %v969
      %v1158 = vpop.f32.mrf.mxu0
      %v1159 = vadd.f32 0.0, %v1158
      %v1160 = vpop.f32.mrf.mxu0
      %1161 = vmatprep.mubr.f32.mxu0 0.0
      %1162 = vmatmul.mubr.f32.gmra.mxu0 %v972
      %v1163 = vpop.f32.mrf.mxu0
      %v1164 = vadd.f32 0.0, %v1163
      %v1165 = vpop.f32.mrf.mxu0
      %1166 = vmatprep.mubr.f32.mxu0 0.0
      %1167 = vmatmul.mubr.f32.gmra.mxu0 %v975
      %v1168 = vpop.f32.mrf.mxu0
      %v1169 = vadd.f32 0.0, %v1168
      %v1170 = vpop.f32.mrf.mxu0
      %1171 = vmatprep.mubr.f32.mxu0 0.0
      %1172 = vmatmul.mubr.f32.gmra.mxu0 %v978
      %v1173 = vpop.f32.mrf.mxu0
      %v1174 = vadd.f32 0.0, %v1173
      %v1175 = vpop.f32.mrf.mxu0
      %1176 = vmatprep.mubr.f32.mxu0 0.0
      %1177 = vmatmul.mubr.f32.gmra.mxu0 %v981
      %v1178 = vpop.f32.mrf.mxu0
      %v1179 = vadd.f32 0.0, %v1178
      %v1180 = vpop.f32.mrf.mxu0
      %1181 = vmatprep.mubr.f32.mxu0 0.0
      %1182 = vmatmul.mubr.f32.gmra.mxu0 %v984
      %v1183 = vpop.f32.mrf.mxu0
      %v1184 = vadd.f32 0.0, %v1183
      %v1185 = vpop.f32.mrf.mxu0
      %1186 = vmatprep.mubr.f32.mxu0 0.0
      %1187 = vmatmul.mubr.f32.gmra.mxu0 %v987
      %v1188 = vpop.f32.mrf.mxu0
      %v1189 = vadd.f32 0.0, %v1188
      %v1190 = vpop.f32.mrf.mxu0
      %1191 = vmatprep.mubr.f32.mxu0 0.0
      %1192 = vmatmul.mubr.f32.gmra.mxu0 %v990
      %v1193 = vpop.f32.mrf.mxu0
      %v1194 = vadd.f32 0.0, %v1193
      %v1195 = vpop.f32.mrf.mxu0
      %1196 = vmatprep.mubr.f32.mxu0 0.0
      %1197 = vmatmul.mubr.f32.gmra.mxu0 %v993
      %v1198 = vpop.f32.mrf.mxu0
      %v1199 = vadd.f32 0.0, %v1198
      %v1200 = vpop.f32.mrf.mxu0
      %1201 = vmatprep.mubr.f32.mxu0 0.0
      %1202 = vmatmul.mubr.f32.gmra.mxu0 %v996
      %v1203 = vpop.f32.mrf.mxu0
      %v1204 = vadd.f32 0.0, %v1203
      %v1205 = vpop.f32.mrf.mxu0
      %1206 = vmatprep.mubr.f32.mxu0 0.0
      %1207 = vmatmul.mubr.f32.gmra.mxu0 %v999
      %v1208 = vpop.f32.mrf.mxu0
      %v1209 = vadd.f32 0.0, %v1208
      %v1210 = vpop.f32.mrf.mxu0
      %1211 = vmatprep.mubr.f32.mxu0 0.0
      %1212 = vmatmul.mubr.f32.gmra.mxu0 %v1002
      %v1213 = vpop.f32.mrf.mxu0
      %v1214 = vadd.f32 0.0, %v1213
      %v1215 = vpop.f32.mrf.mxu0
      %1216 = vmatprep.mubr.f32.mxu0 0.0
      %1217 = vmatmul.mubr.f32.gmra.mxu0 %v1005
      %v1218 = vpop.f32.mrf.mxu0
      %v1219 = vadd.f32 0.0, %v1218
      %v1220 = vpop.f32.mrf.mxu0
      %1221 = vmatprep.mubr.f32.mxu0 0.0
      %1222 = vmatmul.mubr.f32.gmra.mxu0 %v1008
      %v1223 = vpop.f32.mrf.mxu0
      %v1224 = vadd.f32 0.0, %v1223
      %v1225 = vpop.f32.mrf.mxu0
      %1226 = vmatprep.mubr.f32.mxu0 0.0
      %1227 = vmatmul.mubr.f32.gmra.mxu0 %v1011
      %v1228 = vpop.f32.mrf.mxu0
      %v1229 = vadd.f32 0.0, %v1228
      %v1230 = vpop.f32.mrf.mxu0
      %1231 = vmatprep.mubr.f32.mxu0 0.0
      %1232 = vmatmul.mubr.f32.gmra.mxu0 %v1014
      %v1233 = vpop.f32.mrf.mxu0
      %v1234 = vadd.f32 0.0, %v1233
      %v1235 = vpop.f32.mrf.mxu0
      %1236 = vmatprep.mubr.f32.mxu0 0.0
      %1237 = vmatmul.mubr.f32.gmra.mxu0 %v1017
      %v1238 = vpop.f32.mrf.mxu0
      %v1239 = vadd.f32 0.0, %v1238
      %v1240 = vpop.f32.mrf.mxu0
      %1241 = vmatprep.mubr.f32.mxu0 0.0
      %1242 = vmatmul.mubr.f32.gmra.mxu0 %v1020
      %v1243 = vpop.f32.mrf.mxu0
      %v1244 = vadd.f32 0.0, %v1243
      %v1245 = vpop.f32.mrf.mxu0
      %1246 = vdwg.mxu0
      %v1247 = vadd.f32 %v734, %v1089
      %v1248 = vadd.f32 %v739, %v1094
      %v1249 = vadd.f32 %v744, %v1099
      %v1250 = vadd.f32 %v749, %v1104
      %v1251 = vadd.f32 %v754, %v1109
      %v1252 = vadd.f32 %v759, %v1114
      %v1253 = vadd.f32 %v764, %v1119
      %v1254 = vadd.f32 %v769, %v1124
      %v1255 = vadd.f32 %v774, %v1129
      %v1256 = vadd.f32 %v779, %v1134
      %v1257 = vadd.f32 %v784, %v1139
      %v1258 = vadd.f32 %v789, %v1144
      %v1259 = vadd.f32 %v794, %v1149
      %v1260 = vadd.f32 %v799, %v1154
      %v1261 = vadd.f32 %v804, %v1159
      %v1262 = vadd.f32 %v809, %v1164
      %v1263 = vadd.f32 %v814, %v1169
      %v1264 = vadd.f32 %v819, %v1174
      %v1265 = vadd.f32 %v824, %v1179
      %v1266 = vadd.f32 %v829, %v1184
      %v1267 = vadd.f32 %v834, %v1189
      %v1268 = vadd.f32 %v839, %v1194
      %v1269 = vadd.f32 %v844, %v1199
      %v1270 = vadd.f32 %v849, %v1204
      %v1271 = vadd.f32 %v854, %v1209
      %v1272 = vadd.f32 %v859, %v1214
      %v1273 = vadd.f32 %v864, %v1219
      %v1274 = vadd.f32 %v869, %v1224
      %v1275 = vadd.f32 %v874, %v1229
      %v1276 = vadd.f32 %v879, %v1234
      %v1277 = vadd.f32 %v884, %v1239
      %v1278 = vadd.f32 %v889, %v1244
      %s1279 = scalar_lea.vmem %s172, 24
      %v1280 = vld [vmem:[%s1279] sm:$0xff]
      %v1281 = vld [vmem:[%s1279 + $0x8] sm:$0xff]
      %v1282 = vld [vmem:[%s1279 + $0x18] sm:$0xff]
      %v1283 = vld [vmem:[%s1279 + $0x20] sm:$0xff]
      %v1284 = vld [vmem:[%s1279 + $0x30] sm:$0xff]
      %v1285 = vld [vmem:[%s1279 + $0x38] sm:$0xff]
      %v1286 = vld [vmem:[%s1279 + $0x48] sm:$0xff]
      %v1287 = vld [vmem:[%s1279 + $0x50] sm:$0xff]
      %v1288 = vld [vmem:[%s1279 + $0x60] sm:$0xff]
      %v1289 = vld [vmem:[%s1279 + $0x68] sm:$0xff]
      %v1290 = vld [vmem:[%s1279 + $0x78] sm:$0xff]
      %v1291 = vld [vmem:[%s1279 + $0x80] sm:$0xff]
      %v1292 = vld [vmem:[%s1279 + $0x90] sm:$0xff]
      %v1293 = vld [vmem:[%s1279 + $0x98] sm:$0xff]
      %v1294 = vld [vmem:[%s1279 + $0xa8] sm:$0xff]
      %v1295 = vld [vmem:[%s1279 + $0xb0] sm:$0xff]
      %v1296 = vld [vmem:[%s1279 + $0xc0] sm:$0xff]
      %v1297 = vld [vmem:[%s1279 + $0xc8] sm:$0xff]
      %v1298 = vld [vmem:[%s1279 + $0xd8] sm:$0xff]
      %v1299 = vld [vmem:[%s1279 + $0xe0] sm:$0xff]
      %v1300 = vld [vmem:[%s1279 + $0xf0] sm:$0xff]
      %v1301 = vld [vmem:[%s1279 + $0xf8] sm:$0xff]
      %v1302 = vld [vmem:[%s1279 + $0x108] sm:$0xff]
      %v1303 = vld [vmem:[%s1279 + $0x110] sm:$0xff]
      %v1304 = vld [vmem:[%s1279 + $0x120] sm:$0xff]
      %v1305 = vld [vmem:[%s1279 + $0x128] sm:$0xff]
      %v1306 = vld [vmem:[%s1279 + $0x138] sm:$0xff]
      %v1307 = vld [vmem:[%s1279 + $0x140] sm:$0xff]
      %v1308 = vld [vmem:[%s1279 + $0x150] sm:$0xff]
      %v1309 = vld [vmem:[%s1279 + $0x158] sm:$0xff]
      %v1310 = vld [vmem:[%s1279 + $0x168] sm:$0xff]
      %v1311 = vld [vmem:[%s1279 + $0x170] sm:$0xff]
      %s1312 = scalar_lea.vmem %s1, 24
      %v1313 = vld [vmem:[%s1312] sm:$0xff]
      %v1315 = vsel %vm249, %v1280, 0
      %v1318 = vsel %vm249, %v1281, 0
      %v1321 = vsel %vm249, %v1282, 0
      %v1324 = vsel %vm249, %v1283, 0
      %v1327 = vsel %vm249, %v1284, 0
      %v1330 = vsel %vm249, %v1285, 0
      %v1333 = vsel %vm249, %v1286, 0
      %v1336 = vsel %vm249, %v1287, 0
      %v1339 = vsel %vm249, %v1288, 0
      %v1342 = vsel %vm249, %v1289, 0
      %v1345 = vsel %vm249, %v1290, 0
      %v1348 = vsel %vm249, %v1291, 0
      %v1351 = vsel %vm249, %v1292, 0
      %v1354 = vsel %vm249, %v1293, 0
      %v1357 = vsel %vm249, %v1294, 0
      %v1360 = vsel %vm249, %v1295, 0
      %v1363 = vsel %vm249, %v1296, 0
      %v1366 = vsel %vm249, %v1297, 0
      %v1369 = vsel %vm249, %v1298, 0
      %v1372 = vsel %vm249, %v1299, 0
      %v1375 = vsel %vm249, %v1300, 0
      %v1378 = vsel %vm249, %v1301, 0
      %v1381 = vsel %vm249, %v1302, 0
      %v1384 = vsel %vm249, %v1303, 0
      %v1387 = vsel %vm249, %v1304, 0
      %v1390 = vsel %vm249, %v1305, 0
      %v1393 = vsel %vm249, %v1306, 0
      %v1396 = vsel %vm249, %v1307, 0
      %v1399 = vsel %vm249, %v1308, 0
      %v1402 = vsel %vm249, %v1309, 0
      %v1405 = vsel %vm249, %v1310, 0
      %v1408 = vsel %vm249, %v1311, 0
      %1410 = vmatprep.subr.mxu0 0.0
      %1411 = vmatpush1.msra.mxu0 0.0
      %1412 = vmatprep.subr.mxu0 0.0
      %1413 = vmatpush1.msra.mxu0 0.0
      %1414 = vmatprep.subr.mxu0 0.0
      %1415 = vmatpush1.msra.mxu0 0.0
      %1416 = vmatprep.subr.mxu0 0.0
      %1417 = vmatpush1.msra.mxu0 0.0
      %1418 = vmatprep.subr.mxu0 0.0
      %1419 = vmatpush1.msra.mxu0 0.0
      %1420 = vmatprep.subr.mxu0 0.0
      %1421 = vmatpush1.msra.mxu0 0.0
      %1422 = vmatprep.subr.mxu0 0.0
      %1423 = vmatpush1.msra.mxu0 0.0
      %1424 = vmatprep.subr.mxu0 0.0
      %1425 = vmatpush1.msra.mxu0 0.0
      %1426 = vmatprep.subr.mxu0 0.0
      %1427 = vmatpush1.msra.mxu0 0.0
      %1428 = vmatprep.subr.mxu0 0.0
      %1429 = vmatpush1.msra.mxu0 0.0
      %1430 = vmatprep.subr.mxu0 0.0
      %1431 = vmatpush1.msra.mxu0 0.0
      %1432 = vmatprep.subr.mxu0 0.0
      %1433 = vmatpush1.msra.mxu0 0.0
      %1434 = vmatprep.subr.mxu0 0.0
      %1435 = vmatpush1.msra.mxu0 0.0
      %1436 = vmatprep.subr.mxu0 0.0
      %1437 = vmatpush1.msra.mxu0 0.0
      %1438 = vmatprep.subr.mxu0 0.0
      %1439 = vmatpush1.msra.mxu0 0.0
      %1440 = vmatprep.subr.mxu0 0.0
      %1441 = vmatpush1.msra.mxu0 %v1313
      %1442 = vmatprep.subr.mxu0 0.0
      %1443 = vmatpush2.msra.mxu0 0.0
      %1444 = vmatprep.subr.mxu0 0.0
      %1445 = vmatpush2.msra.mxu0 0.0
      %1446 = vmatprep.subr.mxu0 0.0
      %1447 = vmatpush2.msra.mxu0 0.0
      %1448 = vmatprep.subr.mxu0 0.0
      %1449 = vmatpush2.msra.mxu0 0.0
      %1450 = vmatprep.subr.mxu0 0.0
      %1451 = vmatpush2.msra.mxu0 0.0
      %1452 = vmatprep.subr.mxu0 0.0
      %1453 = vmatpush2.msra.mxu0 0.0
      %1454 = vmatprep.subr.mxu0 0.0
      %1455 = vmatpush2.msra.mxu0 0.0
      %1456 = vmatprep.subr.mxu0 0.0
      %1457 = vmatpush2.msra.mxu0 0.0
      %1458 = vmatprep.subr.mxu0 0.0
      %1459 = vmatpush2.msra.mxu0 0.0
      %1460 = vmatprep.subr.mxu0 0.0
      %1461 = vmatpush2.msra.mxu0 0.0
      %1462 = vmatprep.subr.mxu0 0.0
      %1463 = vmatpush2.msra.mxu0 0.0
      %1464 = vmatprep.subr.mxu0 0.0
      %1465 = vmatpush2.msra.mxu0 0.0
      %1466 = vmatprep.subr.mxu0 0.0
      %1467 = vmatpush2.msra.mxu0 0.0
      %1468 = vmatprep.subr.mxu0 0.0
      %1469 = vmatpush2.msra.mxu0 0.0
      %1470 = vmatprep.subr.mxu0 0.0
      %1471 = vmatpush2.msra.mxu0 0.0
      %1472 = vmatprep.subr.mxu0 0.0
      %1473 = vmatpush2.msra.mxu0 0.0
      %1474 = vmatprep.mubr.f32.mxu0 0.0
      %1475 = vmatmul.mubr.f32.gmra.mxu0 %v1315
      %v1476 = vpop.f32.mrf.mxu0
      %v1477 = vadd.f32 0.0, %v1476
      %v1478 = vpop.f32.mrf.mxu0
      %1479 = vmatprep.mubr.f32.mxu0 0.0
      %1480 = vmatmul.mubr.f32.gmra.mxu0 %v1318
      %v1481 = vpop.f32.mrf.mxu0
      %v1482 = vadd.f32 0.0, %v1481
      %v1483 = vpop.f32.mrf.mxu0
      %1484 = vmatprep.mubr.f32.mxu0 0.0
      %1485 = vmatmul.mubr.f32.gmra.mxu0 %v1321
      %v1486 = vpop.f32.mrf.mxu0
      %v1487 = vadd.f32 0.0, %v1486
      %v1488 = vpop.f32.mrf.mxu0
      %1489 = vmatprep.mubr.f32.mxu0 0.0
      %1490 = vmatmul.mubr.f32.gmra.mxu0 %v1324
      %v1491 = vpop.f32.mrf.mxu0
      %v1492 = vadd.f32 0.0, %v1491
      %v1493 = vpop.f32.mrf.mxu0
      %1494 = vmatprep.mubr.f32.mxu0 0.0
      %1495 = vmatmul.mubr.f32.gmra.mxu0 %v1327
      %v1496 = vpop.f32.mrf.mxu0
      %v1497 = vadd.f32 0.0, %v1496
      %v1498 = vpop.f32.mrf.mxu0
      %1499 = vmatprep.mubr.f32.mxu0 0.0
      %1500 = vmatmul.mubr.f32.gmra.mxu0 %v1330
      %v1501 = vpop.f32.mrf.mxu0
      %v1502 = vadd.f32 0.0, %v1501
      %v1503 = vpop.f32.mrf.mxu0
      %1504 = vmatprep.mubr.f32.mxu0 0.0
      %1505 = vmatmul.mubr.f32.gmra.mxu0 %v1333
      %v1506 = vpop.f32.mrf.mxu0
      %v1507 = vadd.f32 0.0, %v1506
      %v1508 = vpop.f32.mrf.mxu0
      %1509 = vmatprep.mubr.f32.mxu0 0.0
      %1510 = vmatmul.mubr.f32.gmra.mxu0 %v1336
      %v1511 = vpop.f32.mrf.mxu0
      %v1512 = vadd.f32 0.0, %v1511
      %v1513 = vpop.f32.mrf.mxu0
      %1514 = vmatprep.mubr.f32.mxu0 0.0
      %1515 = vmatmul.mubr.f32.gmra.mxu0 %v1339
      %v1516 = vpop.f32.mrf.mxu0
      %v1517 = vadd.f32 0.0, %v1516
      %v1518 = vpop.f32.mrf.mxu0
      %1519 = vmatprep.mubr.f32.mxu0 0.0
      %1520 = vmatmul.mubr.f32.gmra.mxu0 %v1342
      %v1521 = vpop.f32.mrf.mxu0
      %v1522 = vadd.f32 0.0, %v1521
      %v1523 = vpop.f32.mrf.mxu0
      %1524 = vmatprep.mubr.f32.mxu0 0.0
      %1525 = vmatmul.mubr.f32.gmra.mxu0 %v1345
      %v1526 = vpop.f32.mrf.mxu0
      %v1527 = vadd.f32 0.0, %v1526
      %v1528 = vpop.f32.mrf.mxu0
      %1529 = vmatprep.mubr.f32.mxu0 0.0
      %1530 = vmatmul.mubr.f32.gmra.mxu0 %v1348
      %v1531 = vpop.f32.mrf.mxu0
      %v1532 = vadd.f32 0.0, %v1531
      %v1533 = vpop.f32.mrf.mxu0
      %1534 = vmatprep.mubr.f32.mxu0 0.0
      %1535 = vmatmul.mubr.f32.gmra.mxu0 %v1351
      %v1536 = vpop.f32.mrf.mxu0
      %v1537 = vadd.f32 0.0, %v1536
      %v1538 = vpop.f32.mrf.mxu0
      %1539 = vmatprep.mubr.f32.mxu0 0.0
      %1540 = vmatmul.mubr.f32.gmra.mxu0 %v1354
      %v1541 = vpop.f32.mrf.mxu0
      %v1542 = vadd.f32 0.0, %v1541
      %v1543 = vpop.f32.mrf.mxu0
      %1544 = vmatprep.mubr.f32.mxu0 0.0
      %1545 = vmatmul.mubr.f32.gmra.mxu0 %v1357
      %v1546 = vpop.f32.mrf.mxu0
      %v1547 = vadd.f32 0.0, %v1546
      %v1548 = vpop.f32.mrf.mxu0
      %1549 = vmatprep.mubr.f32.mxu0 0.0
      %1550 = vmatmul.mubr.f32.gmra.mxu0 %v1360
      %v1551 = vpop.f32.mrf.mxu0
      %v1552 = vadd.f32 0.0, %v1551
      %v1553 = vpop.f32.mrf.mxu0
      %1554 = vmatprep.mubr.f32.mxu0 0.0
      %1555 = vmatmul.mubr.f32.gmra.mxu0 %v1363
      %v1556 = vpop.f32.mrf.mxu0
      %v1557 = vadd.f32 0.0, %v1556
      %v1558 = vpop.f32.mrf.mxu0
      %1559 = vmatprep.mubr.f32.mxu0 0.0
      %1560 = vmatmul.mubr.f32.gmra.mxu0 %v1366
      %v1561 = vpop.f32.mrf.mxu0
      %v1562 = vadd.f32 0.0, %v1561
      %v1563 = vpop.f32.mrf.mxu0
      %1564 = vmatprep.mubr.f32.mxu0 0.0
      %1565 = vmatmul.mubr.f32.gmra.mxu0 %v1369
      %v1566 = vpop.f32.mrf.mxu0
      %v1567 = vadd.f32 0.0, %v1566
      %v1568 = vpop.f32.mrf.mxu0
      %1569 = vmatprep.mubr.f32.mxu0 0.0
      %1570 = vmatmul.mubr.f32.gmra.mxu0 %v1372
      %v1571 = vpop.f32.mrf.mxu0
      %v1572 = vadd.f32 0.0, %v1571
      %v1573 = vpop.f32.mrf.mxu0
      %1574 = vmatprep.mubr.f32.mxu0 0.0
      %1575 = vmatmul.mubr.f32.gmra.mxu0 %v1375
      %v1576 = vpop.f32.mrf.mxu0
      %v1577 = vadd.f32 0.0, %v1576
      %v1578 = vpop.f32.mrf.mxu0
      %1579 = vmatprep.mubr.f32.mxu0 0.0
      %1580 = vmatmul.mubr.f32.gmra.mxu0 %v1378
      %v1581 = vpop.f32.mrf.mxu0
      %v1582 = vadd.f32 0.0, %v1581
      %v1583 = vpop.f32.mrf.mxu0
      %1584 = vmatprep.mubr.f32.mxu0 0.0
      %1585 = vmatmul.mubr.f32.gmra.mxu0 %v1381
      %v1586 = vpop.f32.mrf.mxu0
      %v1587 = vadd.f32 0.0, %v1586
      %v1588 = vpop.f32.mrf.mxu0
      %1589 = vmatprep.mubr.f32.mxu0 0.0
      %1590 = vmatmul.mubr.f32.gmra.mxu0 %v1384
      %v1591 = vpop.f32.mrf.mxu0
      %v1592 = vadd.f32 0.0, %v1591
      %v1593 = vpop.f32.mrf.mxu0
      %1594 = vmatprep.mubr.f32.mxu0 0.0
      %1595 = vmatmul.mubr.f32.gmra.mxu0 %v1387
      %v1596 = vpop.f32.mrf.mxu0
      %v1597 = vadd.f32 0.0, %v1596
      %v1598 = vpop.f32.mrf.mxu0
      %1599 = vmatprep.mubr.f32.mxu0 0.0
      %1600 = vmatmul.mubr.f32.gmra.mxu0 %v1390
      %v1601 = vpop.f32.mrf.mxu0
      %v1602 = vadd.f32 0.0, %v1601
      %v1603 = vpop.f32.mrf.mxu0
      %1604 = vmatprep.mubr.f32.mxu0 0.0
      %1605 = vmatmul.mubr.f32.gmra.mxu0 %v1393
      %v1606 = vpop.f32.mrf.mxu0
      %v1607 = vadd.f32 0.0, %v1606
      %v1608 = vpop.f32.mrf.mxu0
      %1609 = vmatprep.mubr.f32.mxu0 0.0
      %1610 = vmatmul.mubr.f32.gmra.mxu0 %v1396
      %v1611 = vpop.f32.mrf.mxu0
      %v1612 = vadd.f32 0.0, %v1611
      %v1613 = vpop.f32.mrf.mxu0
      %1614 = vmatprep.mubr.f32.mxu0 0.0
      %1615 = vmatmul.mubr.f32.gmra.mxu0 %v1399
      %v1616 = vpop.f32.mrf.mxu0
      %v1617 = vadd.f32 0.0, %v1616
      %v1618 = vpop.f32.mrf.mxu0
      %1619 = vmatprep.mubr.f32.mxu0 0.0
      %1620 = vmatmul.mubr.f32.gmra.mxu0 %v1402
      %v1621 = vpop.f32.mrf.mxu0
      %v1622 = vadd.f32 0.0, %v1621
      %v1623 = vpop.f32.mrf.mxu0
      %1624 = vmatprep.mubr.f32.mxu0 0.0
      %1625 = vmatmul.mubr.f32.gmra.mxu0 %v1405
      %v1626 = vpop.f32.mrf.mxu0
      %v1627 = vadd.f32 0.0, %v1626
      %v1628 = vpop.f32.mrf.mxu0
      %1629 = vmatprep.mubr.f32.mxu0 0.0
      %1630 = vmatmul.mubr.f32.gmra.mxu0 %v1408
      %v1631 = vpop.f32.mrf.mxu0
      %v1632 = vadd.f32 0.0, %v1631
      %v1633 = vpop.f32.mrf.mxu0
      %1634 = vdwg.mxu0
      %v1635 = vadd.f32 %v1247, %v1477
      %v1636 = vadd.f32 %v1248, %v1482
      %v1637 = vadd.f32 %v1249, %v1487
      %v1638 = vadd.f32 %v1250, %v1492
      %v1639 = vadd.f32 %v1251, %v1497
      %v1640 = vadd.f32 %v1252, %v1502
      %v1641 = vadd.f32 %v1253, %v1507
      %v1642 = vadd.f32 %v1254, %v1512
      %v1643 = vadd.f32 %v1255, %v1517
      %v1644 = vadd.f32 %v1256, %v1522
      %v1645 = vadd.f32 %v1257, %v1527
      %v1646 = vadd.f32 %v1258, %v1532
      %v1647 = vadd.f32 %v1259, %v1537
      %v1648 = vadd.f32 %v1260, %v1542
      %v1649 = vadd.f32 %v1261, %v1547
      %v1650 = vadd.f32 %v1262, %v1552
      %v1651 = vadd.f32 %v1263, %v1557
      %v1652 = vadd.f32 %v1264, %v1562
      %v1653 = vadd.f32 %v1265, %v1567
      %v1654 = vadd.f32 %v1266, %v1572
      %v1655 = vadd.f32 %v1267, %v1577
      %v1656 = vadd.f32 %v1268, %v1582
      %v1657 = vadd.f32 %v1269, %v1587
      %v1658 = vadd.f32 %v1270, %v1592
      %v1659 = vadd.f32 %v1271, %v1597
      %v1660 = vadd.f32 %v1272, %v1602
      %v1661 = vadd.f32 %v1273, %v1607
      %v1662 = vadd.f32 %v1274, %v1612
      %v1663 = vadd.f32 %v1275, %v1617
      %v1664 = vadd.f32 %v1276, %v1622
      %v1665 = vadd.f32 %v1277, %v1627
      %v1666 = vadd.f32 %v1278, %v1632
      %v1667 = vld [vmem:[%s1279 + $0x1] sm:$0xff]
      %v1668 = vld [vmem:[%s1279 + $0x9] sm:$0xff]
      %v1669 = vld [vmem:[%s1279 + $0x19] sm:$0xff]
      %v1670 = vld [vmem:[%s1279 + $0x21] sm:$0xff]
      %v1671 = vld [vmem:[%s1279 + $0x31] sm:$0xff]
      %v1672 = vld [vmem:[%s1279 + $0x39] sm:$0xff]
      %v1673 = vld [vmem:[%s1279 + $0x49] sm:$0xff]
      %v1674 = vld [vmem:[%s1279 + $0x51] sm:$0xff]
      %v1675 = vld [vmem:[%s1279 + $0x61] sm:$0xff]
      %v1676 = vld [vmem:[%s1279 + $0x69] sm:$0xff]
      %v1677 = vld [vmem:[%s1279 + $0x79] sm:$0xff]
      %v1678 = vld [vmem:[%s1279 + $0x81] sm:$0xff]
      %v1679 = vld [vmem:[%s1279 + $0x91] sm:$0xff]
      %v1680 = vld [vmem:[%s1279 + $0x99] sm:$0xff]
      %v1681 = vld [vmem:[%s1279 + $0xa9] sm:$0xff]
      %v1682 = vld [vmem:[%s1279 + $0xb1] sm:$0xff]
      %v1683 = vld [vmem:[%s1279 + $0xc1] sm:$0xff]
      %v1684 = vld [vmem:[%s1279 + $0xc9] sm:$0xff]
      %v1685 = vld [vmem:[%s1279 + $0xd9] sm:$0xff]
      %v1686 = vld [vmem:[%s1279 + $0xe1] sm:$0xff]
      %v1687 = vld [vmem:[%s1279 + $0xf1] sm:$0xff]
      %v1688 = vld [vmem:[%s1279 + $0xf9] sm:$0xff]
      %v1689 = vld [vmem:[%s1279 + $0x109] sm:$0xff]
      %v1690 = vld [vmem:[%s1279 + $0x111] sm:$0xff]
      %v1691 = vld [vmem:[%s1279 + $0x121] sm:$0xff]
      %v1692 = vld [vmem:[%s1279 + $0x129] sm:$0xff]
      %v1693 = vld [vmem:[%s1279 + $0x139] sm:$0xff]
      %v1694 = vld [vmem:[%s1279 + $0x141] sm:$0xff]
      %v1695 = vld [vmem:[%s1279 + $0x151] sm:$0xff]
      %v1696 = vld [vmem:[%s1279 + $0x159] sm:$0xff]
      %v1697 = vld [vmem:[%s1279 + $0x169] sm:$0xff]
      %v1698 = vld [vmem:[%s1279 + $0x171] sm:$0xff]
      %s1699 = scalar_lea.vmem %s1, 32
      %v1700 = vld [vmem:[%s1699] sm:$0xff]
      %v1702 = vsel %vm249, %v1667, 0
      %v1705 = vsel %vm249, %v1668, 0
      %v1708 = vsel %vm249, %v1669, 0
      %v1711 = vsel %vm249, %v1670, 0
      %v1714 = vsel %vm249, %v1671, 0
      %v1717 = vsel %vm249, %v1672, 0
      %v1720 = vsel %vm249, %v1673, 0
      %v1723 = vsel %vm249, %v1674, 0
      %v1726 = vsel %vm249, %v1675, 0
      %v1729 = vsel %vm249, %v1676, 0
      %v1732 = vsel %vm249, %v1677, 0
      %v1735 = vsel %vm249, %v1678, 0
      %v1738 = vsel %vm249, %v1679, 0
      %v1741 = vsel %vm249, %v1680, 0
      %v1744 = vsel %vm249, %v1681, 0
      %v1747 = vsel %vm249, %v1682, 0
      %v1750 = vsel %vm249, %v1683, 0
      %v1753 = vsel %vm249, %v1684, 0
      %v1756 = vsel %vm249, %v1685, 0
      %v1759 = vsel %vm249, %v1686, 0
      %v1762 = vsel %vm249, %v1687, 0
      %v1765 = vsel %vm249, %v1688, 0
      %v1768 = vsel %vm249, %v1689, 0
      %v1771 = vsel %vm249, %v1690, 0
      %v1774 = vsel %vm249, %v1691, 0
      %v1777 = vsel %vm249, %v1692, 0
      %v1780 = vsel %vm249, %v1693, 0
      %v1783 = vsel %vm249, %v1694, 0
      %v1786 = vsel %vm249, %v1695, 0
      %v1789 = vsel %vm249, %v1696, 0
      %v1792 = vsel %vm249, %v1697, 0
      %v1795 = vsel %vm249, %v1698, 0
      %1797 = vmatprep.subr.mxu0 0.0
      %1798 = vmatpush1.msra.mxu0 0.0
      %1799 = vmatprep.subr.mxu0 0.0
      %1800 = vmatpush1.msra.mxu0 0.0
      %1801 = vmatprep.subr.mxu0 0.0
      %1802 = vmatpush1.msra.mxu0 0.0
      %1803 = vmatprep.subr.mxu0 0.0
      %1804 = vmatpush1.msra.mxu0 0.0
      %1805 = vmatprep.subr.mxu0 0.0
      %1806 = vmatpush1.msra.mxu0 0.0
      %1807 = vmatprep.subr.mxu0 0.0
      %1808 = vmatpush1.msra.mxu0 0.0
      %1809 = vmatprep.subr.mxu0 0.0
      %1810 = vmatpush1.msra.mxu0 0.0
      %1811 = vmatprep.subr.mxu0 0.0
      %1812 = vmatpush1.msra.mxu0 0.0
      %1813 = vmatprep.subr.mxu0 0.0
      %1814 = vmatpush1.msra.mxu0 0.0
      %1815 = vmatprep.subr.mxu0 0.0
      %1816 = vmatpush1.msra.mxu0 0.0
      %1817 = vmatprep.subr.mxu0 0.0
      %1818 = vmatpush1.msra.mxu0 0.0
      %1819 = vmatprep.subr.mxu0 0.0
      %1820 = vmatpush1.msra.mxu0 0.0
      %1821 = vmatprep.subr.mxu0 0.0
      %1822 = vmatpush1.msra.mxu0 0.0
      %1823 = vmatprep.subr.mxu0 0.0
      %1824 = vmatpush1.msra.mxu0 0.0
      %1825 = vmatprep.subr.mxu0 0.0
      %1826 = vmatpush1.msra.mxu0 0.0
      %1827 = vmatprep.subr.mxu0 0.0
      %1828 = vmatpush1.msra.mxu0 %v1700
      %1829 = vmatprep.subr.mxu0 0.0
      %1830 = vmatpush2.msra.mxu0 0.0
      %1831 = vmatprep.subr.mxu0 0.0
      %1832 = vmatpush2.msra.mxu0 0.0
      %1833 = vmatprep.subr.mxu0 0.0
      %1834 = vmatpush2.msra.mxu0 0.0
      %1835 = vmatprep.subr.mxu0 0.0
      %1836 = vmatpush2.msra.mxu0 0.0
      %1837 = vmatprep.subr.mxu0 0.0
      %1838 = vmatpush2.msra.mxu0 0.0
      %1839 = vmatprep.subr.mxu0 0.0
      %1840 = vmatpush2.msra.mxu0 0.0
      %1841 = vmatprep.subr.mxu0 0.0
      %1842 = vmatpush2.msra.mxu0 0.0
      %1843 = vmatprep.subr.mxu0 0.0
      %1844 = vmatpush2.msra.mxu0 0.0
      %1845 = vmatprep.subr.mxu0 0.0
      %1846 = vmatpush2.msra.mxu0 0.0
      %1847 = vmatprep.subr.mxu0 0.0
      %1848 = vmatpush2.msra.mxu0 0.0
      %1849 = vmatprep.subr.mxu0 0.0
      %1850 = vmatpush2.msra.mxu0 0.0
      %1851 = vmatprep.subr.mxu0 0.0
      %1852 = vmatpush2.msra.mxu0 0.0
      %1853 = vmatprep.subr.mxu0 0.0
      %1854 = vmatpush2.msra.mxu0 0.0
      %1855 = vmatprep.subr.mxu0 0.0
      %1856 = vmatpush2.msra.mxu0 0.0
      %1857 = vmatprep.subr.mxu0 0.0
      %1858 = vmatpush2.msra.mxu0 0.0
      %1859 = vmatprep.subr.mxu0 0.0
      %1860 = vmatpush2.msra.mxu0 0.0
      %1861 = vmatprep.mubr.f32.mxu0 0.0
      %1862 = vmatmul.mubr.f32.gmra.mxu0 %v1702
      %v1863 = vpop.f32.mrf.mxu0
      %v1864 = vadd.f32 0.0, %v1863
      %v1865 = vpop.f32.mrf.mxu0
      %1866 = vmatprep.mubr.f32.mxu0 0.0
      %1867 = vmatmul.mubr.f32.gmra.mxu0 %v1705
      %v1868 = vpop.f32.mrf.mxu0
      %v1869 = vadd.f32 0.0, %v1868
      %v1870 = vpop.f32.mrf.mxu0
      %1871 = vmatprep.mubr.f32.mxu0 0.0
      %1872 = vmatmul.mubr.f32.gmra.mxu0 %v1708
      %v1873 = vpop.f32.mrf.mxu0
      %v1874 = vadd.f32 0.0, %v1873
      %v1875 = vpop.f32.mrf.mxu0
      %1876 = vmatprep.mubr.f32.mxu0 0.0
      %1877 = vmatmul.mubr.f32.gmra.mxu0 %v1711
      %v1878 = vpop.f32.mrf.mxu0
      %v1879 = vadd.f32 0.0, %v1878
      %v1880 = vpop.f32.mrf.mxu0
      %1881 = vmatprep.mubr.f32.mxu0 0.0
      %1882 = vmatmul.mubr.f32.gmra.mxu0 %v1714
      %v1883 = vpop.f32.mrf.mxu0
      %v1884 = vadd.f32 0.0, %v1883
      %v1885 = vpop.f32.mrf.mxu0
      %1886 = vmatprep.mubr.f32.mxu0 0.0
      %1887 = vmatmul.mubr.f32.gmra.mxu0 %v1717
      %v1888 = vpop.f32.mrf.mxu0
      %v1889 = vadd.f32 0.0, %v1888
      %v1890 = vpop.f32.mrf.mxu0
      %1891 = vmatprep.mubr.f32.mxu0 0.0
      %1892 = vmatmul.mubr.f32.gmra.mxu0 %v1720
      %v1893 = vpop.f32.mrf.mxu0
      %v1894 = vadd.f32 0.0, %v1893
      %v1895 = vpop.f32.mrf.mxu0
      %1896 = vmatprep.mubr.f32.mxu0 0.0
      %1897 = vmatmul.mubr.f32.gmra.mxu0 %v1723
      %v1898 = vpop.f32.mrf.mxu0
      %v1899 = vadd.f32 0.0, %v1898
      %v1900 = vpop.f32.mrf.mxu0
      %1901 = vmatprep.mubr.f32.mxu0 0.0
      %1902 = vmatmul.mubr.f32.gmra.mxu0 %v1726
      %v1903 = vpop.f32.mrf.mxu0
      %v1904 = vadd.f32 0.0, %v1903
      %v1905 = vpop.f32.mrf.mxu0
      %1906 = vmatprep.mubr.f32.mxu0 0.0
      %1907 = vmatmul.mubr.f32.gmra.mxu0 %v1729
      %v1908 = vpop.f32.mrf.mxu0
      %v1909 = vadd.f32 0.0, %v1908
      %v1910 = vpop.f32.mrf.mxu0
      %1911 = vmatprep.mubr.f32.mxu0 0.0
      %1912 = vmatmul.mubr.f32.gmra.mxu0 %v1732
      %v1913 = vpop.f32.mrf.mxu0
      %v1914 = vadd.f32 0.0, %v1913
      %v1915 = vpop.f32.mrf.mxu0
      %1916 = vmatprep.mubr.f32.mxu0 0.0
      %1917 = vmatmul.mubr.f32.gmra.mxu0 %v1735
      %v1918 = vpop.f32.mrf.mxu0
      %v1919 = vadd.f32 0.0, %v1918
      %v1920 = vpop.f32.mrf.mxu0
      %1921 = vmatprep.mubr.f32.mxu0 0.0
      %1922 = vmatmul.mubr.f32.gmra.mxu0 %v1738
      %v1923 = vpop.f32.mrf.mxu0
      %v1924 = vadd.f32 0.0, %v1923
      %v1925 = vpop.f32.mrf.mxu0
      %1926 = vmatprep.mubr.f32.mxu0 0.0
      %1927 = vmatmul.mubr.f32.gmra.mxu0 %v1741
      %v1928 = vpop.f32.mrf.mxu0
      %v1929 = vadd.f32 0.0, %v1928
      %v1930 = vpop.f32.mrf.mxu0
      %1931 = vmatprep.mubr.f32.mxu0 0.0
      %1932 = vmatmul.mubr.f32.gmra.mxu0 %v1744
      %v1933 = vpop.f32.mrf.mxu0
      %v1934 = vadd.f32 0.0, %v1933
      %v1935 = vpop.f32.mrf.mxu0
      %1936 = vmatprep.mubr.f32.mxu0 0.0
      %1937 = vmatmul.mubr.f32.gmra.mxu0 %v1747
      %v1938 = vpop.f32.mrf.mxu0
      %v1939 = vadd.f32 0.0, %v1938
      %v1940 = vpop.f32.mrf.mxu0
      %1941 = vmatprep.mubr.f32.mxu0 0.0
      %1942 = vmatmul.mubr.f32.gmra.mxu0 %v1750
      %v1943 = vpop.f32.mrf.mxu0
      %v1944 = vadd.f32 0.0, %v1943
      %v1945 = vpop.f32.mrf.mxu0
      %1946 = vmatprep.mubr.f32.mxu0 0.0
      %1947 = vmatmul.mubr.f32.gmra.mxu0 %v1753
      %v1948 = vpop.f32.mrf.mxu0
      %v1949 = vadd.f32 0.0, %v1948
      %v1950 = vpop.f32.mrf.mxu0
      %1951 = vmatprep.mubr.f32.mxu0 0.0
      %1952 = vmatmul.mubr.f32.gmra.mxu0 %v1756
      %v1953 = vpop.f32.mrf.mxu0
      %v1954 = vadd.f32 0.0, %v1953
      %v1955 = vpop.f32.mrf.mxu0
      %1956 = vmatprep.mubr.f32.mxu0 0.0
      %1957 = vmatmul.mubr.f32.gmra.mxu0 %v1759
      %v1958 = vpop.f32.mrf.mxu0
      %v1959 = vadd.f32 0.0, %v1958
      %v1960 = vpop.f32.mrf.mxu0
      %1961 = vmatprep.mubr.f32.mxu0 0.0
      %1962 = vmatmul.mubr.f32.gmra.mxu0 %v1762
      %v1963 = vpop.f32.mrf.mxu0
      %v1964 = vadd.f32 0.0, %v1963
      %v1965 = vpop.f32.mrf.mxu0
      %1966 = vmatprep.mubr.f32.mxu0 0.0
      %1967 = vmatmul.mubr.f32.gmra.mxu0 %v1765
      %v1968 = vpop.f32.mrf.mxu0
      %v1969 = vadd.f32 0.0, %v1968
      %v1970 = vpop.f32.mrf.mxu0
      %1971 = vmatprep.mubr.f32.mxu0 0.0
      %1972 = vmatmul.mubr.f32.gmra.mxu0 %v1768
      %v1973 = vpop.f32.mrf.mxu0
      %v1974 = vadd.f32 0.0, %v1973
      %v1975 = vpop.f32.mrf.mxu0
      %1976 = vmatprep.mubr.f32.mxu0 0.0
      %1977 = vmatmul.mubr.f32.gmra.mxu0 %v1771
      %v1978 = vpop.f32.mrf.mxu0
      %v1979 = vadd.f32 0.0, %v1978
      %v1980 = vpop.f32.mrf.mxu0
      %1981 = vmatprep.mubr.f32.mxu0 0.0
      %1982 = vmatmul.mubr.f32.gmra.mxu0 %v1774
      %v1983 = vpop.f32.mrf.mxu0
      %v1984 = vadd.f32 0.0, %v1983
      %v1985 = vpop.f32.mrf.mxu0
      %1986 = vmatprep.mubr.f32.mxu0 0.0
      %1987 = vmatmul.mubr.f32.gmra.mxu0 %v1777
      %v1988 = vpop.f32.mrf.mxu0
      %v1989 = vadd.f32 0.0, %v1988
      %v1990 = vpop.f32.mrf.mxu0
      %1991 = vmatprep.mubr.f32.mxu0 0.0
      %1992 = vmatmul.mubr.f32.gmra.mxu0 %v1780
      %v1993 = vpop.f32.mrf.mxu0
      %v1994 = vadd.f32 0.0, %v1993
      %v1995 = vpop.f32.mrf.mxu0
      %1996 = vmatprep.mubr.f32.mxu0 0.0
      %1997 = vmatmul.mubr.f32.gmra.mxu0 %v1783
      %v1998 = vpop.f32.mrf.mxu0
      %v1999 = vadd.f32 0.0, %v1998
      %v2000 = vpop.f32.mrf.mxu0
      %2001 = vmatprep.mubr.f32.mxu0 0.0
      %2002 = vmatmul.mubr.f32.gmra.mxu0 %v1786
      %v2003 = vpop.f32.mrf.mxu0
      %v2004 = vadd.f32 0.0, %v2003
      %v2005 = vpop.f32.mrf.mxu0
      %2006 = vmatprep.mubr.f32.mxu0 0.0
      %2007 = vmatmul.mubr.f32.gmra.mxu0 %v1789
      %v2008 = vpop.f32.mrf.mxu0
      %v2009 = vadd.f32 0.0, %v2008
      %v2010 = vpop.f32.mrf.mxu0
      %2011 = vmatprep.mubr.f32.mxu0 0.0
      %2012 = vmatmul.mubr.f32.gmra.mxu0 %v1792
      %v2013 = vpop.f32.mrf.mxu0
      %v2014 = vadd.f32 0.0, %v2013
      %v2015 = vpop.f32.mrf.mxu0
      %2016 = vmatprep.mubr.f32.mxu0 0.0
      %2017 = vmatmul.mubr.f32.gmra.mxu0 %v1795
      %v2018 = vpop.f32.mrf.mxu0
      %v2019 = vadd.f32 0.0, %v2018
      %v2020 = vpop.f32.mrf.mxu0
      %2021 = vdwg.mxu0
      %v2022 = vadd.f32 %v1635, %v1864
      %v2023 = vadd.f32 %v1636, %v1869
      %v2024 = vadd.f32 %v1637, %v1874
      %v2025 = vadd.f32 %v1638, %v1879
      %v2026 = vadd.f32 %v1639, %v1884
      %v2027 = vadd.f32 %v1640, %v1889
      %v2028 = vadd.f32 %v1641, %v1894
      %v2029 = vadd.f32 %v1642, %v1899
      %v2030 = vadd.f32 %v1643, %v1904
      %v2031 = vadd.f32 %v1644, %v1909
      %v2032 = vadd.f32 %v1645, %v1914
      %v2033 = vadd.f32 %v1646, %v1919
      %v2034 = vadd.f32 %v1647, %v1924
      %v2035 = vadd.f32 %v1648, %v1929
      %v2036 = vadd.f32 %v1649, %v1934
      %v2037 = vadd.f32 %v1650, %v1939
      %v2038 = vadd.f32 %v1651, %v1944
      %v2039 = vadd.f32 %v1652, %v1949
      %v2040 = vadd.f32 %v1653, %v1954
      %v2041 = vadd.f32 %v1654, %v1959
      %v2042 = vadd.f32 %v1655, %v1964
      %v2043 = vadd.f32 %v1656, %v1969
      %v2044 = vadd.f32 %v1657, %v1974
      %v2045 = vadd.f32 %v1658, %v1979
      %v2046 = vadd.f32 %v1659, %v1984
      %v2047 = vadd.f32 %v1660, %v1989
      %v2048 = vadd.f32 %v1661, %v1994
      %v2049 = vadd.f32 %v1662, %v1999
      %v2050 = vadd.f32 %v1663, %v2004
      %v2051 = vadd.f32 %v1664, %v2009
      %v2052 = vadd.f32 %v1665, %v2014
      %v2053 = vadd.f32 %v1666, %v2019
      %v2054 = vld [vmem:[%s1279 + $0x2] sm:$0xff]
      %v2055 = vld [vmem:[%s1279 + $0xa] sm:$0xff]
      %v2056 = vld [vmem:[%s1279 + $0x1a] sm:$0xff]
      %v2057 = vld [vmem:[%s1279 + $0x22] sm:$0xff]
      %v2058 = vld [vmem:[%s1279 + $0x32] sm:$0xff]
      %v2059 = vld [vmem:[%s1279 + $0x3a] sm:$0xff]
      %v2060 = vld [vmem:[%s1279 + $0x4a] sm:$0xff]
      %v2061 = vld [vmem:[%s1279 + $0x52] sm:$0xff]
      %v2062 = vld [vmem:[%s1279 + $0x62] sm:$0xff]
      %v2063 = vld [vmem:[%s1279 + $0x6a] sm:$0xff]
      %v2064 = vld [vmem:[%s1279 + $0x7a] sm:$0xff]
      %v2065 = vld [vmem:[%s1279 + $0x82] sm:$0xff]
      %v2066 = vld [vmem:[%s1279 + $0x92] sm:$0xff]
      %v2067 = vld [vmem:[%s1279 + $0x9a] sm:$0xff]
      %v2068 = vld [vmem:[%s1279 + $0xaa] sm:$0xff]
      %v2069 = vld [vmem:[%s1279 + $0xb2] sm:$0xff]
      %v2070 = vld [vmem:[%s1279 + $0xc2] sm:$0xff]
      %v2071 = vld [vmem:[%s1279 + $0xca] sm:$0xff]
      %v2072 = vld [vmem:[%s1279 + $0xda] sm:$0xff]
      %v2073 = vld [vmem:[%s1279 + $0xe2] sm:$0xff]
      %v2074 = vld [vmem:[%s1279 + $0xf2] sm:$0xff]
      %v2075 = vld [vmem:[%s1279 + $0xfa] sm:$0xff]
      %v2076 = vld [vmem:[%s1279 + $0x10a] sm:$0xff]
      %v2077 = vld [vmem:[%s1279 + $0x112] sm:$0xff]
      %v2078 = vld [vmem:[%s1279 + $0x122] sm:$0xff]
      %v2079 = vld [vmem:[%s1279 + $0x12a] sm:$0xff]
      %v2080 = vld [vmem:[%s1279 + $0x13a] sm:$0xff]
      %v2081 = vld [vmem:[%s1279 + $0x142] sm:$0xff]
      %v2082 = vld [vmem:[%s1279 + $0x152] sm:$0xff]
      %v2083 = vld [vmem:[%s1279 + $0x15a] sm:$0xff]
      %v2084 = vld [vmem:[%s1279 + $0x16a] sm:$0xff]
      %v2085 = vld [vmem:[%s1279 + $0x172] sm:$0xff]
      %s2086 = scalar_lea.vmem %s1, 40
      %v2087 = vld [vmem:[%s2086] sm:$0xff]
      %v2089 = vsel %vm249, %v2054, 0
      %v2092 = vsel %vm249, %v2055, 0
      %v2095 = vsel %vm249, %v2056, 0
      %v2098 = vsel %vm249, %v2057, 0
      %v2101 = vsel %vm249, %v2058, 0
      %v2104 = vsel %vm249, %v2059, 0
      %v2107 = vsel %vm249, %v2060, 0
      %v2110 = vsel %vm249, %v2061, 0
      %v2113 = vsel %vm249, %v2062, 0
      %v2116 = vsel %vm249, %v2063, 0
      %v2119 = vsel %vm249, %v2064, 0
      %v2122 = vsel %vm249, %v2065, 0
      %v2125 = vsel %vm249, %v2066, 0
      %v2128 = vsel %vm249, %v2067, 0
      %v2131 = vsel %vm249, %v2068, 0
      %v2134 = vsel %vm249, %v2069, 0
      %v2137 = vsel %vm249, %v2070, 0
      %v2140 = vsel %vm249, %v2071, 0
      %v2143 = vsel %vm249, %v2072, 0
      %v2146 = vsel %vm249, %v2073, 0
      %v2149 = vsel %vm249, %v2074, 0
      %v2152 = vsel %vm249, %v2075, 0
      %v2155 = vsel %vm249, %v2076, 0
      %v2158 = vsel %vm249, %v2077, 0
      %v2161 = vsel %vm249, %v2078, 0
      %v2164 = vsel %vm249, %v2079, 0
      %v2167 = vsel %vm249, %v2080, 0
      %v2170 = vsel %vm249, %v2081, 0
      %v2173 = vsel %vm249, %v2082, 0
      %v2176 = vsel %vm249, %v2083, 0
      %v2179 = vsel %vm249, %v2084, 0
      %v2182 = vsel %vm249, %v2085, 0
      %2184 = vmatprep.subr.mxu0 0.0
      %2185 = vmatpush1.msra.mxu0 0.0
      %2186 = vmatprep.subr.mxu0 0.0
      %2187 = vmatpush1.msra.mxu0 0.0
      %2188 = vmatprep.subr.mxu0 0.0
      %2189 = vmatpush1.msra.mxu0 0.0
      %2190 = vmatprep.subr.mxu0 0.0
      %2191 = vmatpush1.msra.mxu0 0.0
      %2192 = vmatprep.subr.mxu0 0.0
      %2193 = vmatpush1.msra.mxu0 0.0
      %2194 = vmatprep.subr.mxu0 0.0
      %2195 = vmatpush1.msra.mxu0 0.0
      %2196 = vmatprep.subr.mxu0 0.0
      %2197 = vmatpush1.msra.mxu0 0.0
      %2198 = vmatprep.subr.mxu0 0.0
      %2199 = vmatpush1.msra.mxu0 0.0
      %2200 = vmatprep.subr.mxu0 0.0
      %2201 = vmatpush1.msra.mxu0 0.0
      %2202 = vmatprep.subr.mxu0 0.0
      %2203 = vmatpush1.msra.mxu0 0.0
      %2204 = vmatprep.subr.mxu0 0.0
      %2205 = vmatpush1.msra.mxu0 0.0
      %2206 = vmatprep.subr.mxu0 0.0
      %2207 = vmatpush1.msra.mxu0 0.0
      %2208 = vmatprep.subr.mxu0 0.0
      %2209 = vmatpush1.msra.mxu0 0.0
      %2210 = vmatprep.subr.mxu0 0.0
      %2211 = vmatpush1.msra.mxu0 0.0
      %2212 = vmatprep.subr.mxu0 0.0
      %2213 = vmatpush1.msra.mxu0 0.0
      %2214 = vmatprep.subr.mxu0 0.0
      %2215 = vmatpush1.msra.mxu0 %v2087
      %2216 = vmatprep.subr.mxu0 0.0
      %2217 = vmatpush2.msra.mxu0 0.0
      %2218 = vmatprep.subr.mxu0 0.0
      %2219 = vmatpush2.msra.mxu0 0.0
      %2220 = vmatprep.subr.mxu0 0.0
      %2221 = vmatpush2.msra.mxu0 0.0
      %2222 = vmatprep.subr.mxu0 0.0
      %2223 = vmatpush2.msra.mxu0 0.0
      %2224 = vmatprep.subr.mxu0 0.0
      %2225 = vmatpush2.msra.mxu0 0.0
      %2226 = vmatprep.subr.mxu0 0.0
      %2227 = vmatpush2.msra.mxu0 0.0
      %2228 = vmatprep.subr.mxu0 0.0
      %2229 = vmatpush2.msra.mxu0 0.0
      %2230 = vmatprep.subr.mxu0 0.0
      %2231 = vmatpush2.msra.mxu0 0.0
      %2232 = vmatprep.subr.mxu0 0.0
      %2233 = vmatpush2.msra.mxu0 0.0
      %2234 = vmatprep.subr.mxu0 0.0
      %2235 = vmatpush2.msra.mxu0 0.0
      %2236 = vmatprep.subr.mxu0 0.0
      %2237 = vmatpush2.msra.mxu0 0.0
      %2238 = vmatprep.subr.mxu0 0.0
      %2239 = vmatpush2.msra.mxu0 0.0
      %2240 = vmatprep.subr.mxu0 0.0
      %2241 = vmatpush2.msra.mxu0 0.0
      %2242 = vmatprep.subr.mxu0 0.0
      %2243 = vmatpush2.msra.mxu0 0.0
      %2244 = vmatprep.subr.mxu0 0.0
      %2245 = vmatpush2.msra.mxu0 0.0
      %2246 = vmatprep.subr.mxu0 0.0
      %2247 = vmatpush2.msra.mxu0 0.0
      %2248 = vmatprep.mubr.f32.mxu0 0.0
      %2249 = vmatmul.mubr.f32.gmra.mxu0 %v2089
      %v2250 = vpop.f32.mrf.mxu0
      %v2251 = vadd.f32 0.0, %v2250
      %v2252 = vpop.f32.mrf.mxu0
      %2253 = vmatprep.mubr.f32.mxu0 0.0
      %2254 = vmatmul.mubr.f32.gmra.mxu0 %v2092
      %v2255 = vpop.f32.mrf.mxu0
      %v2256 = vadd.f32 0.0, %v2255
      %v2257 = vpop.f32.mrf.mxu0
      %2258 = vmatprep.mubr.f32.mxu0 0.0
      %2259 = vmatmul.mubr.f32.gmra.mxu0 %v2095
      %v2260 = vpop.f32.mrf.mxu0
      %v2261 = vadd.f32 0.0, %v2260
      %v2262 = vpop.f32.mrf.mxu0
      %2263 = vmatprep.mubr.f32.mxu0 0.0
      %2264 = vmatmul.mubr.f32.gmra.mxu0 %v2098
      %v2265 = vpop.f32.mrf.mxu0
      %v2266 = vadd.f32 0.0, %v2265
      %v2267 = vpop.f32.mrf.mxu0
      %2268 = vmatprep.mubr.f32.mxu0 0.0
      %2269 = vmatmul.mubr.f32.gmra.mxu0 %v2101
      %v2270 = vpop.f32.mrf.mxu0
      %v2271 = vadd.f32 0.0, %v2270
      %v2272 = vpop.f32.mrf.mxu0
      %2273 = vmatprep.mubr.f32.mxu0 0.0
      %2274 = vmatmul.mubr.f32.gmra.mxu0 %v2104
      %v2275 = vpop.f32.mrf.mxu0
      %v2276 = vadd.f32 0.0, %v2275
      %v2277 = vpop.f32.mrf.mxu0
      %2278 = vmatprep.mubr.f32.mxu0 0.0
      %2279 = vmatmul.mubr.f32.gmra.mxu0 %v2107
      %v2280 = vpop.f32.mrf.mxu0
      %v2281 = vadd.f32 0.0, %v2280
      %v2282 = vpop.f32.mrf.mxu0
      %2283 = vmatprep.mubr.f32.mxu0 0.0
      %2284 = vmatmul.mubr.f32.gmra.mxu0 %v2110
      %v2285 = vpop.f32.mrf.mxu0
      %v2286 = vadd.f32 0.0, %v2285
      %v2287 = vpop.f32.mrf.mxu0
      %2288 = vmatprep.mubr.f32.mxu0 0.0
      %2289 = vmatmul.mubr.f32.gmra.mxu0 %v2113
      %v2290 = vpop.f32.mrf.mxu0
      %v2291 = vadd.f32 0.0, %v2290
      %v2292 = vpop.f32.mrf.mxu0
      %2293 = vmatprep.mubr.f32.mxu0 0.0
      %2294 = vmatmul.mubr.f32.gmra.mxu0 %v2116
      %v2295 = vpop.f32.mrf.mxu0
      %v2296 = vadd.f32 0.0, %v2295
      %v2297 = vpop.f32.mrf.mxu0
      %2298 = vmatprep.mubr.f32.mxu0 0.0
      %2299 = vmatmul.mubr.f32.gmra.mxu0 %v2119
      %v2300 = vpop.f32.mrf.mxu0
      %v2301 = vadd.f32 0.0, %v2300
      %v2302 = vpop.f32.mrf.mxu0
      %2303 = vmatprep.mubr.f32.mxu0 0.0
      %2304 = vmatmul.mubr.f32.gmra.mxu0 %v2122
      %v2305 = vpop.f32.mrf.mxu0
      %v2306 = vadd.f32 0.0, %v2305
      %v2307 = vpop.f32.mrf.mxu0
      %2308 = vmatprep.mubr.f32.mxu0 0.0
      %2309 = vmatmul.mubr.f32.gmra.mxu0 %v2125
      %v2310 = vpop.f32.mrf.mxu0
      %v2311 = vadd.f32 0.0, %v2310
      %v2312 = vpop.f32.mrf.mxu0
      %2313 = vmatprep.mubr.f32.mxu0 0.0
      %2314 = vmatmul.mubr.f32.gmra.mxu0 %v2128
      %v2315 = vpop.f32.mrf.mxu0
      %v2316 = vadd.f32 0.0, %v2315
      %v2317 = vpop.f32.mrf.mxu0
      %2318 = vmatprep.mubr.f32.mxu0 0.0
      %2319 = vmatmul.mubr.f32.gmra.mxu0 %v2131
      %v2320 = vpop.f32.mrf.mxu0
      %v2321 = vadd.f32 0.0, %v2320
      %v2322 = vpop.f32.mrf.mxu0
      %2323 = vmatprep.mubr.f32.mxu0 0.0
      %2324 = vmatmul.mubr.f32.gmra.mxu0 %v2134
      %v2325 = vpop.f32.mrf.mxu0
      %v2326 = vadd.f32 0.0, %v2325
      %v2327 = vpop.f32.mrf.mxu0
      %2328 = vmatprep.mubr.f32.mxu0 0.0
      %2329 = vmatmul.mubr.f32.gmra.mxu0 %v2137
      %v2330 = vpop.f32.mrf.mxu0
      %v2331 = vadd.f32 0.0, %v2330
      %v2332 = vpop.f32.mrf.mxu0
      %2333 = vmatprep.mubr.f32.mxu0 0.0
      %2334 = vmatmul.mubr.f32.gmra.mxu0 %v2140
      %v2335 = vpop.f32.mrf.mxu0
      %v2336 = vadd.f32 0.0, %v2335
      %v2337 = vpop.f32.mrf.mxu0
      %2338 = vmatprep.mubr.f32.mxu0 0.0
      %2339 = vmatmul.mubr.f32.gmra.mxu0 %v2143
      %v2340 = vpop.f32.mrf.mxu0
      %v2341 = vadd.f32 0.0, %v2340
      %v2342 = vpop.f32.mrf.mxu0
      %2343 = vmatprep.mubr.f32.mxu0 0.0
      %2344 = vmatmul.mubr.f32.gmra.mxu0 %v2146
      %v2345 = vpop.f32.mrf.mxu0
      %v2346 = vadd.f32 0.0, %v2345
      %v2347 = vpop.f32.mrf.mxu0
      %2348 = vmatprep.mubr.f32.mxu0 0.0
      %2349 = vmatmul.mubr.f32.gmra.mxu0 %v2149
      %v2350 = vpop.f32.mrf.mxu0
      %v2351 = vadd.f32 0.0, %v2350
      %v2352 = vpop.f32.mrf.mxu0
      %2353 = vmatprep.mubr.f32.mxu0 0.0
      %2354 = vmatmul.mubr.f32.gmra.mxu0 %v2152
      %v2355 = vpop.f32.mrf.mxu0
      %v2356 = vadd.f32 0.0, %v2355
      %v2357 = vpop.f32.mrf.mxu0
      %2358 = vmatprep.mubr.f32.mxu0 0.0
      %2359 = vmatmul.mubr.f32.gmra.mxu0 %v2155
      %v2360 = vpop.f32.mrf.mxu0
      %v2361 = vadd.f32 0.0, %v2360
      %v2362 = vpop.f32.mrf.mxu0
      %2363 = vmatprep.mubr.f32.mxu0 0.0
      %2364 = vmatmul.mubr.f32.gmra.mxu0 %v2158
      %v2365 = vpop.f32.mrf.mxu0
      %v2366 = vadd.f32 0.0, %v2365
      %v2367 = vpop.f32.mrf.mxu0
      %2368 = vmatprep.mubr.f32.mxu0 0.0
      %2369 = vmatmul.mubr.f32.gmra.mxu0 %v2161
      %v2370 = vpop.f32.mrf.mxu0
      %v2371 = vadd.f32 0.0, %v2370
      %v2372 = vpop.f32.mrf.mxu0
      %2373 = vmatprep.mubr.f32.mxu0 0.0
      %2374 = vmatmul.mubr.f32.gmra.mxu0 %v2164
      %v2375 = vpop.f32.mrf.mxu0
      %v2376 = vadd.f32 0.0, %v2375
      %v2377 = vpop.f32.mrf.mxu0
      %2378 = vmatprep.mubr.f32.mxu0 0.0
      %2379 = vmatmul.mubr.f32.gmra.mxu0 %v2167
      %v2380 = vpop.f32.mrf.mxu0
      %v2381 = vadd.f32 0.0, %v2380
      %v2382 = vpop.f32.mrf.mxu0
      %2383 = vmatprep.mubr.f32.mxu0 0.0
      %2384 = vmatmul.mubr.f32.gmra.mxu0 %v2170
      %v2385 = vpop.f32.mrf.mxu0
      %v2386 = vadd.f32 0.0, %v2385
      %v2387 = vpop.f32.mrf.mxu0
      %2388 = vmatprep.mubr.f32.mxu0 0.0
      %2389 = vmatmul.mubr.f32.gmra.mxu0 %v2173
      %v2390 = vpop.f32.mrf.mxu0
      %v2391 = vadd.f32 0.0, %v2390
      %v2392 = vpop.f32.mrf.mxu0
      %2393 = vmatprep.mubr.f32.mxu0 0.0
      %2394 = vmatmul.mubr.f32.gmra.mxu0 %v2176
      %v2395 = vpop.f32.mrf.mxu0
      %v2396 = vadd.f32 0.0, %v2395
      %v2397 = vpop.f32.mrf.mxu0
      %2398 = vmatprep.mubr.f32.mxu0 0.0
      %2399 = vmatmul.mubr.f32.gmra.mxu0 %v2179
      %v2400 = vpop.f32.mrf.mxu0
      %v2401 = vadd.f32 0.0, %v2400
      %v2402 = vpop.f32.mrf.mxu0
      %2403 = vmatprep.mubr.f32.mxu0 0.0
      %2404 = vmatmul.mubr.f32.gmra.mxu0 %v2182
      %v2405 = vpop.f32.mrf.mxu0
      %v2406 = vadd.f32 0.0, %v2405
      %v2407 = vpop.f32.mrf.mxu0
      %2408 = vdwg.mxu0
      %v2409 = vadd.f32 %v2022, %v2251
      %v2410 = vadd.f32 %v2023, %v2256
      %v2411 = vadd.f32 %v2024, %v2261
      %v2412 = vadd.f32 %v2025, %v2266
      %v2413 = vadd.f32 %v2026, %v2271
      %v2414 = vadd.f32 %v2027, %v2276
      %v2415 = vadd.f32 %v2028, %v2281
      %v2416 = vadd.f32 %v2029, %v2286
      %v2417 = vadd.f32 %v2030, %v2291
      %v2418 = vadd.f32 %v2031, %v2296
      %v2419 = vadd.f32 %v2032, %v2301
      %v2420 = vadd.f32 %v2033, %v2306
      %v2421 = vadd.f32 %v2034, %v2311
      %v2422 = vadd.f32 %v2035, %v2316
      %v2423 = vadd.f32 %v2036, %v2321
      %v2424 = vadd.f32 %v2037, %v2326
      %v2425 = vadd.f32 %v2038, %v2331
      %v2426 = vadd.f32 %v2039, %v2336
      %v2427 = vadd.f32 %v2040, %v2341
      %v2428 = vadd.f32 %v2041, %v2346
      %v2429 = vadd.f32 %v2042, %v2351
      %v2430 = vadd.f32 %v2043, %v2356
      %v2431 = vadd.f32 %v2044, %v2361
      %v2432 = vadd.f32 %v2045, %v2366
      %v2433 = vadd.f32 %v2046, %v2371
      %v2434 = vadd.f32 %v2047, %v2376
      %v2435 = vadd.f32 %v2048, %v2381
      %v2436 = vadd.f32 %v2049, %v2386
      %v2437 = vadd.f32 %v2050, %v2391
      %v2438 = vadd.f32 %v2051, %v2396
      %v2439 = vadd.f32 %v2052, %v2401
      %v2440 = vadd.f32 %v2053, %v2406
      %s2441 = scalar_lea.vmem %s172, 48
      %v2442 = vld [vmem:[%s2441] sm:$0xff]
      %v2443 = vld [vmem:[%s2441 + $0x8] sm:$0xff]
      %v2444 = vld [vmem:[%s2441 + $0x18] sm:$0xff]
      %v2445 = vld [vmem:[%s2441 + $0x20] sm:$0xff]
      %v2446 = vld [vmem:[%s2441 + $0x30] sm:$0xff]
      %v2447 = vld [vmem:[%s2441 + $0x38] sm:$0xff]
      %v2448 = vld [vmem:[%s2441 + $0x48] sm:$0xff]
      %v2449 = vld [vmem:[%s2441 + $0x50] sm:$0xff]
      %v2450 = vld [vmem:[%s2441 + $0x60] sm:$0xff]
      %v2451 = vld [vmem:[%s2441 + $0x68] sm:$0xff]
      %v2452 = vld [vmem:[%s2441 + $0x78] sm:$0xff]
      %v2453 = vld [vmem:[%s2441 + $0x80] sm:$0xff]
      %v2454 = vld [vmem:[%s2441 + $0x90] sm:$0xff]
      %v2455 = vld [vmem:[%s2441 + $0x98] sm:$0xff]
      %v2456 = vld [vmem:[%s2441 + $0xa8] sm:$0xff]
      %v2457 = vld [vmem:[%s2441 + $0xb0] sm:$0xff]
      %v2458 = vld [vmem:[%s2441 + $0xc0] sm:$0xff]
      %v2459 = vld [vmem:[%s2441 + $0xc8] sm:$0xff]
      %v2460 = vld [vmem:[%s2441 + $0xd8] sm:$0xff]
      %v2461 = vld [vmem:[%s2441 + $0xe0] sm:$0xff]
      %v2462 = vld [vmem:[%s2441 + $0xf0] sm:$0xff]
      %v2463 = vld [vmem:[%s2441 + $0xf8] sm:$0xff]
      %v2464 = vld [vmem:[%s2441 + $0x108] sm:$0xff]
      %v2465 = vld [vmem:[%s2441 + $0x110] sm:$0xff]
      %v2466 = vld [vmem:[%s2441 + $0x120] sm:$0xff]
      %v2467 = vld [vmem:[%s2441 + $0x128] sm:$0xff]
      %v2468 = vld [vmem:[%s2441 + $0x138] sm:$0xff]
      %v2469 = vld [vmem:[%s2441 + $0x140] sm:$0xff]
      %v2470 = vld [vmem:[%s2441 + $0x150] sm:$0xff]
      %v2471 = vld [vmem:[%s2441 + $0x158] sm:$0xff]
      %v2472 = vld [vmem:[%s2441 + $0x168] sm:$0xff]
      %v2473 = vld [vmem:[%s2441 + $0x170] sm:$0xff]
      %s2474 = scalar_lea.vmem %s1, 48
      %v2475 = vld [vmem:[%s2474] sm:$0xff]
      %v2477 = vsel %vm249, %v2442, 0
      %v2480 = vsel %vm249, %v2443, 0
      %v2483 = vsel %vm249, %v2444, 0
      %v2486 = vsel %vm249, %v2445, 0
      %v2489 = vsel %vm249, %v2446, 0
      %v2492 = vsel %vm249, %v2447, 0
      %v2495 = vsel %vm249, %v2448, 0
      %v2498 = vsel %vm249, %v2449, 0
      %v2501 = vsel %vm249, %v2450, 0
      %v2504 = vsel %vm249, %v2451, 0
      %v2507 = vsel %vm249, %v2452, 0
      %v2510 = vsel %vm249, %v2453, 0
      %v2513 = vsel %vm249, %v2454, 0
      %v2516 = vsel %vm249, %v2455, 0
      %v2519 = vsel %vm249, %v2456, 0
      %v2522 = vsel %vm249, %v2457, 0
      %v2525 = vsel %vm249, %v2458, 0
      %v2528 = vsel %vm249, %v2459, 0
      %v2531 = vsel %vm249, %v2460, 0
      %v2534 = vsel %vm249, %v2461, 0
      %v2537 = vsel %vm249, %v2462, 0
      %v2540 = vsel %vm249, %v2463, 0
      %v2543 = vsel %vm249, %v2464, 0
      %v2546 = vsel %vm249, %v2465, 0
      %v2549 = vsel %vm249, %v2466, 0
      %v2552 = vsel %vm249, %v2467, 0
      %v2555 = vsel %vm249, %v2468, 0
      %v2558 = vsel %vm249, %v2469, 0
      %v2561 = vsel %vm249, %v2470, 0
      %v2564 = vsel %vm249, %v2471, 0
      %v2567 = vsel %vm249, %v2472, 0
      %v2570 = vsel %vm249, %v2473, 0
      %2572 = vmatprep.subr.mxu0 0.0
      %2573 = vmatpush1.msra.mxu0 0.0
      %2574 = vmatprep.subr.mxu0 0.0
      %2575 = vmatpush1.msra.mxu0 0.0
      %2576 = vmatprep.subr.mxu0 0.0
      %2577 = vmatpush1.msra.mxu0 0.0
      %2578 = vmatprep.subr.mxu0 0.0
      %2579 = vmatpush1.msra.mxu0 0.0
      %2580 = vmatprep.subr.mxu0 0.0
      %2581 = vmatpush1.msra.mxu0 0.0
      %2582 = vmatprep.subr.mxu0 0.0
      %2583 = vmatpush1.msra.mxu0 0.0
      %2584 = vmatprep.subr.mxu0 0.0
      %2585 = vmatpush1.msra.mxu0 0.0
      %2586 = vmatprep.subr.mxu0 0.0
      %2587 = vmatpush1.msra.mxu0 0.0
      %2588 = vmatprep.subr.mxu0 0.0
      %2589 = vmatpush1.msra.mxu0 0.0
      %2590 = vmatprep.subr.mxu0 0.0
      %2591 = vmatpush1.msra.mxu0 0.0
      %2592 = vmatprep.subr.mxu0 0.0
      %2593 = vmatpush1.msra.mxu0 0.0
      %2594 = vmatprep.subr.mxu0 0.0
      %2595 = vmatpush1.msra.mxu0 0.0
      %2596 = vmatprep.subr.mxu0 0.0
      %2597 = vmatpush1.msra.mxu0 0.0
      %2598 = vmatprep.subr.mxu0 0.0
      %2599 = vmatpush1.msra.mxu0 0.0
      %2600 = vmatprep.subr.mxu0 0.0
      %2601 = vmatpush1.msra.mxu0 0.0
      %2602 = vmatprep.subr.mxu0 0.0
      %2603 = vmatpush1.msra.mxu0 %v2475
      %2604 = vmatprep.subr.mxu0 0.0
      %2605 = vmatpush2.msra.mxu0 0.0
      %2606 = vmatprep.subr.mxu0 0.0
      %2607 = vmatpush2.msra.mxu0 0.0
      %2608 = vmatprep.subr.mxu0 0.0
      %2609 = vmatpush2.msra.mxu0 0.0
      %2610 = vmatprep.subr.mxu0 0.0
      %2611 = vmatpush2.msra.mxu0 0.0
      %2612 = vmatprep.subr.mxu0 0.0
      %2613 = vmatpush2.msra.mxu0 0.0
      %2614 = vmatprep.subr.mxu0 0.0
      %2615 = vmatpush2.msra.mxu0 0.0
      %2616 = vmatprep.subr.mxu0 0.0
      %2617 = vmatpush2.msra.mxu0 0.0
      %2618 = vmatprep.subr.mxu0 0.0
      %2619 = vmatpush2.msra.mxu0 0.0
      %2620 = vmatprep.subr.mxu0 0.0
      %2621 = vmatpush2.msra.mxu0 0.0
      %2622 = vmatprep.subr.mxu0 0.0
      %2623 = vmatpush2.msra.mxu0 0.0
      %2624 = vmatprep.subr.mxu0 0.0
      %2625 = vmatpush2.msra.mxu0 0.0
      %2626 = vmatprep.subr.mxu0 0.0
      %2627 = vmatpush2.msra.mxu0 0.0
      %2628 = vmatprep.subr.mxu0 0.0
      %2629 = vmatpush2.msra.mxu0 0.0
      %2630 = vmatprep.subr.mxu0 0.0
      %2631 = vmatpush2.msra.mxu0 0.0
      %2632 = vmatprep.subr.mxu0 0.0
      %2633 = vmatpush2.msra.mxu0 0.0
      %2634 = vmatprep.subr.mxu0 0.0
      %2635 = vmatpush2.msra.mxu0 0.0
      %2636 = vmatprep.mubr.f32.mxu0 0.0
      %2637 = vmatmul.mubr.f32.gmra.mxu0 %v2477
      %v2638 = vpop.f32.mrf.mxu0
      %v2639 = vadd.f32 0.0, %v2638
      %v2640 = vpop.f32.mrf.mxu0
      %2641 = vmatprep.mubr.f32.mxu0 0.0
      %2642 = vmatmul.mubr.f32.gmra.mxu0 %v2480
      %v2643 = vpop.f32.mrf.mxu0
      %v2644 = vadd.f32 0.0, %v2643
      %v2645 = vpop.f32.mrf.mxu0
      %2646 = vmatprep.mubr.f32.mxu0 0.0
      %2647 = vmatmul.mubr.f32.gmra.mxu0 %v2483
      %v2648 = vpop.f32.mrf.mxu0
      %v2649 = vadd.f32 0.0, %v2648
      %v2650 = vpop.f32.mrf.mxu0
      %2651 = vmatprep.mubr.f32.mxu0 0.0
      %2652 = vmatmul.mubr.f32.gmra.mxu0 %v2486
      %v2653 = vpop.f32.mrf.mxu0
      %v2654 = vadd.f32 0.0, %v2653
      %v2655 = vpop.f32.mrf.mxu0
      %2656 = vmatprep.mubr.f32.mxu0 0.0
      %2657 = vmatmul.mubr.f32.gmra.mxu0 %v2489
      %v2658 = vpop.f32.mrf.mxu0
      %v2659 = vadd.f32 0.0, %v2658
      %v2660 = vpop.f32.mrf.mxu0
      %2661 = vmatprep.mubr.f32.mxu0 0.0
      %2662 = vmatmul.mubr.f32.gmra.mxu0 %v2492
      %v2663 = vpop.f32.mrf.mxu0
      %v2664 = vadd.f32 0.0, %v2663
      %v2665 = vpop.f32.mrf.mxu0
      %2666 = vmatprep.mubr.f32.mxu0 0.0
      %2667 = vmatmul.mubr.f32.gmra.mxu0 %v2495
      %v2668 = vpop.f32.mrf.mxu0
      %v2669 = vadd.f32 0.0, %v2668
      %v2670 = vpop.f32.mrf.mxu0
      %2671 = vmatprep.mubr.f32.mxu0 0.0
      %2672 = vmatmul.mubr.f32.gmra.mxu0 %v2498
      %v2673 = vpop.f32.mrf.mxu0
      %v2674 = vadd.f32 0.0, %v2673
      %v2675 = vpop.f32.mrf.mxu0
      %2676 = vmatprep.mubr.f32.mxu0 0.0
      %2677 = vmatmul.mubr.f32.gmra.mxu0 %v2501
      %v2678 = vpop.f32.mrf.mxu0
      %v2679 = vadd.f32 0.0, %v2678
      %v2680 = vpop.f32.mrf.mxu0
      %2681 = vmatprep.mubr.f32.mxu0 0.0
      %2682 = vmatmul.mubr.f32.gmra.mxu0 %v2504
      %v2683 = vpop.f32.mrf.mxu0
      %v2684 = vadd.f32 0.0, %v2683
      %v2685 = vpop.f32.mrf.mxu0
      %2686 = vmatprep.mubr.f32.mxu0 0.0
      %2687 = vmatmul.mubr.f32.gmra.mxu0 %v2507
      %v2688 = vpop.f32.mrf.mxu0
      %v2689 = vadd.f32 0.0, %v2688
      %v2690 = vpop.f32.mrf.mxu0
      %2691 = vmatprep.mubr.f32.mxu0 0.0
      %2692 = vmatmul.mubr.f32.gmra.mxu0 %v2510
      %v2693 = vpop.f32.mrf.mxu0
      %v2694 = vadd.f32 0.0, %v2693
      %v2695 = vpop.f32.mrf.mxu0
      %2696 = vmatprep.mubr.f32.mxu0 0.0
      %2697 = vmatmul.mubr.f32.gmra.mxu0 %v2513
      %v2698 = vpop.f32.mrf.mxu0
      %v2699 = vadd.f32 0.0, %v2698
      %v2700 = vpop.f32.mrf.mxu0
      %2701 = vmatprep.mubr.f32.mxu0 0.0
      %2702 = vmatmul.mubr.f32.gmra.mxu0 %v2516
      %v2703 = vpop.f32.mrf.mxu0
      %v2704 = vadd.f32 0.0, %v2703
      %v2705 = vpop.f32.mrf.mxu0
      %2706 = vmatprep.mubr.f32.mxu0 0.0
      %2707 = vmatmul.mubr.f32.gmra.mxu0 %v2519
      %v2708 = vpop.f32.mrf.mxu0
      %v2709 = vadd.f32 0.0, %v2708
      %v2710 = vpop.f32.mrf.mxu0
      %2711 = vmatprep.mubr.f32.mxu0 0.0
      %2712 = vmatmul.mubr.f32.gmra.mxu0 %v2522
      %v2713 = vpop.f32.mrf.mxu0
      %v2714 = vadd.f32 0.0, %v2713
      %v2715 = vpop.f32.mrf.mxu0
      %2716 = vmatprep.mubr.f32.mxu0 0.0
      %2717 = vmatmul.mubr.f32.gmra.mxu0 %v2525
      %v2718 = vpop.f32.mrf.mxu0
      %v2719 = vadd.f32 0.0, %v2718
      %v2720 = vpop.f32.mrf.mxu0
      %2721 = vmatprep.mubr.f32.mxu0 0.0
      %2722 = vmatmul.mubr.f32.gmra.mxu0 %v2528
      %v2723 = vpop.f32.mrf.mxu0
      %v2724 = vadd.f32 0.0, %v2723
      %v2725 = vpop.f32.mrf.mxu0
      %2726 = vmatprep.mubr.f32.mxu0 0.0
      %2727 = vmatmul.mubr.f32.gmra.mxu0 %v2531
      %v2728 = vpop.f32.mrf.mxu0
      %v2729 = vadd.f32 0.0, %v2728
      %v2730 = vpop.f32.mrf.mxu0
      %2731 = vmatprep.mubr.f32.mxu0 0.0
      %2732 = vmatmul.mubr.f32.gmra.mxu0 %v2534
      %v2733 = vpop.f32.mrf.mxu0
      %v2734 = vadd.f32 0.0, %v2733
      %v2735 = vpop.f32.mrf.mxu0
      %2736 = vmatprep.mubr.f32.mxu0 0.0
      %2737 = vmatmul.mubr.f32.gmra.mxu0 %v2537
      %v2738 = vpop.f32.mrf.mxu0
      %v2739 = vadd.f32 0.0, %v2738
      %v2740 = vpop.f32.mrf.mxu0
      %2741 = vmatprep.mubr.f32.mxu0 0.0
      %2742 = vmatmul.mubr.f32.gmra.mxu0 %v2540
      %v2743 = vpop.f32.mrf.mxu0
      %v2744 = vadd.f32 0.0, %v2743
      %v2745 = vpop.f32.mrf.mxu0
      %2746 = vmatprep.mubr.f32.mxu0 0.0
      %2747 = vmatmul.mubr.f32.gmra.mxu0 %v2543
      %v2748 = vpop.f32.mrf.mxu0
      %v2749 = vadd.f32 0.0, %v2748
      %v2750 = vpop.f32.mrf.mxu0
      %2751 = vmatprep.mubr.f32.mxu0 0.0
      %2752 = vmatmul.mubr.f32.gmra.mxu0 %v2546
      %v2753 = vpop.f32.mrf.mxu0
      %v2754 = vadd.f32 0.0, %v2753
      %v2755 = vpop.f32.mrf.mxu0
      %2756 = vmatprep.mubr.f32.mxu0 0.0
      %2757 = vmatmul.mubr.f32.gmra.mxu0 %v2549
      %v2758 = vpop.f32.mrf.mxu0
      %v2759 = vadd.f32 0.0, %v2758
      %v2760 = vpop.f32.mrf.mxu0
      %2761 = vmatprep.mubr.f32.mxu0 0.0
      %2762 = vmatmul.mubr.f32.gmra.mxu0 %v2552
      %v2763 = vpop.f32.mrf.mxu0
      %v2764 = vadd.f32 0.0, %v2763
      %v2765 = vpop.f32.mrf.mxu0
      %2766 = vmatprep.mubr.f32.mxu0 0.0
      %2767 = vmatmul.mubr.f32.gmra.mxu0 %v2555
      %v2768 = vpop.f32.mrf.mxu0
      %v2769 = vadd.f32 0.0, %v2768
      %v2770 = vpop.f32.mrf.mxu0
      %2771 = vmatprep.mubr.f32.mxu0 0.0
      %2772 = vmatmul.mubr.f32.gmra.mxu0 %v2558
      %v2773 = vpop.f32.mrf.mxu0
      %v2774 = vadd.f32 0.0, %v2773
      %v2775 = vpop.f32.mrf.mxu0
      %2776 = vmatprep.mubr.f32.mxu0 0.0
      %2777 = vmatmul.mubr.f32.gmra.mxu0 %v2561
      %v2778 = vpop.f32.mrf.mxu0
      %v2779 = vadd.f32 0.0, %v2778
      %v2780 = vpop.f32.mrf.mxu0
      %2781 = vmatprep.mubr.f32.mxu0 0.0
      %2782 = vmatmul.mubr.f32.gmra.mxu0 %v2564
      %v2783 = vpop.f32.mrf.mxu0
      %v2784 = vadd.f32 0.0, %v2783
      %v2785 = vpop.f32.mrf.mxu0
      %2786 = vmatprep.mubr.f32.mxu0 0.0
      %2787 = vmatmul.mubr.f32.gmra.mxu0 %v2567
      %v2788 = vpop.f32.mrf.mxu0
      %v2789 = vadd.f32 0.0, %v2788
      %v2790 = vpop.f32.mrf.mxu0
      %2791 = vmatprep.mubr.f32.mxu0 0.0
      %2792 = vmatmul.mubr.f32.gmra.mxu0 %v2570
      %v2793 = vpop.f32.mrf.mxu0
      %v2794 = vadd.f32 0.0, %v2793
      %v2795 = vpop.f32.mrf.mxu0
      %2796 = vdwg.mxu0
      %v2797 = vadd.f32 %v2409, %v2639
      %v2798 = vadd.f32 %v2410, %v2644
      %v2799 = vadd.f32 %v2411, %v2649
      %v2800 = vadd.f32 %v2412, %v2654
      %v2801 = vadd.f32 %v2413, %v2659
      %v2802 = vadd.f32 %v2414, %v2664
      %v2803 = vadd.f32 %v2415, %v2669
      %v2804 = vadd.f32 %v2416, %v2674
      %v2805 = vadd.f32 %v2417, %v2679
      %v2806 = vadd.f32 %v2418, %v2684
      %v2807 = vadd.f32 %v2419, %v2689
      %v2808 = vadd.f32 %v2420, %v2694
      %v2809 = vadd.f32 %v2421, %v2699
      %v2810 = vadd.f32 %v2422, %v2704
      %v2811 = vadd.f32 %v2423, %v2709
      %v2812 = vadd.f32 %v2424, %v2714
      %v2813 = vadd.f32 %v2425, %v2719
      %v2814 = vadd.f32 %v2426, %v2724
      %v2815 = vadd.f32 %v2427, %v2729
      %v2816 = vadd.f32 %v2428, %v2734
      %v2817 = vadd.f32 %v2429, %v2739
      %v2818 = vadd.f32 %v2430, %v2744
      %v2819 = vadd.f32 %v2431, %v2749
      %v2820 = vadd.f32 %v2432, %v2754
      %v2821 = vadd.f32 %v2433, %v2759
      %v2822 = vadd.f32 %v2434, %v2764
      %v2823 = vadd.f32 %v2435, %v2769
      %v2824 = vadd.f32 %v2436, %v2774
      %v2825 = vadd.f32 %v2437, %v2779
      %v2826 = vadd.f32 %v2438, %v2784
      %v2827 = vadd.f32 %v2439, %v2789
      %v2828 = vadd.f32 %v2440, %v2794
      %v2829 = vld [vmem:[%s2441 + $0x1] sm:$0xff]
      %v2830 = vld [vmem:[%s2441 + $0x9] sm:$0xff]
      %v2831 = vld [vmem:[%s2441 + $0x19] sm:$0xff]
      %v2832 = vld [vmem:[%s2441 + $0x21] sm:$0xff]
      %v2833 = vld [vmem:[%s2441 + $0x31] sm:$0xff]
      %v2834 = vld [vmem:[%s2441 + $0x39] sm:$0xff]
      %v2835 = vld [vmem:[%s2441 + $0x49] sm:$0xff]
      %v2836 = vld [vmem:[%s2441 + $0x51] sm:$0xff]
      %v2837 = vld [vmem:[%s2441 + $0x61] sm:$0xff]
      %v2838 = vld [vmem:[%s2441 + $0x69] sm:$0xff]
      %v2839 = vld [vmem:[%s2441 + $0x79] sm:$0xff]
      %v2840 = vld [vmem:[%s2441 + $0x81] sm:$0xff]
      %v2841 = vld [vmem:[%s2441 + $0x91] sm:$0xff]
      %v2842 = vld [vmem:[%s2441 + $0x99] sm:$0xff]
      %v2843 = vld [vmem:[%s2441 + $0xa9] sm:$0xff]
      %v2844 = vld [vmem:[%s2441 + $0xb1] sm:$0xff]
      %v2845 = vld [vmem:[%s2441 + $0xc1] sm:$0xff]
      %v2846 = vld [vmem:[%s2441 + $0xc9] sm:$0xff]
      %v2847 = vld [vmem:[%s2441 + $0xd9] sm:$0xff]
      %v2848 = vld [vmem:[%s2441 + $0xe1] sm:$0xff]
      %v2849 = vld [vmem:[%s2441 + $0xf1] sm:$0xff]
      %v2850 = vld [vmem:[%s2441 + $0xf9] sm:$0xff]
      %v2851 = vld [vmem:[%s2441 + $0x109] sm:$0xff]
      %v2852 = vld [vmem:[%s2441 + $0x111] sm:$0xff]
      %v2853 = vld [vmem:[%s2441 + $0x121] sm:$0xff]
      %v2854 = vld [vmem:[%s2441 + $0x129] sm:$0xff]
      %v2855 = vld [vmem:[%s2441 + $0x139] sm:$0xff]
      %v2856 = vld [vmem:[%s2441 + $0x141] sm:$0xff]
      %v2857 = vld [vmem:[%s2441 + $0x151] sm:$0xff]
      %v2858 = vld [vmem:[%s2441 + $0x159] sm:$0xff]
      %v2859 = vld [vmem:[%s2441 + $0x169] sm:$0xff]
      %v2860 = vld [vmem:[%s2441 + $0x171] sm:$0xff]
      %s2861 = scalar_lea.vmem %s1, 56
      %v2862 = vld [vmem:[%s2861] sm:$0xff]
      %v2864 = vsel %vm249, %v2829, 0
      %v2867 = vsel %vm249, %v2830, 0
      %v2870 = vsel %vm249, %v2831, 0
      %v2873 = vsel %vm249, %v2832, 0
      %v2876 = vsel %vm249, %v2833, 0
      %v2879 = vsel %vm249, %v2834, 0
      %v2882 = vsel %vm249, %v2835, 0
      %v2885 = vsel %vm249, %v2836, 0
      %v2888 = vsel %vm249, %v2837, 0
      %v2891 = vsel %vm249, %v2838, 0
      %v2894 = vsel %vm249, %v2839, 0
      %v2897 = vsel %vm249, %v2840, 0
      %v2900 = vsel %vm249, %v2841, 0
      %v2903 = vsel %vm249, %v2842, 0
      %v2906 = vsel %vm249, %v2843, 0
      %v2909 = vsel %vm249, %v2844, 0
      %v2912 = vsel %vm249, %v2845, 0
      %v2915 = vsel %vm249, %v2846, 0
      %v2918 = vsel %vm249, %v2847, 0
      %v2921 = vsel %vm249, %v2848, 0
      %v2924 = vsel %vm249, %v2849, 0
      %v2927 = vsel %vm249, %v2850, 0
      %v2930 = vsel %vm249, %v2851, 0
      %v2933 = vsel %vm249, %v2852, 0
      %v2936 = vsel %vm249, %v2853, 0
      %v2939 = vsel %vm249, %v2854, 0
      %v2942 = vsel %vm249, %v2855, 0
      %v2945 = vsel %vm249, %v2856, 0
      %v2948 = vsel %vm249, %v2857, 0
      %v2951 = vsel %vm249, %v2858, 0
      %v2954 = vsel %vm249, %v2859, 0
      %v2957 = vsel %vm249, %v2860, 0
      %2959 = vmatprep.subr.mxu0 0.0
      %2960 = vmatpush1.msra.mxu0 0.0
      %2961 = vmatprep.subr.mxu0 0.0
      %2962 = vmatpush1.msra.mxu0 0.0
      %2963 = vmatprep.subr.mxu0 0.0
      %2964 = vmatpush1.msra.mxu0 0.0
      %2965 = vmatprep.subr.mxu0 0.0
      %2966 = vmatpush1.msra.mxu0 0.0
      %2967 = vmatprep.subr.mxu0 0.0
      %2968 = vmatpush1.msra.mxu0 0.0
      %2969 = vmatprep.subr.mxu0 0.0
      %2970 = vmatpush1.msra.mxu0 0.0
      %2971 = vmatprep.subr.mxu0 0.0
      %2972 = vmatpush1.msra.mxu0 0.0
      %2973 = vmatprep.subr.mxu0 0.0
      %2974 = vmatpush1.msra.mxu0 0.0
      %2975 = vmatprep.subr.mxu0 0.0
      %2976 = vmatpush1.msra.mxu0 0.0
      %2977 = vmatprep.subr.mxu0 0.0
      %2978 = vmatpush1.msra.mxu0 0.0
      %2979 = vmatprep.subr.mxu0 0.0
      %2980 = vmatpush1.msra.mxu0 0.0
      %2981 = vmatprep.subr.mxu0 0.0
      %2982 = vmatpush1.msra.mxu0 0.0
      %2983 = vmatprep.subr.mxu0 0.0
      %2984 = vmatpush1.msra.mxu0 0.0
      %2985 = vmatprep.subr.mxu0 0.0
      %2986 = vmatpush1.msra.mxu0 0.0
      %2987 = vmatprep.subr.mxu0 0.0
      %2988 = vmatpush1.msra.mxu0 0.0
      %2989 = vmatprep.subr.mxu0 0.0
      %2990 = vmatpush1.msra.mxu0 %v2862
      %2991 = vmatprep.subr.mxu0 0.0
      %2992 = vmatpush2.msra.mxu0 0.0
      %2993 = vmatprep.subr.mxu0 0.0
      %2994 = vmatpush2.msra.mxu0 0.0
      %2995 = vmatprep.subr.mxu0 0.0
      %2996 = vmatpush2.msra.mxu0 0.0
      %2997 = vmatprep.subr.mxu0 0.0
      %2998 = vmatpush2.msra.mxu0 0.0
      %2999 = vmatprep.subr.mxu0 0.0
      %3000 = vmatpush2.msra.mxu0 0.0
      %3001 = vmatprep.subr.mxu0 0.0
      %3002 = vmatpush2.msra.mxu0 0.0
      %3003 = vmatprep.subr.mxu0 0.0
      %3004 = vmatpush2.msra.mxu0 0.0
      %3005 = vmatprep.subr.mxu0 0.0
      %3006 = vmatpush2.msra.mxu0 0.0
      %3007 = vmatprep.subr.mxu0 0.0
      %3008 = vmatpush2.msra.mxu0 0.0
      %3009 = vmatprep.subr.mxu0 0.0
      %3010 = vmatpush2.msra.mxu0 0.0
      %3011 = vmatprep.subr.mxu0 0.0
      %3012 = vmatpush2.msra.mxu0 0.0
      %3013 = vmatprep.subr.mxu0 0.0
      %3014 = vmatpush2.msra.mxu0 0.0
      %3015 = vmatprep.subr.mxu0 0.0
      %3016 = vmatpush2.msra.mxu0 0.0
      %3017 = vmatprep.subr.mxu0 0.0
      %3018 = vmatpush2.msra.mxu0 0.0
      %3019 = vmatprep.subr.mxu0 0.0
      %3020 = vmatpush2.msra.mxu0 0.0
      %3021 = vmatprep.subr.mxu0 0.0
      %3022 = vmatpush2.msra.mxu0 0.0
      %3023 = vmatprep.mubr.f32.mxu0 0.0
      %3024 = vmatmul.mubr.f32.gmra.mxu0 %v2864
      %v3025 = vpop.f32.mrf.mxu0
      %v3026 = vadd.f32 0.0, %v3025
      %v3027 = vpop.f32.mrf.mxu0
      %3028 = vmatprep.mubr.f32.mxu0 0.0
      %3029 = vmatmul.mubr.f32.gmra.mxu0 %v2867
      %v3030 = vpop.f32.mrf.mxu0
      %v3031 = vadd.f32 0.0, %v3030
      %v3032 = vpop.f32.mrf.mxu0
      %3033 = vmatprep.mubr.f32.mxu0 0.0
      %3034 = vmatmul.mubr.f32.gmra.mxu0 %v2870
      %v3035 = vpop.f32.mrf.mxu0
      %v3036 = vadd.f32 0.0, %v3035
      %v3037 = vpop.f32.mrf.mxu0
      %3038 = vmatprep.mubr.f32.mxu0 0.0
      %3039 = vmatmul.mubr.f32.gmra.mxu0 %v2873
      %v3040 = vpop.f32.mrf.mxu0
      %v3041 = vadd.f32 0.0, %v3040
      %v3042 = vpop.f32.mrf.mxu0
      %3043 = vmatprep.mubr.f32.mxu0 0.0
      %3044 = vmatmul.mubr.f32.gmra.mxu0 %v2876
      %v3045 = vpop.f32.mrf.mxu0
      %v3046 = vadd.f32 0.0, %v3045
      %v3047 = vpop.f32.mrf.mxu0
      %3048 = vmatprep.mubr.f32.mxu0 0.0
      %3049 = vmatmul.mubr.f32.gmra.mxu0 %v2879
      %v3050 = vpop.f32.mrf.mxu0
      %v3051 = vadd.f32 0.0, %v3050
      %v3052 = vpop.f32.mrf.mxu0
      %3053 = vmatprep.mubr.f32.mxu0 0.0
      %3054 = vmatmul.mubr.f32.gmra.mxu0 %v2882
      %v3055 = vpop.f32.mrf.mxu0
      %v3056 = vadd.f32 0.0, %v3055
      %v3057 = vpop.f32.mrf.mxu0
      %3058 = vmatprep.mubr.f32.mxu0 0.0
      %3059 = vmatmul.mubr.f32.gmra.mxu0 %v2885
      %v3060 = vpop.f32.mrf.mxu0
      %v3061 = vadd.f32 0.0, %v3060
      %v3062 = vpop.f32.mrf.mxu0
      %3063 = vmatprep.mubr.f32.mxu0 0.0
      %3064 = vmatmul.mubr.f32.gmra.mxu0 %v2888
      %v3065 = vpop.f32.mrf.mxu0
      %v3066 = vadd.f32 0.0, %v3065
      %v3067 = vpop.f32.mrf.mxu0
      %3068 = vmatprep.mubr.f32.mxu0 0.0
      %3069 = vmatmul.mubr.f32.gmra.mxu0 %v2891
      %v3070 = vpop.f32.mrf.mxu0
      %v3071 = vadd.f32 0.0, %v3070
      %v3072 = vpop.f32.mrf.mxu0
      %3073 = vmatprep.mubr.f32.mxu0 0.0
      %3074 = vmatmul.mubr.f32.gmra.mxu0 %v2894
      %v3075 = vpop.f32.mrf.mxu0
      %v3076 = vadd.f32 0.0, %v3075
      %v3077 = vpop.f32.mrf.mxu0
      %3078 = vmatprep.mubr.f32.mxu0 0.0
      %3079 = vmatmul.mubr.f32.gmra.mxu0 %v2897
      %v3080 = vpop.f32.mrf.mxu0
      %v3081 = vadd.f32 0.0, %v3080
      %v3082 = vpop.f32.mrf.mxu0
      %3083 = vmatprep.mubr.f32.mxu0 0.0
      %3084 = vmatmul.mubr.f32.gmra.mxu0 %v2900
      %v3085 = vpop.f32.mrf.mxu0
      %v3086 = vadd.f32 0.0, %v3085
      %v3087 = vpop.f32.mrf.mxu0
      %3088 = vmatprep.mubr.f32.mxu0 0.0
      %3089 = vmatmul.mubr.f32.gmra.mxu0 %v2903
      %v3090 = vpop.f32.mrf.mxu0
      %v3091 = vadd.f32 0.0, %v3090
      %v3092 = vpop.f32.mrf.mxu0
      %3093 = vmatprep.mubr.f32.mxu0 0.0
      %3094 = vmatmul.mubr.f32.gmra.mxu0 %v2906
      %v3095 = vpop.f32.mrf.mxu0
      %v3096 = vadd.f32 0.0, %v3095
      %v3097 = vpop.f32.mrf.mxu0
      %3098 = vmatprep.mubr.f32.mxu0 0.0
      %3099 = vmatmul.mubr.f32.gmra.mxu0 %v2909
      %v3100 = vpop.f32.mrf.mxu0
      %v3101 = vadd.f32 0.0, %v3100
      %v3102 = vpop.f32.mrf.mxu0
      %3103 = vmatprep.mubr.f32.mxu0 0.0
      %3104 = vmatmul.mubr.f32.gmra.mxu0 %v2912
      %v3105 = vpop.f32.mrf.mxu0
      %v3106 = vadd.f32 0.0, %v3105
      %v3107 = vpop.f32.mrf.mxu0
      %3108 = vmatprep.mubr.f32.mxu0 0.0
      %3109 = vmatmul.mubr.f32.gmra.mxu0 %v2915
      %v3110 = vpop.f32.mrf.mxu0
      %v3111 = vadd.f32 0.0, %v3110
      %v3112 = vpop.f32.mrf.mxu0
      %3113 = vmatprep.mubr.f32.mxu0 0.0
      %3114 = vmatmul.mubr.f32.gmra.mxu0 %v2918
      %v3115 = vpop.f32.mrf.mxu0
      %v3116 = vadd.f32 0.0, %v3115
      %v3117 = vpop.f32.mrf.mxu0
      %3118 = vmatprep.mubr.f32.mxu0 0.0
      %3119 = vmatmul.mubr.f32.gmra.mxu0 %v2921
      %v3120 = vpop.f32.mrf.mxu0
      %v3121 = vadd.f32 0.0, %v3120
      %v3122 = vpop.f32.mrf.mxu0
      %3123 = vmatprep.mubr.f32.mxu0 0.0
      %3124 = vmatmul.mubr.f32.gmra.mxu0 %v2924
      %v3125 = vpop.f32.mrf.mxu0
      %v3126 = vadd.f32 0.0, %v3125
      %v3127 = vpop.f32.mrf.mxu0
      %3128 = vmatprep.mubr.f32.mxu0 0.0
      %3129 = vmatmul.mubr.f32.gmra.mxu0 %v2927
      %v3130 = vpop.f32.mrf.mxu0
      %v3131 = vadd.f32 0.0, %v3130
      %v3132 = vpop.f32.mrf.mxu0
      %3133 = vmatprep.mubr.f32.mxu0 0.0
      %3134 = vmatmul.mubr.f32.gmra.mxu0 %v2930
      %v3135 = vpop.f32.mrf.mxu0
      %v3136 = vadd.f32 0.0, %v3135
      %v3137 = vpop.f32.mrf.mxu0
      %3138 = vmatprep.mubr.f32.mxu0 0.0
      %3139 = vmatmul.mubr.f32.gmra.mxu0 %v2933
      %v3140 = vpop.f32.mrf.mxu0
      %v3141 = vadd.f32 0.0, %v3140
      %v3142 = vpop.f32.mrf.mxu0
      %3143 = vmatprep.mubr.f32.mxu0 0.0
      %3144 = vmatmul.mubr.f32.gmra.mxu0 %v2936
      %v3145 = vpop.f32.mrf.mxu0
      %v3146 = vadd.f32 0.0, %v3145
      %v3147 = vpop.f32.mrf.mxu0
      %3148 = vmatprep.mubr.f32.mxu0 0.0
      %3149 = vmatmul.mubr.f32.gmra.mxu0 %v2939
      %v3150 = vpop.f32.mrf.mxu0
      %v3151 = vadd.f32 0.0, %v3150
      %v3152 = vpop.f32.mrf.mxu0
      %3153 = vmatprep.mubr.f32.mxu0 0.0
      %3154 = vmatmul.mubr.f32.gmra.mxu0 %v2942
      %v3155 = vpop.f32.mrf.mxu0
      %v3156 = vadd.f32 0.0, %v3155
      %v3157 = vpop.f32.mrf.mxu0
      %3158 = vmatprep.mubr.f32.mxu0 0.0
      %3159 = vmatmul.mubr.f32.gmra.mxu0 %v2945
      %v3160 = vpop.f32.mrf.mxu0
      %v3161 = vadd.f32 0.0, %v3160
      %v3162 = vpop.f32.mrf.mxu0
      %3163 = vmatprep.mubr.f32.mxu0 0.0
      %3164 = vmatmul.mubr.f32.gmra.mxu0 %v2948
      %v3165 = vpop.f32.mrf.mxu0
      %v3166 = vadd.f32 0.0, %v3165
      %v3167 = vpop.f32.mrf.mxu0
      %3168 = vmatprep.mubr.f32.mxu0 0.0
      %3169 = vmatmul.mubr.f32.gmra.mxu0 %v2951
      %v3170 = vpop.f32.mrf.mxu0
      %v3171 = vadd.f32 0.0, %v3170
      %v3172 = vpop.f32.mrf.mxu0
      %3173 = vmatprep.mubr.f32.mxu0 0.0
      %3174 = vmatmul.mubr.f32.gmra.mxu0 %v2954
      %v3175 = vpop.f32.mrf.mxu0
      %v3176 = vadd.f32 0.0, %v3175
      %v3177 = vpop.f32.mrf.mxu0
      %3178 = vmatprep.mubr.f32.mxu0 0.0
      %3179 = vmatmul.mubr.f32.gmra.mxu0 %v2957
      %v3180 = vpop.f32.mrf.mxu0
      %v3181 = vadd.f32 0.0, %v3180
      %v3182 = vpop.f32.mrf.mxu0
      %3183 = vdwg.mxu0
      %v3184 = vadd.f32 %v2797, %v3026
      %v3185 = vadd.f32 %v2798, %v3031
      %v3186 = vadd.f32 %v2799, %v3036
      %v3187 = vadd.f32 %v2800, %v3041
      %v3188 = vadd.f32 %v2801, %v3046
      %v3189 = vadd.f32 %v2802, %v3051
      %v3190 = vadd.f32 %v2803, %v3056
      %v3191 = vadd.f32 %v2804, %v3061
      %v3192 = vadd.f32 %v2805, %v3066
      %v3193 = vadd.f32 %v2806, %v3071
      %v3194 = vadd.f32 %v2807, %v3076
      %v3195 = vadd.f32 %v2808, %v3081
      %v3196 = vadd.f32 %v2809, %v3086
      %v3197 = vadd.f32 %v2810, %v3091
      %v3198 = vadd.f32 %v2811, %v3096
      %v3199 = vadd.f32 %v2812, %v3101
      %v3200 = vadd.f32 %v2813, %v3106
      %v3201 = vadd.f32 %v2814, %v3111
      %v3202 = vadd.f32 %v2815, %v3116
      %v3203 = vadd.f32 %v2816, %v3121
      %v3204 = vadd.f32 %v2817, %v3126
      %v3205 = vadd.f32 %v2818, %v3131
      %v3206 = vadd.f32 %v2819, %v3136
      %v3207 = vadd.f32 %v2820, %v3141
      %v3208 = vadd.f32 %v2821, %v3146
      %v3209 = vadd.f32 %v2822, %v3151
      %v3210 = vadd.f32 %v2823, %v3156
      %v3211 = vadd.f32 %v2824, %v3161
      %v3212 = vadd.f32 %v2825, %v3166
      %v3213 = vadd.f32 %v2826, %v3171
      %v3214 = vadd.f32 %v2827, %v3176
      %v3215 = vadd.f32 %v2828, %v3181
      %v3216 = vld [vmem:[%s2441 + $0x2] sm:$0xff]
      %v3217 = vld [vmem:[%s2441 + $0xa] sm:$0xff]
      %v3218 = vld [vmem:[%s2441 + $0x1a] sm:$0xff]
      %v3219 = vld [vmem:[%s2441 + $0x22] sm:$0xff]
      %v3220 = vld [vmem:[%s2441 + $0x32] sm:$0xff]
      %v3221 = vld [vmem:[%s2441 + $0x3a] sm:$0xff]
      %v3222 = vld [vmem:[%s2441 + $0x4a] sm:$0xff]
      %v3223 = vld [vmem:[%s2441 + $0x52] sm:$0xff]
      %v3224 = vld [vmem:[%s2441 + $0x62] sm:$0xff]
      %v3225 = vld [vmem:[%s2441 + $0x6a] sm:$0xff]
      %v3226 = vld [vmem:[%s2441 + $0x7a] sm:$0xff]
      %v3227 = vld [vmem:[%s2441 + $0x82] sm:$0xff]
      %v3228 = vld [vmem:[%s2441 + $0x92] sm:$0xff]
      %v3229 = vld [vmem:[%s2441 + $0x9a] sm:$0xff]
      %v3230 = vld [vmem:[%s2441 + $0xaa] sm:$0xff]
      %v3231 = vld [vmem:[%s2441 + $0xb2] sm:$0xff]
      %v3232 = vld [vmem:[%s2441 + $0xc2] sm:$0xff]
      %v3233 = vld [vmem:[%s2441 + $0xca] sm:$0xff]
      %v3234 = vld [vmem:[%s2441 + $0xda] sm:$0xff]
      %v3235 = vld [vmem:[%s2441 + $0xe2] sm:$0xff]
      %v3236 = vld [vmem:[%s2441 + $0xf2] sm:$0xff]
      %v3237 = vld [vmem:[%s2441 + $0xfa] sm:$0xff]
      %v3238 = vld [vmem:[%s2441 + $0x10a] sm:$0xff]
      %v3239 = vld [vmem:[%s2441 + $0x112] sm:$0xff]
      %v3240 = vld [vmem:[%s2441 + $0x122] sm:$0xff]
      %v3241 = vld [vmem:[%s2441 + $0x12a] sm:$0xff]
      %v3242 = vld [vmem:[%s2441 + $0x13a] sm:$0xff]
      %v3243 = vld [vmem:[%s2441 + $0x142] sm:$0xff]
      %v3244 = vld [vmem:[%s2441 + $0x152] sm:$0xff]
      %v3245 = vld [vmem:[%s2441 + $0x15a] sm:$0xff]
      %v3246 = vld [vmem:[%s2441 + $0x16a] sm:$0xff]
      %v3247 = vld [vmem:[%s2441 + $0x172] sm:$0xff]
      %s3248 = scalar_lea.vmem %s1, 64
      %v3249 = vld [vmem:[%s3248] sm:$0xff]
      %v3251 = vsel %vm249, %v3216, 0
      %v3254 = vsel %vm249, %v3217, 0
      %v3257 = vsel %vm249, %v3218, 0
      %v3260 = vsel %vm249, %v3219, 0
      %v3263 = vsel %vm249, %v3220, 0
      %v3266 = vsel %vm249, %v3221, 0
      %v3269 = vsel %vm249, %v3222, 0
      %v3272 = vsel %vm249, %v3223, 0
      %v3275 = vsel %vm249, %v3224, 0
      %v3278 = vsel %vm249, %v3225, 0
      %v3281 = vsel %vm249, %v3226, 0
      %v3284 = vsel %vm249, %v3227, 0
      %v3287 = vsel %vm249, %v3228, 0
      %v3290 = vsel %vm249, %v3229, 0
      %v3293 = vsel %vm249, %v3230, 0
      %v3296 = vsel %vm249, %v3231, 0
      %v3299 = vsel %vm249, %v3232, 0
      %v3302 = vsel %vm249, %v3233, 0
      %v3305 = vsel %vm249, %v3234, 0
      %v3308 = vsel %vm249, %v3235, 0
      %v3311 = vsel %vm249, %v3236, 0
      %v3314 = vsel %vm249, %v3237, 0
      %v3317 = vsel %vm249, %v3238, 0
      %v3320 = vsel %vm249, %v3239, 0
      %v3323 = vsel %vm249, %v3240, 0
      %v3326 = vsel %vm249, %v3241, 0
      %v3329 = vsel %vm249, %v3242, 0
      %v3332 = vsel %vm249, %v3243, 0
      %v3335 = vsel %vm249, %v3244, 0
      %v3338 = vsel %vm249, %v3245, 0
      %v3341 = vsel %vm249, %v3246, 0
      %v3344 = vsel %vm249, %v3247, 0
      %3346 = vmatprep.subr.mxu0 0.0
      %3347 = vmatpush1.msra.mxu0 0.0
      %3348 = vmatprep.subr.mxu0 0.0
      %3349 = vmatpush1.msra.mxu0 0.0
      %3350 = vmatprep.subr.mxu0 0.0
      %3351 = vmatpush1.msra.mxu0 0.0
      %3352 = vmatprep.subr.mxu0 0.0
      %3353 = vmatpush1.msra.mxu0 0.0
      %3354 = vmatprep.subr.mxu0 0.0
      %3355 = vmatpush1.msra.mxu0 0.0
      %3356 = vmatprep.subr.mxu0 0.0
      %3357 = vmatpush1.msra.mxu0 0.0
      %3358 = vmatprep.subr.mxu0 0.0
      %3359 = vmatpush1.msra.mxu0 0.0
      %3360 = vmatprep.subr.mxu0 0.0
      %3361 = vmatpush1.msra.mxu0 0.0
      %3362 = vmatprep.subr.mxu0 0.0
      %3363 = vmatpush1.msra.mxu0 0.0
      %3364 = vmatprep.subr.mxu0 0.0
      %3365 = vmatpush1.msra.mxu0 0.0
      %3366 = vmatprep.subr.mxu0 0.0
      %3367 = vmatpush1.msra.mxu0 0.0
      %3368 = vmatprep.subr.mxu0 0.0
      %3369 = vmatpush1.msra.mxu0 0.0
      %3370 = vmatprep.subr.mxu0 0.0
      %3371 = vmatpush1.msra.mxu0 0.0
      %3372 = vmatprep.subr.mxu0 0.0
      %3373 = vmatpush1.msra.mxu0 0.0
      %3374 = vmatprep.subr.mxu0 0.0
      %3375 = vmatpush1.msra.mxu0 0.0
      %3376 = vmatprep.subr.mxu0 0.0
      %3377 = vmatpush1.msra.mxu0 %v3249
      %3378 = vmatprep.subr.mxu0 0.0
      %3379 = vmatpush2.msra.mxu0 0.0
      %3380 = vmatprep.subr.mxu0 0.0
      %3381 = vmatpush2.msra.mxu0 0.0
      %3382 = vmatprep.subr.mxu0 0.0
      %3383 = vmatpush2.msra.mxu0 0.0
      %3384 = vmatprep.subr.mxu0 0.0
      %3385 = vmatpush2.msra.mxu0 0.0
      %3386 = vmatprep.subr.mxu0 0.0
      %3387 = vmatpush2.msra.mxu0 0.0
      %3388 = vmatprep.subr.mxu0 0.0
      %3389 = vmatpush2.msra.mxu0 0.0
      %3390 = vmatprep.subr.mxu0 0.0
      %3391 = vmatpush2.msra.mxu0 0.0
      %3392 = vmatprep.subr.mxu0 0.0
      %3393 = vmatpush2.msra.mxu0 0.0
      %3394 = vmatprep.subr.mxu0 0.0
      %3395 = vmatpush2.msra.mxu0 0.0
      %3396 = vmatprep.subr.mxu0 0.0
      %3397 = vmatpush2.msra.mxu0 0.0
      %3398 = vmatprep.subr.mxu0 0.0
      %3399 = vmatpush2.msra.mxu0 0.0
      %3400 = vmatprep.subr.mxu0 0.0
      %3401 = vmatpush2.msra.mxu0 0.0
      %3402 = vmatprep.subr.mxu0 0.0
      %3403 = vmatpush2.msra.mxu0 0.0
      %3404 = vmatprep.subr.mxu0 0.0
      %3405 = vmatpush2.msra.mxu0 0.0
      %3406 = vmatprep.subr.mxu0 0.0
      %3407 = vmatpush2.msra.mxu0 0.0
      %3408 = vmatprep.subr.mxu0 0.0
      %3409 = vmatpush2.msra.mxu0 0.0
      %3410 = vmatprep.mubr.f32.mxu0 0.0
      %3411 = vmatmul.mubr.f32.gmra.mxu0 %v3251
      %v3412 = vpop.f32.mrf.mxu0
      %v3413 = vadd.f32 0.0, %v3412
      %v3414 = vpop.f32.mrf.mxu0
      %3415 = vmatprep.mubr.f32.mxu0 0.0
      %3416 = vmatmul.mubr.f32.gmra.mxu0 %v3254
      %v3417 = vpop.f32.mrf.mxu0
      %v3418 = vadd.f32 0.0, %v3417
      %v3419 = vpop.f32.mrf.mxu0
      %3420 = vmatprep.mubr.f32.mxu0 0.0
      %3421 = vmatmul.mubr.f32.gmra.mxu0 %v3257
      %v3422 = vpop.f32.mrf.mxu0
      %v3423 = vadd.f32 0.0, %v3422
      %v3424 = vpop.f32.mrf.mxu0
      %3425 = vmatprep.mubr.f32.mxu0 0.0
      %3426 = vmatmul.mubr.f32.gmra.mxu0 %v3260
      %v3427 = vpop.f32.mrf.mxu0
      %v3428 = vadd.f32 0.0, %v3427
      %v3429 = vpop.f32.mrf.mxu0
      %3430 = vmatprep.mubr.f32.mxu0 0.0
      %3431 = vmatmul.mubr.f32.gmra.mxu0 %v3263
      %v3432 = vpop.f32.mrf.mxu0
      %v3433 = vadd.f32 0.0, %v3432
      %v3434 = vpop.f32.mrf.mxu0
      %3435 = vmatprep.mubr.f32.mxu0 0.0
      %3436 = vmatmul.mubr.f32.gmra.mxu0 %v3266
      %v3437 = vpop.f32.mrf.mxu0
      %v3438 = vadd.f32 0.0, %v3437
      %v3439 = vpop.f32.mrf.mxu0
      %3440 = vmatprep.mubr.f32.mxu0 0.0
      %3441 = vmatmul.mubr.f32.gmra.mxu0 %v3269
      %v3442 = vpop.f32.mrf.mxu0
      %v3443 = vadd.f32 0.0, %v3442
      %v3444 = vpop.f32.mrf.mxu0
      %3445 = vmatprep.mubr.f32.mxu0 0.0
      %3446 = vmatmul.mubr.f32.gmra.mxu0 %v3272
      %v3447 = vpop.f32.mrf.mxu0
      %v3448 = vadd.f32 0.0, %v3447
      %v3449 = vpop.f32.mrf.mxu0
      %3450 = vmatprep.mubr.f32.mxu0 0.0
      %3451 = vmatmul.mubr.f32.gmra.mxu0 %v3275
      %v3452 = vpop.f32.mrf.mxu0
      %v3453 = vadd.f32 0.0, %v3452
      %v3454 = vpop.f32.mrf.mxu0
      %3455 = vmatprep.mubr.f32.mxu0 0.0
      %3456 = vmatmul.mubr.f32.gmra.mxu0 %v3278
      %v3457 = vpop.f32.mrf.mxu0
      %v3458 = vadd.f32 0.0, %v3457
      %v3459 = vpop.f32.mrf.mxu0
      %3460 = vmatprep.mubr.f32.mxu0 0.0
      %3461 = vmatmul.mubr.f32.gmra.mxu0 %v3281
      %v3462 = vpop.f32.mrf.mxu0
      %v3463 = vadd.f32 0.0, %v3462
      %v3464 = vpop.f32.mrf.mxu0
      %3465 = vmatprep.mubr.f32.mxu0 0.0
      %3466 = vmatmul.mubr.f32.gmra.mxu0 %v3284
      %v3467 = vpop.f32.mrf.mxu0
      %v3468 = vadd.f32 0.0, %v3467
      %v3469 = vpop.f32.mrf.mxu0
      %3470 = vmatprep.mubr.f32.mxu0 0.0
      %3471 = vmatmul.mubr.f32.gmra.mxu0 %v3287
      %v3472 = vpop.f32.mrf.mxu0
      %v3473 = vadd.f32 0.0, %v3472
      %v3474 = vpop.f32.mrf.mxu0
      %3475 = vmatprep.mubr.f32.mxu0 0.0
      %3476 = vmatmul.mubr.f32.gmra.mxu0 %v3290
      %v3477 = vpop.f32.mrf.mxu0
      %v3478 = vadd.f32 0.0, %v3477
      %v3479 = vpop.f32.mrf.mxu0
      %3480 = vmatprep.mubr.f32.mxu0 0.0
      %3481 = vmatmul.mubr.f32.gmra.mxu0 %v3293
      %v3482 = vpop.f32.mrf.mxu0
      %v3483 = vadd.f32 0.0, %v3482
      %v3484 = vpop.f32.mrf.mxu0
      %3485 = vmatprep.mubr.f32.mxu0 0.0
      %3486 = vmatmul.mubr.f32.gmra.mxu0 %v3296
      %v3487 = vpop.f32.mrf.mxu0
      %v3488 = vadd.f32 0.0, %v3487
      %v3489 = vpop.f32.mrf.mxu0
      %3490 = vmatprep.mubr.f32.mxu0 0.0
      %3491 = vmatmul.mubr.f32.gmra.mxu0 %v3299
      %v3492 = vpop.f32.mrf.mxu0
      %v3493 = vadd.f32 0.0, %v3492
      %v3494 = vpop.f32.mrf.mxu0
      %3495 = vmatprep.mubr.f32.mxu0 0.0
      %3496 = vmatmul.mubr.f32.gmra.mxu0 %v3302
      %v3497 = vpop.f32.mrf.mxu0
      %v3498 = vadd.f32 0.0, %v3497
      %v3499 = vpop.f32.mrf.mxu0
      %3500 = vmatprep.mubr.f32.mxu0 0.0
      %3501 = vmatmul.mubr.f32.gmra.mxu0 %v3305
      %v3502 = vpop.f32.mrf.mxu0
      %v3503 = vadd.f32 0.0, %v3502
      %v3504 = vpop.f32.mrf.mxu0
      %3505 = vmatprep.mubr.f32.mxu0 0.0
      %3506 = vmatmul.mubr.f32.gmra.mxu0 %v3308
      %v3507 = vpop.f32.mrf.mxu0
      %v3508 = vadd.f32 0.0, %v3507
      %v3509 = vpop.f32.mrf.mxu0
      %3510 = vmatprep.mubr.f32.mxu0 0.0
      %3511 = vmatmul.mubr.f32.gmra.mxu0 %v3311
      %v3512 = vpop.f32.mrf.mxu0
      %v3513 = vadd.f32 0.0, %v3512
      %v3514 = vpop.f32.mrf.mxu0
      %3515 = vmatprep.mubr.f32.mxu0 0.0
      %3516 = vmatmul.mubr.f32.gmra.mxu0 %v3314
      %v3517 = vpop.f32.mrf.mxu0
      %v3518 = vadd.f32 0.0, %v3517
      %v3519 = vpop.f32.mrf.mxu0
      %3520 = vmatprep.mubr.f32.mxu0 0.0
      %3521 = vmatmul.mubr.f32.gmra.mxu0 %v3317
      %v3522 = vpop.f32.mrf.mxu0
      %v3523 = vadd.f32 0.0, %v3522
      %v3524 = vpop.f32.mrf.mxu0
      %3525 = vmatprep.mubr.f32.mxu0 0.0
      %3526 = vmatmul.mubr.f32.gmra.mxu0 %v3320
      %v3527 = vpop.f32.mrf.mxu0
      %v3528 = vadd.f32 0.0, %v3527
      %v3529 = vpop.f32.mrf.mxu0
      %3530 = vmatprep.mubr.f32.mxu0 0.0
      %3531 = vmatmul.mubr.f32.gmra.mxu0 %v3323
      %v3532 = vpop.f32.mrf.mxu0
      %v3533 = vadd.f32 0.0, %v3532
      %v3534 = vpop.f32.mrf.mxu0
      %3535 = vmatprep.mubr.f32.mxu0 0.0
      %3536 = vmatmul.mubr.f32.gmra.mxu0 %v3326
      %v3537 = vpop.f32.mrf.mxu0
      %v3538 = vadd.f32 0.0, %v3537
      %v3539 = vpop.f32.mrf.mxu0
      %3540 = vmatprep.mubr.f32.mxu0 0.0
      %3541 = vmatmul.mubr.f32.gmra.mxu0 %v3329
      %v3542 = vpop.f32.mrf.mxu0
      %v3543 = vadd.f32 0.0, %v3542
      %v3544 = vpop.f32.mrf.mxu0
      %3545 = vmatprep.mubr.f32.mxu0 0.0
      %3546 = vmatmul.mubr.f32.gmra.mxu0 %v3332
      %v3547 = vpop.f32.mrf.mxu0
      %v3548 = vadd.f32 0.0, %v3547
      %v3549 = vpop.f32.mrf.mxu0
      %3550 = vmatprep.mubr.f32.mxu0 0.0
      %3551 = vmatmul.mubr.f32.gmra.mxu0 %v3335
      %v3552 = vpop.f32.mrf.mxu0
      %v3553 = vadd.f32 0.0, %v3552
      %v3554 = vpop.f32.mrf.mxu0
      %3555 = vmatprep.mubr.f32.mxu0 0.0
      %3556 = vmatmul.mubr.f32.gmra.mxu0 %v3338
      %v3557 = vpop.f32.mrf.mxu0
      %v3558 = vadd.f32 0.0, %v3557
      %v3559 = vpop.f32.mrf.mxu0
      %3560 = vmatprep.mubr.f32.mxu0 0.0
      %3561 = vmatmul.mubr.f32.gmra.mxu0 %v3341
      %v3562 = vpop.f32.mrf.mxu0
      %v3563 = vadd.f32 0.0, %v3562
      %v3564 = vpop.f32.mrf.mxu0
      %3565 = vmatprep.mubr.f32.mxu0 0.0
      %3566 = vmatmul.mubr.f32.gmra.mxu0 %v3344
      %v3567 = vpop.f32.mrf.mxu0
      %v3568 = vadd.f32 0.0, %v3567
      %v3569 = vpop.f32.mrf.mxu0
      %3570 = vdwg.mxu0
      %v3571 = vadd.f32 %v3184, %v3413
      %v3572 = vadd.f32 %v3185, %v3418
      %v3573 = vadd.f32 %v3186, %v3423
      %v3574 = vadd.f32 %v3187, %v3428
      %v3575 = vadd.f32 %v3188, %v3433
      %v3576 = vadd.f32 %v3189, %v3438
      %v3577 = vadd.f32 %v3190, %v3443
      %v3578 = vadd.f32 %v3191, %v3448
      %v3579 = vadd.f32 %v3192, %v3453
      %v3580 = vadd.f32 %v3193, %v3458
      %v3581 = vadd.f32 %v3194, %v3463
      %v3582 = vadd.f32 %v3195, %v3468
      %v3583 = vadd.f32 %v3196, %v3473
      %v3584 = vadd.f32 %v3197, %v3478
      %v3585 = vadd.f32 %v3198, %v3483
      %v3586 = vadd.f32 %v3199, %v3488
      %v3587 = vadd.f32 %v3200, %v3493
      %v3588 = vadd.f32 %v3201, %v3498
      %v3589 = vadd.f32 %v3202, %v3503
      %v3590 = vadd.f32 %v3203, %v3508
      %v3591 = vadd.f32 %v3204, %v3513
      %v3592 = vadd.f32 %v3205, %v3518
      %v3593 = vadd.f32 %v3206, %v3523
      %v3594 = vadd.f32 %v3207, %v3528
      %v3595 = vadd.f32 %v3208, %v3533
      %v3596 = vadd.f32 %v3209, %v3538
      %v3597 = vadd.f32 %v3210, %v3543
      %v3598 = vadd.f32 %v3211, %v3548
      %v3599 = vadd.f32 %v3212, %v3553
      %v3600 = vadd.f32 %v3213, %v3558
      %v3601 = vadd.f32 %v3214, %v3563
      %v3602 = vadd.f32 %v3215, %v3568
      %3603 = vst [vmem:[%s177] sm:$0xff] %v3571
      %3604 = vst [vmem:[%s177 + $0x8] sm:$0xff] %v3572
      %3605 = vst [vmem:[%s177 + $0x10] sm:$0xff] %v3573
      %3606 = vst [vmem:[%s177 + $0x18] sm:$0xff] %v3574
      %3607 = vst [vmem:[%s177 + $0x20] sm:$0xff] %v3575
      %3608 = vst [vmem:[%s177 + $0x28] sm:$0xff] %v3576
      %3609 = vst [vmem:[%s177 + $0x30] sm:$0xff] %v3577
      %3610 = vst [vmem:[%s177 + $0x38] sm:$0xff] %v3578
      %3611 = vst [vmem:[%s177 + $0x40] sm:$0xff] %v3579
      %3612 = vst [vmem:[%s177 + $0x48] sm:$0xff] %v3580
      %3613 = vst [vmem:[%s177 + $0x50] sm:$0xff] %v3581
      %3614 = vst [vmem:[%s177 + $0x58] sm:$0xff] %v3582
      %3615 = vst [vmem:[%s177 + $0x60] sm:$0xff] %v3583
      %3616 = vst [vmem:[%s177 + $0x68] sm:$0xff] %v3584
      %3617 = vst [vmem:[%s177 + $0x70] sm:$0xff] %v3585
      %3618 = vst [vmem:[%s177 + $0x78] sm:$0xff] %v3586
      %3619 = vst [vmem:[%s177 + $0x80] sm:$0xff] %v3587
      %3620 = vst [vmem:[%s177 + $0x88] sm:$0xff] %v3588
      %3621 = vst [vmem:[%s177 + $0x90] sm:$0xff] %v3589
      %3622 = vst [vmem:[%s177 + $0x98] sm:$0xff] %v3590
      %3623 = vst [vmem:[%s177 + $0xa0] sm:$0xff] %v3591
      %3624 = vst [vmem:[%s177 + $0xa8] sm:$0xff] %v3592
      %3625 = vst [vmem:[%s177 + $0xb0] sm:$0xff] %v3593
      %3626 = vst [vmem:[%s177 + $0xb8] sm:$0xff] %v3594
      %3627 = vst [vmem:[%s177 + $0xc0] sm:$0xff] %v3595
      %3628 = vst [vmem:[%s177 + $0xc8] sm:$0xff] %v3596
      %3629 = vst [vmem:[%s177 + $0xd0] sm:$0xff] %v3597
      %3630 = vst [vmem:[%s177 + $0xd8] sm:$0xff] %v3598
      %3631 = vst [vmem:[%s177 + $0xe0] sm:$0xff] %v3599
      %3632 = vst [vmem:[%s177 + $0xe8] sm:$0xff] %v3600
      %3633 = vst [vmem:[%s177 + $0xf0] sm:$0xff] %v3601
      %3634 = vst [vmem:[%s177 + $0xf8] sm:$0xff] %v3602
      %v3635 = vadd.f32 %v3571, %v3572
      %v3636 = vadd.f32 %v3635, %v3573
      %v3637 = vadd.f32 %v3636, %v3574
      %v3638 = vadd.f32 %v3637, %v3575
      %v3639 = vadd.f32 %v3638, %v3576
      %v3640 = vadd.f32 %v3639, %v3577
      %v3641 = vadd.f32 %v3640, %v3578
      %v3642 = vadd.f32 %v3641, %v3579
      %v3643 = vadd.f32 %v3642, %v3580
      %v3644 = vadd.f32 %v3643, %v3581
      %v3645 = vadd.f32 %v3644, %v3582
      %v3646 = vadd.f32 %v3645, %v3583
      %v3647 = vadd.f32 %v3646, %v3584
      %v3648 = vadd.f32 %v3647, %v3585
      %v3649 = vadd.f32 %v3648, %v3586
      %v3650 = vadd.f32 %v3649, %v3587
      %v3651 = vadd.f32 %v3650, %v3588
      %v3652 = vadd.f32 %v3651, %v3589
      %v3653 = vadd.f32 %v3652, %v3590
      %v3654 = vadd.f32 %v3653, %v3591
      %v3655 = vadd.f32 %v3654, %v3592
      %v3656 = vadd.f32 %v3655, %v3593
      %v3657 = vadd.f32 %v3656, %v3594
      %v3658 = vadd.f32 %v3657, %v3595
      %v3659 = vadd.f32 %v3658, %v3596
      %v3660 = vadd.f32 %v3659, %v3597
      %v3661 = vadd.f32 %v3660, %v3598
      %v3662 = vadd.f32 %v3661, %v3599
      %v3663 = vadd.f32 %v3662, %v3600
      %v3664 = vadd.f32 %v3663, %v3601
      %v3665 = vadd.f32 %v3664, %v3602
      %v3666 = vrot.slane %v3665, 4
      %v3667 = vadd.f32 %v3665, %v3666
      %v3668 = vrot.slane %v3667, 2
      %v3669 = vadd.f32 %v3667, %v3668
      %v3670 = vrot.slane %v3669, 1
      %v3671 = vadd.f32 %v3669, %v3670
      %v3672 = vmul.f32 %v3671, 0.00390625
      %v3673 = vsub.f32 %v3571, %v3672
      %v3674 = vsub.f32 %v3572, %v3672
      %v3675 = vsub.f32 %v3573, %v3672
      %v3676 = vsub.f32 %v3574, %v3672
      %v3677 = vsub.f32 %v3575, %v3672
      %v3678 = vsub.f32 %v3576, %v3672
      %v3679 = vsub.f32 %v3577, %v3672
      %v3680 = vsub.f32 %v3578, %v3672
      %v3681 = vsub.f32 %v3579, %v3672
      %v3682 = vsub.f32 %v3580, %v3672
      %v3683 = vsub.f32 %v3581, %v3672
      %v3684 = vsub.f32 %v3582, %v3672
      %v3685 = vsub.f32 %v3583, %v3672
      %v3686 = vsub.f32 %v3584, %v3672
      %v3687 = vsub.f32 %v3585, %v3672
      %v3688 = vsub.f32 %v3586, %v3672
      %v3689 = vsub.f32 %v3587, %v3672
      %v3690 = vsub.f32 %v3588, %v3672
      %v3691 = vsub.f32 %v3589, %v3672
      %v3692 = vsub.f32 %v3590, %v3672
      %v3693 = vsub.f32 %v3591, %v3672
      %v3694 = vsub.f32 %v3592, %v3672
      %v3695 = vsub.f32 %v3593, %v3672
      %v3696 = vsub.f32 %v3594, %v3672
      %v3697 = vsub.f32 %v3595, %v3672
      %v3698 = vsub.f32 %v3596, %v3672
      %v3699 = vsub.f32 %v3597, %v3672
      %v3700 = vsub.f32 %v3598, %v3672
      %v3701 = vsub.f32 %v3599, %v3672
      %v3702 = vsub.f32 %v3600, %v3672
      %v3703 = vsub.f32 %v3601, %v3672
      %v3704 = vsub.f32 %v3602, %v3672
      %v3705 = vmul.f32 %v3673, %v3673
      %v3706 = vmul.f32 %v3674, %v3674
      %v3707 = vmul.f32 %v3675, %v3675
      %v3708 = vmul.f32 %v3676, %v3676
      %v3709 = vmul.f32 %v3677, %v3677
      %v3710 = vmul.f32 %v3678, %v3678
      %v3711 = vmul.f32 %v3679, %v3679
      %v3712 = vmul.f32 %v3680, %v3680
      %v3713 = vmul.f32 %v3681, %v3681
      %v3714 = vmul.f32 %v3682, %v3682
      %v3715 = vmul.f32 %v3683, %v3683
      %v3716 = vmul.f32 %v3684, %v3684
      %v3717 = vmul.f32 %v3685, %v3685
      %v3718 = vmul.f32 %v3686, %v3686
      %v3719 = vmul.f32 %v3687, %v3687
      %v3720 = vmul.f32 %v3688, %v3688
      %v3721 = vmul.f32 %v3689, %v3689
      %v3722 = vmul.f32 %v3690, %v3690
      %v3723 = vmul.f32 %v3691, %v3691
      %v3724 = vmul.f32 %v3692, %v3692
      %v3725 = vmul.f32 %v3693, %v3693
      %v3726 = vmul.f32 %v3694, %v3694
      %v3727 = vmul.f32 %v3695, %v3695
      %v3728 = vmul.f32 %v3696, %v3696
      %v3729 = vmul.f32 %v3697, %v3697
      %v3730 = vmul.f32 %v3698, %v3698
      %v3731 = vmul.f32 %v3699, %v3699
      %v3732 = vmul.f32 %v3700, %v3700
      %v3733 = vmul.f32 %v3701, %v3701
      %v3734 = vmul.f32 %v3702, %v3702
      %v3735 = vmul.f32 %v3703, %v3703
      %v3736 = vmul.f32 %v3704, %v3704
      %v3737 = vadd.f32 %v3705, %v3706
      %v3738 = vadd.f32 %v3737, %v3707
      %v3739 = vadd.f32 %v3738, %v3708
      %v3740 = vadd.f32 %v3739, %v3709
      %v3741 = vadd.f32 %v3740, %v3710
      %v3742 = vadd.f32 %v3741, %v3711
      %v3743 = vadd.f32 %v3742, %v3712
      %v3744 = vadd.f32 %v3743, %v3713
      %v3745 = vadd.f32 %v3744, %v3714
      %v3746 = vadd.f32 %v3745, %v3715
      %v3747 = vadd.f32 %v3746, %v3716
      %v3748 = vadd.f32 %v3747, %v3717
      %v3749 = vadd.f32 %v3748, %v3718
      %v3750 = vadd.f32 %v3749, %v3719
      %v3751 = vadd.f32 %v3750, %v3720
      %v3752 = vadd.f32 %v3751, %v3721
      %v3753 = vadd.f32 %v3752, %v3722
      %v3754 = vadd.f32 %v3753, %v3723
      %v3755 = vadd.f32 %v3754, %v3724
      %v3756 = vadd.f32 %v3755, %v3725
      %v3757 = vadd.f32 %v3756, %v3726
      %v3758 = vadd.f32 %v3757, %v3727
      %v3759 = vadd.f32 %v3758, %v3728
      %v3760 = vadd.f32 %v3759, %v3729
      %v3761 = vadd.f32 %v3760, %v3730
      %v3762 = vadd.f32 %v3761, %v3731
      %v3763 = vadd.f32 %v3762, %v3732
      %v3764 = vadd.f32 %v3763, %v3733
      %v3765 = vadd.f32 %v3764, %v3734
      %v3766 = vadd.f32 %v3765, %v3735
      %v3767 = vadd.f32 %v3766, %v3736
      %v3768 = vrot.slane %v3767, 4
      %v3769 = vadd.f32 %v3767, %v3768
      %v3770 = vrot.slane %v3769, 2
      %v3771 = vadd.f32 %v3769, %v3770
      %v3772 = vrot.slane %v3771, 1
      %v3773 = vadd.f32 %v3771, %v3772
      %vm3774 = vcmask 1040384
      %v3775 = vsel %vm3774, %v3671, %v3773
      %vm3776 = vcmask 1041408
      %v3777 = vsel %vm3776, %v3775, 0.0
      %3778 = vst [vmem:[%s181] sm:$0xff] %v3777
      %p3779 = scmp.lt.s32.totalorder %s15, 1
      %s3780 = scalar_select %p3779, %s15, 1
      %s3781 = smul.addr %s3780, 32
      %s3782 = smul.addr %s3781, 8
      %s3783 = scalar_lea.vmem %s2, %s3782
      %p3784 = scmp.lt.s32.totalorder %s15, 1
      %s3785 = scalar_select %p3784, %s15, 1
      %s3786 = smul.addr %s3785, 8
      %s3787 = scalar_lea.vmem %s3, %s3786
      // Predicated region
      $region29: #{conv_block_forward.2} parent=27 // pred_check
        %p3788 = pneg %p80
      $region30: #{conv_block_forward.2} parent=27 // pred_check_branch
        %3790 = sbr.rel (%p3788) target = $region32
      $region31: #{conv_block_forward.2} parent=27 // pred_region
        _
      $region32: #{conv_block_forward.2} parent=27 // pred_fallthru
        _
      // Predicated region
      $region33: #{conv_block_forward.2} parent=27 // pred_check
        %p3791 = pneg %p106
      $region34: #{conv_block_forward.2} parent=27 // pred_check_branch
        %3793 = sbr.rel (%p3791) target = $region36
      $region35: #{conv_block_forward.2} parent=27 // pred_region
        _
      $region36: #{conv_block_forward.2} parent=27 // pred_fallthru
        _
    $region28: #{conv_block_forward.2} parent=5 // pred_fallthru
      _
    %p3794 = scmp.le.s32.totalorder 2, %s10
    // Predicated region
    $region37: #{conv_block_forward.2} parent=5 // pred_check
      %p3795 = pneg %p3794
    $region38: #{conv_block_forward.2} parent=5 // pred_check_branch
      %3797 = sbr.rel (%p3795) target = $region40
    $region39: #{conv_block_forward.2} parent=5 // pred_region
      %s3798 = ssub.s32 %s10, 2
      // Predicated region
      $region41: #{conv_block_forward.2} parent=39 // pred_check
        %p3799 = pneg %p86
      $region42: #{conv_block_forward.2} parent=39 // pred_check_branch
        %3801 = sbr.rel (%p3799) target = $region44
      $region43: #{conv_block_forward.2} parent=39 // pred_region
        %p3802 = scmp.lt.s32.totalorder %s16, 1
        %s3803 = scalar_select %p3802, %s16, 1
        %s3804 = smul.addr %s3803, 32
        %s3805 = smul.addr %s3804, 8
        %s3806 = scalar_lea.vmem %s2, %s3805
      $region44: #{conv_block_forward.2} parent=39 // pred_fallthru
        _
      // Predicated region
      $region45: #{conv_block_forward.2} parent=39 // pred_check
        %p3807 = pneg %p112
      $region46: #{conv_block_forward.2} parent=39 // pred_check_branch
        %3809 = sbr.rel (%p3807) target = $region48
      $region47: #{conv_block_forward.2} parent=39 // pred_region
        %p3810 = scmp.lt.s32.totalorder %s16, 1
        %s3811 = scalar_select %p3810, %s16, 1
        %s3812 = smul.addr %s3811, 8
        %s3813 = scalar_lea.vmem %s3, %s3812
      $region48: #{conv_block_forward.2} parent=39 // pred_fallthru
        _
    $region40: #{conv_block_forward.2} parent=5 // pred_fallthru
      _
  $region6: #{conv_block_forward.2} parent=0 // loop_footer
    %s14 = sadd.s32 1, %s10
  $region7: #{conv_block_forward.2} parent=0 // loop_footer_branch
    %9 = sbr.rel target = $region3
  $region8: #{conv_block_forward.2} parent=0 // loop_exit
    _

// kernel: conv_block_forward.3
$region0: #{conv_block_forward.3}
  #allocation0 [shape = 'u32[]', space=smem, size = 0x4, offset = 0x4, fixed_abs, tag = 'smem constant byte address 0x4 - core index']
  #allocation1 [shape = 'u32[144,128]{1,0:T(1,128)}', space=vmem, size = 0x12000, scoped, tag = 'internal scratch']
  %s0 = inlined_call_operand.vmem [shape: f32[2,256,128], index: 0, kind: input, shape index: {}, may-alias: {0,3}]
  %s1 = inlined_call_operand.vmem [shape: f32[1,128], index: 1, kind: input, shape index: {}]
  %s2 = inlined_call_operand.vmem [shape: f32[1,128], index: 2, kind: input, shape index: {}]
  %s3 = inlined_call_operand.vmem [shape: f32[2,256,128], index: 3, kind: output, shape index: {}, may-alias: {0,3}]
  %s4 = sld [smem:[#allocation0]]
  $region45: #{conv_block_forward.3} parent=0
    _
  %s6 = ssub.s32 1, %s4
  %s7 = scalar_select 0, %s6, %s4
  loop: start=0, step=1, limit=4
  $region2: #{conv_block_forward.3} parent=0 // loop_pre_header
    _
  $region3: #{conv_block_forward.3} parent=0 // loop_header
    %s9 = sphi 0, %s13
    %p10 = scmp.ge.s32.totalorder %s9, 4
    %s19 = sphi 0, %s21
    %s22 = sphi 0, %s19
    %s23 = sphi 0, %s22
    %s39 = sphi 0, %s23
    %s43 = sphi 0, %s43
    %s45 = sphi 0, %s43
    %s46 = sphi 0, %s45
    %s60 = sphi 0, %s46
    %s64 = sphi 0, %s64
    %s66 = sphi 0, %s64
    %s67 = sphi 0, %s66
    %s81 = sphi 0, %s67
    %s87 = sphi 0, %s89
    %s90 = sphi 0, %s87
    %s91 = sphi 0, %s90
    %s107 = sphi 0, %s91
  $region4: #{conv_block_forward.3} parent=0 // loop_header_branch
    %12 = sbr.rel (%p10) target = $region8
  $region5: #{conv_block_forward.3} parent=0 // loop_body
    %s14 = ssub.s32 %s9, 1
    %s15 = ssub.s32 %s9, 2
    %s16 = sadd.s32 %s9, 1
    %s17 = ssub.s32 %s9, %s16
    %p18 = scmp.eq.s32.totalorder %s17, 0
    %s20 = sadd.s32 %s19, 1
    %s21 = scalar_select %p18, %s19, %s20
    %p24 = pneg %p18
    %p25 = scmp.eq.s32.totalorder %s9, 1
    %p26 = por %p24, %p25
    %p27 = scmp.ne.s32.totalorder %s19, %s22
    %p28 = scmp.eq.s32.totalorder %s9, 0
    %p29 = por %p27, %p28
    %p30 = scmp.ne.s32.totalorder %s19, %s22
    %p31 = scmp.eq.s32.totalorder %s14, 1
    %p32 = por %p30, %p31
    %p33 = scmp.ne.s32.totalorder %s22, %s23
    %p34 = scmp.eq.s32.totalorder %s14, 0
    %p35 = por %p33, %p34
    %p36 = scmp.ne.s32.totalorder %s22, %s23
    %p37 = scmp.eq.s32.totalorder %s15, 1
    %p38 = por %p36, %p37
    %p40 = scmp.ne.s32.totalorder %s23, %s39
    %p41 = scmp.eq.s32.totalorder %s15, 0
    %p42 = por %p40, %p41
    %s44 = sadd.s32 %s43, 1
    %p47 = scmp.eq.s32.totalorder %s9, 1
    %p48 = scmp.ne.s32.totalorder %s43, %s45
    %p49 = scmp.eq.s32.totalorder %s9, 0
    %p50 = por %p48, %p49
    %p51 = scmp.ne.s32.totalorder %s43, %s45
    %p52 = scmp.eq.s32.totalorder %s14, 1
    %p53 = por %p51, %p52
    %p54 = scmp.ne.s32.totalorder %s45, %s46
    %p55 = scmp.eq.s32.totalorder %s14, 0
    %p56 = por %p54, %p55
    %p57 = scmp.ne.s32.totalorder %s45, %s46
    %p58 = scmp.eq.s32.totalorder %s15, 1
    %p59 = por %p57, %p58
    %p61 = scmp.ne.s32.totalorder %s46, %s60
    %p62 = scmp.eq.s32.totalorder %s15, 0
    %p63 = por %p61, %p62
    %s65 = sadd.s32 %s64, 1
    %p68 = scmp.eq.s32.totalorder %s9, 1
    %p69 = scmp.ne.s32.totalorder %s64, %s66
    %p70 = scmp.eq.s32.totalorder %s9, 0
    %p71 = por %p69, %p70
    %p72 = scmp.ne.s32.totalorder %s64, %s66
    %p73 = scmp.eq.s32.totalorder %s14, 1
    %p74 = por %p72, %p73
    %p75 = scmp.ne.s32.totalorder %s66, %s67
    %p76 = scmp.eq.s32.totalorder %s14, 0
    %p77 = por %p75, %p76
    %p78 = scmp.ne.s32.totalorder %s66, %s67
    %p79 = scmp.eq.s32.totalorder %s15, 1
    %p80 = por %p78, %p79
    %p82 = scmp.ne.s32.totalorder %s67, %s81
    %p83 = scmp.eq.s32.totalorder %s15, 0
    %p84 = por %p82, %p83
    %s85 = ssub.s32 %s9, %s16
    %p86 = scmp.eq.s32.totalorder %s85, 0
    %s88 = sadd.s32 %s87, 1
    %s89 = scalar_select %p86, %s87, %s88
    %p92 = pneg %p86
    %p93 = scmp.eq.s32.totalorder %s9, 1
    %p94 = por %p92, %p93
    %p95 = scmp.ne.s32.totalorder %s87, %s90
    %p96 = scmp.eq.s32.totalorder %s9, 0
    %p97 = por %p95, %p96
    %p98 = scmp.ne.s32.totalorder %s87, %s90
    %p99 = scmp.eq.s32.totalorder %s14, 1
    %p100 = por %p98, %p99
    %p101 = scmp.ne.s32.totalorder %s90, %s91
    %p102 = scmp.eq.s32.totalorder %s14, 0
    %p103 = por %p101, %p102
    %p104 = scmp.ne.s32.totalorder %s90, %s91
    %p105 = scmp.eq.s32.totalorder %s15, 1
    %p106 = por %p104, %p105
    %p108 = scmp.ne.s32.totalorder %s91, %s107
    %p109 = scmp.eq.s32.totalorder %s15, 0
    %p110 = por %p108, %p109
    %p111 = scmp.le.s32.totalorder 1, %s9
    %p112 = scmp.lt.s32.totalorder %s9, 3
    %p113 = pnand %p111, %p112
    %p114 = pneg %p113
    // Predicated region
    $region9: #{conv_block_forward.3} parent=5 // pred_check
      _
    $region10: #{conv_block_forward.3} parent=5 // pred_check_branch
      %116 = sbr.rel (%p113) target = $region12
    $region11: #{conv_block_forward.3} parent=5 // pred_region
      %s117 = ssub.s32 %s9, 1
      // Predicated region
      $region13: #{conv_block_forward.3} parent=11 // pred_check
        %p118 = pneg %p56
      $region14: #{conv_block_forward.3} parent=11 // pred_check_branch
        %120 = sbr.rel (%p118) target = $region16
      $region15: #{conv_block_forward.3} parent=11 // pred_region
        _
      $region16: #{conv_block_forward.3} parent=11 // pred_fallthru
        _
      // Predicated region
      $region17: #{conv_block_forward.3} parent=11 // pred_check
        %p121 = pneg %p77
      $region18: #{conv_block_forward.3} parent=11 // pred_check_branch
        %123 = sbr.rel (%p121) target = $region20
      $region19: #{conv_block_forward.3} parent=11 // pred_region
        _
      $region20: #{conv_block_forward.3} parent=11 // pred_fallthru
        _
    $region12: #{conv_block_forward.3} parent=5 // pred_fallthru
      _
    %p124 = scmp.lt.s32.totalorder %s9, 2
    // Predicated region
    $region21: #{conv_block_forward.3} parent=5 // pred_check
      %p125 = pneg %p124
    $region22: #{conv_block_forward.3} parent=5 // pred_check_branch
      %127 = sbr.rel (%p125) target = $region24
    $region23: #{conv_block_forward.3} parent=5 // pred_region
      // Predicated region
      $region25: #{conv_block_forward.3} parent=23 // pred_check
        %p128 = pneg %p29
      $region26: #{conv_block_forward.3} parent=23 // pred_check_branch
        %130 = sbr.rel (%p128) target = $region28
      $region27: #{conv_block_forward.3} parent=23 // pred_region
        %p131 = scmp.lt.s32.totalorder %s9, 1
        %s132 = scalar_select %p131, %s9, 1
        %s133 = smul.addr %s132, 32
        %s134 = smul.addr %s133, 8
        %s135 = scalar_lea.vmem %s0, %s134
      $region28: #{conv_block_forward.3} parent=23 // pred_fallthru
        _
    $region24: #{conv_block_forward.3} parent=5 // pred_fallthru
      _
    %p136 = scmp.le.s32.totalorder 1, %s9
    %p137 = scmp.lt.s32.totalorder %s9, 3
    %p138 = pnand %p136, %p137
    %p139 = pneg %p138
    // Predicated region
    $region29: #{conv_block_forward.3} parent=5 // pred_check
      _
    $region30: #{conv_block_forward.3} parent=5 // pred_check_branch
      %141 = sbr.rel (%p138) target = $region32
    $region31: #{conv_block_forward.3} parent=5 // pred_region
      %s142 = ssub.s32 %s9, 1
      %p143 = scmp.lt.s32.totalorder %s14, 1
      %s144 = scalar_select %p143, %s14, 1
      %s145 = smul.addr %s144, 32
      %s146 = smul.addr %s145, 8
      %s147 = scalar_lea.vmem %s0, %s146
      %p148 = pneg %p35
      %p149 = pneg %p32
      %p150 = pneg %p56
      %p151 = pneg %p53
      %p152 = pneg %p77
      %p153 = pneg %p74
      %p154 = pneg %p103
      %p155 = pneg %p100
      %p156 = scmp.lt.s32.totalorder %s14, 1
      %s157 = scalar_select %p156, %s14, 1
      %s158 = smul.addr %s157, 32
      %s159 = smul.addr %s158, 8
      %s160 = scalar_lea.vmem %s3, %s159
      %p161 = scmp.lt.s32.totalorder %s14, 1
      %s162 = scalar_select %p161, %s14, 1
      %s163 = smul.addr %s162, 32
      %s164 = smul.addr %s163, 8
      %s165 = scalar_lea.vmem %s0, %s164
      %p166 = scmp.lt.s32.totalorder %s14, 1
      %s167 = scalar_select %p166, %s14, 1
      %s168 = smul.addr %s167, 32
      %s169 = smul.addr %s168, 8
      %s170 = scalar_lea.vmem %s3, %s169
      %v171 = vld [vmem:[%s165] sm:$0xff]
      %v172 = vld [vmem:[%s165 + $0x8] sm:$0xff]
      %v173 = vld [vmem:[%s165 + $0x10] sm:$0xff]
      %v174 = vld [vmem:[%s165 + $0x18] sm:$0xff]
      %v175 = vld [vmem:[%s165 + $0x20] sm:$0xff]
      %v176 = vld [vmem:[%s165 + $0x28] sm:$0xff]
      %v177 = vld [vmem:[%s165 + $0x30] sm:$0xff]
      %v178 = vld [vmem:[%s165 + $0x38] sm:$0xff]
      %v179 = vld [vmem:[%s165 + $0x40] sm:$0xff]
      %v180 = vld [vmem:[%s165 + $0x48] sm:$0xff]
      %v181 = vld [vmem:[%s165 + $0x50] sm:$0xff]
      %v182 = vld [vmem:[%s165 + $0x58] sm:$0xff]
      %v183 = vld [vmem:[%s165 + $0x60] sm:$0xff]
      %v184 = vld [vmem:[%s165 + $0x68] sm:$0xff]
      %v185 = vld [vmem:[%s165 + $0x70] sm:$0xff]
      %v186 = vld [vmem:[%s165 + $0x78] sm:$0xff]
      %v187 = vld [vmem:[%s165 + $0x80] sm:$0xff]
      %v188 = vld [vmem:[%s165 + $0x88] sm:$0xff]
      %v189 = vld [vmem:[%s165 + $0x90] sm:$0xff]
      %v190 = vld [vmem:[%s165 + $0x98] sm:$0xff]
      %v191 = vld [vmem:[%s165 + $0xa0] sm:$0xff]
      %v192 = vld [vmem:[%s165 + $0xa8] sm:$0xff]
      %v193 = vld [vmem:[%s165 + $0xb0] sm:$0xff]
      %v194 = vld [vmem:[%s165 + $0xb8] sm:$0xff]
      %v195 = vld [vmem:[%s165 + $0xc0] sm:$0xff]
      %v196 = vld [vmem:[%s165 + $0xc8] sm:$0xff]
      %v197 = vld [vmem:[%s165 + $0xd0] sm:$0xff]
      %v198 = vld [vmem:[%s165 + $0xd8] sm:$0xff]
      %v199 = vld [vmem:[%s165 + $0xe0] sm:$0xff]
      %v200 = vld [vmem:[%s165 + $0xe8] sm:$0xff]
      %v201 = vld [vmem:[%s165 + $0xf0] sm:$0xff]
      %v202 = vld [vmem:[%s165 + $0xf8] sm:$0xff]
      %v203 = vld [vmem:[%s1] sm:$0x1]
      %v205 = vlaneseq
      %v206 = vshrl.u32 %v205, 7
      %v207 = vsub.s32 0, %v206
      %v208 = vrot.slane %v203, %v207
      %v210 = vmul.f32 %v171, %v208
      %v211 = vmul.f32 %v172, %v208
      %v212 = vmul.f32 %v173, %v208
      %v213 = vmul.f32 %v174, %v208
      %v214 = vmul.f32 %v175, %v208
      %v215 = vmul.f32 %v176, %v208
      %v216 = vmul.f32 %v177, %v208
      %v217 = vmul.f32 %v178, %v208
      %v218 = vmul.f32 %v179, %v208
      %v219 = vmul.f32 %v180, %v208
      %v220 = vmul.f32 %v181, %v208
      %v221 = vmul.f32 %v182, %v208
      %v222 = vmul.f32 %v183, %v208
      %v223 = vmul.f32 %v184, %v208
      %v224 = vmul.f32 %v185, %v208
      %v225 = vmul.f32 %v186, %v208
      %v226 = vmul.f32 %v187, %v208
      %v227 = vmul.f32 %v188, %v208
      %v228 = vmul.f32 %v189, %v208
      %v229 = vmul.f32 %v190, %v208
      %v230 = vmul.f32 %v191, %v208
      %v231 = vmul.f32 %v192, %v208
      %v232 = vmul.f32 %v193, %v208
      %v233 = vmul.f32 %v194, %v208
      %v234 = vmul.f32 %v195, %v208
      %v235 = vmul.f32 %v196, %v208
      %v236 = vmul.f32 %v197, %v208
      %v237 = vmul.f32 %v198, %v208
      %v238 = vmul.f32 %v199, %v208
      %v239 = vmul.f32 %v200, %v208
      %v240 = vmul.f32 %v201, %v208
      %v241 = vmul.f32 %v202, %v208
      %v242 = vld [vmem:[%s2] sm:$0x1]
      %v244 = vlaneseq
      %v245 = vshrl.u32 %v244, 7
      %v246 = vsub.s32 0, %v245
      %v247 = vrot.slane %v242, %v246
      %v249 = vadd.f32 %v210, %v247
      %v250 = vadd.f32 %v211, %v247
      %v251 = vadd.f32 %v212, %v247
      %v252 = vadd.f32 %v213, %v247
      %v253 = vadd.f32 %v214, %v247
      %v254 = vadd.f32 %v215, %v247
      %v255 = vadd.f32 %v216, %v247
      %v256 = vadd.f32 %v217, %v247
      %v257 = vadd.f32 %v218, %v247
      %v258 = vadd.f32 %v219, %v247
      %v259 = vadd.f32 %v220, %v247
      %v260 = vadd.f32 %v221, %v247
      %v261 = vadd.f32 %v222, %v247
      %v262 = vadd.f32 %v223, %v247
      %v263 = vadd.f32 %v224, %v247
      %v264 = vadd.f32 %v225, %v247
      %v265 = vadd.f32 %v226, %v247
      %v266 = vadd.f32 %v227, %v247
      %v267 = vadd.f32 %v228, %v247
      %v268 = vadd.f32 %v229, %v247
      %v269 = vadd.f32 %v230, %v247
      %v270 = vadd.f32 %v231, %v247
      %v271 = vadd.f32 %v232, %v247
      %v272 = vadd.f32 %v233, %v247
      %v273 = vadd.f32 %v234, %v247
      %v274 = vadd.f32 %v235, %v247
      %v275 = vadd.f32 %v236, %v247
      %v276 = vadd.f32 %v237, %v247
      %v277 = vadd.f32 %v238, %v247
      %v278 = vadd.f32 %v239, %v247
      %v279 = vadd.f32 %v240, %v247
      %v280 = vadd.f32 %v241, %v247
      %v281 = vsub.f32 0.0, %v249
      %v282 = vsub.f32 0.0, %v250
      %v283 = vsub.f32 0.0, %v251
      %v284 = vsub.f32 0.0, %v252
      %v285 = vsub.f32 0.0, %v253
      %v286 = vsub.f32 0.0, %v254
      %v287 = vsub.f32 0.0, %v255
      %v288 = vsub.f32 0.0, %v256
      %v289 = vsub.f32 0.0, %v257
      %v290 = vsub.f32 0.0, %v258
      %v291 = vsub.f32 0.0, %v259
      %v292 = vsub.f32 0.0, %v260
      %v293 = vsub.f32 0.0, %v261
      %v294 = vsub.f32 0.0, %v262
      %v295 = vsub.f32 0.0, %v263
      %v296 = vsub.f32 0.0, %v264
      %v297 = vsub.f32 0.0, %v265
      %v298 = vsub.f32 0.0, %v266
      %v299 = vsub.f32 0.0, %v267
      %v300 = vsub.f32 0.0, %v268
      %v301 = vsub.f32 0.0, %v269
      %v302 = vsub.f32 0.0, %v270
      %v303 = vsub.f32 0.0, %v271
      %v304 = vsub.f32 0.0, %v272
      %v305 = vsub.f32 0.0, %v273
      %v306 = vsub.f32 0.0, %v274
      %v307 = vsub.f32 0.0, %v275
      %v308 = vsub.f32 0.0, %v276
      %v309 = vsub.f32 0.0, %v277
      %v310 = vsub.f32 0.0, %v278
      %v311 = vsub.f32 0.0, %v279
      %v312 = vsub.f32 0.0, %v280
      %v313 = vmul.f32 %v281, 1.442695
      %v314 = vpow.pop %v313
      %v315 = vmul.f32 %v282, 1.442695
      %v316 = vpow.pop %v315
      %v317 = vmul.f32 %v283, 1.442695
      %v318 = vpow.pop %v317
      %v319 = vmul.f32 %v284, 1.442695
      %v320 = vpow.pop %v319
      %v321 = vmul.f32 %v285, 1.442695
      %v322 = vpow.pop %v321
      %v323 = vmul.f32 %v286, 1.442695
      %v324 = vpow.pop %v323
      %v325 = vmul.f32 %v287, 1.442695
      %v326 = vpow.pop %v325
      %v327 = vmul.f32 %v288, 1.442695
      %v328 = vpow.pop %v327
      %v329 = vmul.f32 %v289, 1.442695
      %v330 = vpow.pop %v329
      %v331 = vmul.f32 %v290, 1.442695
      %v332 = vpow.pop %v331
      %v333 = vmul.f32 %v291, 1.442695
      %v334 = vpow.pop %v333
      %v335 = vmul.f32 %v292, 1.442695
      %v336 = vpow.pop %v335
      %v337 = vmul.f32 %v293, 1.442695
      %v338 = vpow.pop %v337
      %v339 = vmul.f32 %v294, 1.442695
      %v340 = vpow.pop %v339
      %v341 = vmul.f32 %v295, 1.442695
      %v342 = vpow.pop %v341
      %v343 = vmul.f32 %v296, 1.442695
      %v344 = vpow.pop %v343
      %v345 = vmul.f32 %v297, 1.442695
      %v346 = vpow.pop %v345
      %v347 = vmul.f32 %v298, 1.442695
      %v348 = vpow.pop %v347
      %v349 = vmul.f32 %v299, 1.442695
      %v350 = vpow.pop %v349
      %v351 = vmul.f32 %v300, 1.442695
      %v352 = vpow.pop %v351
      %v353 = vmul.f32 %v301, 1.442695
      %v354 = vpow.pop %v353
      %v355 = vmul.f32 %v302, 1.442695
      %v356 = vpow.pop %v355
      %v357 = vmul.f32 %v303, 1.442695
      %v358 = vpow.pop %v357
      %v359 = vmul.f32 %v304, 1.442695
      %v360 = vpow.pop %v359
      %v361 = vmul.f32 %v305, 1.442695
      %v362 = vpow.pop %v361
      %v363 = vmul.f32 %v306, 1.442695
      %v364 = vpow.pop %v363
      %v365 = vmul.f32 %v307, 1.442695
      %v366 = vpow.pop %v365
      %v367 = vmul.f32 %v308, 1.442695
      %v368 = vpow.pop %v367
      %v369 = vmul.f32 %v309, 1.442695
      %v370 = vpow.pop %v369
      %v371 = vmul.f32 %v310, 1.442695
      %v372 = vpow.pop %v371
      %v373 = vmul.f32 %v311, 1.442695
      %v374 = vpow.pop %v373
      %v375 = vmul.f32 %v312, 1.442695
      %v376 = vpow.pop %v375
      %v377 = vadd.f32 %v314, 1.0
      %v378 = vadd.f32 %v316, 1.0
      %v379 = vadd.f32 %v318, 1.0
      %v380 = vadd.f32 %v320, 1.0
      %v381 = vadd.f32 %v322, 1.0
      %v382 = vadd.f32 %v324, 1.0
      %v383 = vadd.f32 %v326, 1.0
      %v384 = vadd.f32 %v328, 1.0
      %v385 = vadd.f32 %v330, 1.0
      %v386 = vadd.f32 %v332, 1.0
      %v387 = vadd.f32 %v334, 1.0
      %v388 = vadd.f32 %v336, 1.0
      %v389 = vadd.f32 %v338, 1.0
      %v390 = vadd.f32 %v340, 1.0
      %v391 = vadd.f32 %v342, 1.0
      %v392 = vadd.f32 %v344, 1.0
      %v393 = vadd.f32 %v346, 1.0
      %v394 = vadd.f32 %v348, 1.0
      %v395 = vadd.f32 %v350, 1.0
      %v396 = vadd.f32 %v352, 1.0
      %v397 = vadd.f32 %v354, 1.0
      %v398 = vadd.f32 %v356, 1.0
      %v399 = vadd.f32 %v358, 1.0
      %v400 = vadd.f32 %v360, 1.0
      %v401 = vadd.f32 %v362, 1.0
      %v402 = vadd.f32 %v364, 1.0
      %v403 = vadd.f32 %v366, 1.0
      %v404 = vadd.f32 %v368, 1.0
      %v405 = vadd.f32 %v370, 1.0
      %v406 = vadd.f32 %v372, 1.0
      %v407 = vadd.f32 %v374, 1.0
      %v408 = vadd.f32 %v376, 1.0
      %v409 = vrcp.pop %v377
      %v410 = vrcp.pop %v378
      %v411 = vrcp.pop %v379
      %v412 = vrcp.pop %v380
      %v413 = vrcp.pop %v381
      %v414 = vrcp.pop %v382
      %v415 = vrcp.pop %v383
      %v416 = vrcp.pop %v384
      %v417 = vrcp.pop %v385
      %v418 = vrcp.pop %v386
      %v419 = vrcp.pop %v387
      %v420 = vrcp.pop %v388
      %v421 = vrcp.pop %v389
      %v422 = vrcp.pop %v390
      %v423 = vrcp.pop %v391
      %v424 = vrcp.pop %v392
      %v425 = vrcp.pop %v393
      %v426 = vrcp.pop %v394
      %v427 = vrcp.pop %v395
      %v428 = vrcp.pop %v396
      %v429 = vrcp.pop %v397
      %v430 = vrcp.pop %v398
      %v431 = vrcp.pop %v399
      %v432 = vrcp.pop %v400
      %v433 = vrcp.pop %v401
      %v434 = vrcp.pop %v402
      %v435 = vrcp.pop %v403
      %v436 = vrcp.pop %v404
      %v437 = vrcp.pop %v405
      %v438 = vrcp.pop %v406
      %v439 = vrcp.pop %v407
      %v440 = vrcp.pop %v408
      %v441 = vmul.f32 %v249, %v409
      %v442 = vmul.f32 %v250, %v410
      %v443 = vmul.f32 %v251, %v411
      %v444 = vmul.f32 %v252, %v412
      %v445 = vmul.f32 %v253, %v413
      %v446 = vmul.f32 %v254, %v414
      %v447 = vmul.f32 %v255, %v415
      %v448 = vmul.f32 %v256, %v416
      %v449 = vmul.f32 %v257, %v417
      %v450 = vmul.f32 %v258, %v418
      %v451 = vmul.f32 %v259, %v419
      %v452 = vmul.f32 %v260, %v420
      %v453 = vmul.f32 %v261, %v421
      %v454 = vmul.f32 %v262, %v422
      %v455 = vmul.f32 %v263, %v423
      %v456 = vmul.f32 %v264, %v424
      %v457 = vmul.f32 %v265, %v425
      %v458 = vmul.f32 %v266, %v426
      %v459 = vmul.f32 %v267, %v427
      %v460 = vmul.f32 %v268, %v428
      %v461 = vmul.f32 %v269, %v429
      %v462 = vmul.f32 %v270, %v430
      %v463 = vmul.f32 %v271, %v431
      %v464 = vmul.f32 %v272, %v432
      %v465 = vmul.f32 %v273, %v433
      %v466 = vmul.f32 %v274, %v434
      %v467 = vmul.f32 %v275, %v435
      %v468 = vmul.f32 %v276, %v436
      %v469 = vmul.f32 %v277, %v437
      %v470 = vmul.f32 %v278, %v438
      %v471 = vmul.f32 %v279, %v439
      %v472 = vmul.f32 %v280, %v440
      %473 = vst [vmem:[%s170] sm:$0xff] %v441
      %474 = vst [vmem:[%s170 + $0x8] sm:$0xff] %v442
      %475 = vst [vmem:[%s170 + $0x10] sm:$0xff] %v443
      %476 = vst [vmem:[%s170 + $0x18] sm:$0xff] %v444
      %477 = vst [vmem:[%s170 + $0x20] sm:$0xff] %v445
      %478 = vst [vmem:[%s170 + $0x28] sm:$0xff] %v446
      %479 = vst [vmem:[%s170 + $0x30] sm:$0xff] %v447
      %480 = vst [vmem:[%s170 + $0x38] sm:$0xff] %v448
      %481 = vst [vmem:[%s170 + $0x40] sm:$0xff] %v449
      %482 = vst [vmem:[%s170 + $0x48] sm:$0xff] %v450
      %483 = vst [vmem:[%s170 + $0x50] sm:$0xff] %v451
      %484 = vst [vmem:[%s170 + $0x58] sm:$0xff] %v452
      %485 = vst [vmem:[%s170 + $0x60] sm:$0xff] %v453
      %486 = vst [vmem:[%s170 + $0x68] sm:$0xff] %v454
      %487 = vst [vmem:[%s170 + $0x70] sm:$0xff] %v455
      %488 = vst [vmem:[%s170 + $0x78] sm:$0xff] %v456
      %489 = vst [vmem:[%s170 + $0x80] sm:$0xff] %v457
      %490 = vst [vmem:[%s170 + $0x88] sm:$0xff] %v458
      %491 = vst [vmem:[%s170 + $0x90] sm:$0xff] %v459
      %492 = vst [vmem:[%s170 + $0x98] sm:$0xff] %v460
      %493 = vst [vmem:[%s170 + $0xa0] sm:$0xff] %v461
      %494 = vst [vmem:[%s170 + $0xa8] sm:$0xff] %v462
      %495 = vst [vmem:[%s170 + $0xb0] sm:$0xff] %v463
      %496 = vst [vmem:[%s170 + $0xb8] sm:$0xff] %v464
      %497 = vst [vmem:[%s170 + $0xc0] sm:$0xff] %v465
      %498 = vst [vmem:[%s170 + $0xc8] sm:$0xff] %v466
      %499 = vst [vmem:[%s170 + $0xd0] sm:$0xff] %v467
      %500 = vst [vmem:[%s170 + $0xd8] sm:$0xff] %v468
      %501 = vst [vmem:[%s170 + $0xe0] sm:$0xff] %v469
      %502 = vst [vmem:[%s170 + $0xe8] sm:$0xff] %v470
      %503 = vst [vmem:[%s170 + $0xf0] sm:$0xff] %v471
      %504 = vst [vmem:[%s170 + $0xf8] sm:$0xff] %v472
      %p505 = scmp.lt.s32.totalorder %s14, 1
      %s506 = scalar_select %p505, %s14, 1
      %s507 = smul.addr %s506, 32
      %s508 = smul.addr %s507, 8
      %s509 = scalar_lea.vmem %s3, %s508
      // Predicated region
      $region33: #{conv_block_forward.3} parent=31 // pred_check
        %p510 = pneg %p100
      $region34: #{conv_block_forward.3} parent=31 // pred_check_branch
        %512 = sbr.rel (%p510) target = $region36
      $region35: #{conv_block_forward.3} parent=31 // pred_region
        _
      $region36: #{conv_block_forward.3} parent=31 // pred_fallthru
        _
    $region32: #{conv_block_forward.3} parent=5 // pred_fallthru
      _
    %p513 = scmp.le.s32.totalorder 2, %s9
    // Predicated region
    $region37: #{conv_block_forward.3} parent=5 // pred_check
      %p514 = pneg %p513
    $region38: #{conv_block_forward.3} parent=5 // pred_check_branch
      %516 = sbr.rel (%p514) target = $region40
    $region39: #{conv_block_forward.3} parent=5 // pred_region
      %s517 = ssub.s32 %s9, 2
      // Predicated region
      $region41: #{conv_block_forward.3} parent=39 // pred_check
        %p518 = pneg %p106
      $region42: #{conv_block_forward.3} parent=39 // pred_check_branch
        %520 = sbr.rel (%p518) target = $region44
      $region43: #{conv_block_forward.3} parent=39 // pred_region
        %p521 = scmp.lt.s32.totalorder %s15, 1
        %s522 = scalar_select %p521, %s15, 1
        %s523 = smul.addr %s522, 32
        %s524 = smul.addr %s523, 8
        %s525 = scalar_lea.vmem %s3, %s524
      $region44: #{conv_block_forward.3} parent=39 // pred_fallthru
        _
    $region40: #{conv_block_forward.3} parent=5 // pred_fallthru
      _
  $region6: #{conv_block_forward.3} parent=0 // loop_footer
    %s13 = sadd.s32 1, %s9
  $region7: #{conv_block_forward.3} parent=0 // loop_footer_branch
    %8 = sbr.rel target = $region3
  $region8: #{conv_block_forward.3} parent=0 // loop_exit
    _

</llo_original>
